<compile_context>
chip_gen: v7x
topology: tpu7x:2x2x1
jax: 0.10.0
libtpu: 0.0.40
codegen_flags: <defaults>
</compile_context>

<pallas_src>
import jax
import jax.numpy as jnp
from jax import lax
from jax.experimental import pallas as pl
from jax.experimental.pallas import tpu as pltpu


def _pick_lane_tile(N, max_tn=1024):
    """Largest multiple of 128 that divides N, capped at max_tn.

    Falls back to a single full-extent block when N % 128 != 0 (correct, but
    produces masked partial stores; pad N to a multiple of 128 for perf)."""
    if N % 128 != 0:
        return N
    tn = min(max_tn, N)
    while tn >= 128:
        if N % tn == 0:
            return tn
        tn -= 128
    return N


def _make_tsa_kernel(T, C, heads, CHUNK, n_chunks):
    def kernel(x_ref, w_ref, b_ref, o_ref):
        # x_ref : (1, C*T, TN)  input pixels, rows = c*T + t (channel-major)
        # w_ref : (heads*2*C*C,) f32 SMEM  -- [h, {M'=Wq^T Wk, Wv/heads}, c_out, c_in]
        # b_ref : (heads*2*C,)   f32 SMEM  -- [h, {u=Wq^T bk, bv/heads}, c_out]
        # o_ref : (1, C*T, TN)  output block (same layout as x)

        # Hoist all SMEM scalar reads above the chunk loop (stay in sregs).
        wM = [[[w_ref[((h * 2 + 0) * C + o) * C + c] for c in range(C)]
               for o in range(C)] for h in range(heads)]
        wV = [[[w_ref[((h * 2 + 1) * C + o) * C + c] for c in range(C)]
               for o in range(C)] for h in range(heads)]
        bM = [[b_ref[(h * 2 + 0) * C + o] for o in range(C)] for h in range(heads)]
        bV = [[b_ref[(h * 2 + 1) * C + o] for o in range(C)] for h in range(heads)]

        def chunk_body(off):
            # Per-channel (T, CHUNK) tiles; sublane-aligned for T=8.
            x_ch = [x_ref[0, c * T:(c + 1) * T, pl.ds(off, CHUNK)]
                    for c in range(C)]
            acc = [None] * C  # running sum over heads (1/heads already folded in)

            for h in range(heads):
                # Fused "key-side" projection y = M' x + u and the value
                # projection v = (Wv/heads) x + bv/heads.
                # Unrolled lane-wise FMAs with scalar SMEM weights (C=4, T=8:
                # too small for the MXU, stays on the VPU).
                y, vv = [], []
                for o in range(C):
                    yo = wM[h][o][0] * x_ch[0]
                    vo = wV[h][o][0] * x_ch[0]
                    for c in range(1, C):
                        yo = yo + wM[h][o][c] * x_ch[c]
                        vo = vo + wV[h][o][c] * x_ch[c]
                    y.append(yo + bM[h][o])
                    vv.append(vo + bV[h][o])

                # scores s[i, j, n] = sum_c y[c][i, n] * x[c][j, n]
                # (equals the reference k.q up to per-i constants, which cancel
                #  in the softmax over j)
                s = y[0][:, None, :] * x_ch[0][None, :, :]
                for c in range(1, C):
                    s = s + y[c][:, None, :] * x_ch[c][None, :, :]

                # softmax over j (axis 1): EUP exp, exact f32 divide for the
                # denominator (approx reciprocal exceeded the 1e-3 tolerance).
                p = jnp.exp(s - jnp.max(s, axis=1, keepdims=True))  # (T,T,CHUNK)
                inv_den = 1.0 / jnp.sum(p, axis=1)                  # (T,CHUNK)

                # att[c][i, n] = (sum_j p[i,j,n] * v[c][j,n]) * inv_den[i,n]
                for c in range(C):
                    att_c = jnp.sum(p * vv[c][None, :, :], axis=1) * inv_den
                    acc[c] = att_c if acc[c] is None else acc[c] + att_c

            # mean over heads of (att_h + x) == sum(att_h/heads) + x
            for c in range(C):
                o_ref[0, c * T:(c + 1) * T, pl.ds(off, CHUNK)] = acc[c] + x_ch[c]

        if n_chunks == 1:
            chunk_body(0)
        else:
            # fori_loop (not unrolled) bounds the live ranges per 256-lane
            # chunk -> live set stays under the 64-vreg file (no spills).
            def loop_body(ci, carry):
                chunk_body(pl.multiple_of(ci * CHUNK, 128))
                return carry
            lax.fori_loop(0, n_chunks, loop_body, 0)

    return kernel


def temporal_self_attention(x_btchw, weights, biases):
    """x_btchw: (B, T, C, H, W); weights: (heads, 3, C, C); biases: (heads, 3, C)."""
    B, T, C, H, W = x_btchw.shape
    N = H * W
    heads = weights.shape[0]

    TN = _pick_lane_tile(N)
    n_tiles = N // TN
    CHUNK = 256 if (TN % 256 == 0) else TN
    n_chunks = TN // CHUNK

    # ---- host-side parameter fusion -------------------------------------
    Wk, Wq, Wv = weights[:, 0], weights[:, 1], weights[:, 2]   # (heads, C, C)
    bk, bv = biases[:, 0], biases[:, 2]                        # (heads, C)
    # bq cancels inside the softmax over j -> unused.
    M = jnp.einsum('hdc,hde->hce', Wq, Wk)      # Wq^T Wk   (heads, C, C)
    u = jnp.einsum('hdc,hd->hc', Wq, bk)        # Wq^T bk   (heads, C)
    Wv_s = Wv / heads                            # fold 1/heads into v-proj
    bv_s = bv / heads

    w_flat = jnp.stack([M, Wv_s], axis=1).reshape(-1).astype(jnp.float32)
    b_flat = jnp.stack([u, bv_s], axis=1).reshape(-1).astype(jnp.float32)

    # Channel-major layout (B, C*T, N): each channel is a contiguous T-row slab
    # on sublanes, pixels on the lane axis (lane-dense, multiple of 128).
    # TODO(synk): for deployed (small H*W) shapes check in xprof whether these
    # wrapper transposes dominate; if so consume (B, T*C, N) with strided slices.
    x = (x_btchw.reshape(B, T, C, N)
                .transpose(0, 2, 1, 3)
                .reshape(B, C * T, N)
                .astype(jnp.float32))

    kernel = _make_tsa_kernel(T=T, C=C, heads=heads, CHUNK=CHUNK,
                              n_chunks=n_chunks)

    out = pl.pallas_call(
        kernel,
        out_shape=jax.ShapeDtypeStruct((B, C * T, N), jnp.float32),
        grid_spec=pltpu.PrefetchScalarGridSpec(
            num_scalar_prefetch=0,
            grid=(B, n_tiles),
            in_specs=[
                pl.BlockSpec((1, C * T, TN), lambda bb, nn: (bb, 0, nn)),
                pl.BlockSpec(memory_space=pltpu.MemorySpace.SMEM),
                pl.BlockSpec(memory_space=pltpu.MemorySpace.SMEM),
            ],
            out_specs=pl.BlockSpec((1, C * T, TN), lambda bb, nn: (bb, 0, nn)),
        ),
        compiler_params=pltpu.CompilerParams(
            dimension_semantics=("parallel", "parallel"),
        ),
    )(x, w_flat, b_flat)

    return (out.reshape(B, C, T, N)
               .transpose(0, 2, 1, 3)
               .reshape(B, T, C, H, W))


def _reference(x, weights, biases):
    """Pure-JAX reference matching the PyTorch forward."""
    heads = weights.shape[0]
    outs = []
    for h in range(heads):
        def conv(w_, b_):
            return (jnp.einsum('oc,btchw->btohw', w_, x)
                    + b_[None, None, :, None, None])
        k = conv(weights[h, 0], biases[h, 0])
        q = conv(weights[h, 1], biases[h, 1])
        v = conv(weights[h, 2], biases[h, 2])
        s = jnp.einsum('bichw,bjchw->bijhw', k, q)
        wgt = jax.nn.softmax(s, axis=2)
        att = jnp.einsum('bijhw,bjchw->bichw', wgt, v)
        outs.append(att + x)
    return jnp.mean(jnp.stack(outs, axis=-1), axis=-1)


if __name__ == "__main__":
    B, T, C, H, W, HEADS = 2, 8, 4, 16, 16, 2

    key = jax.random.PRNGKey(0)
    kx, kw, kb = jax.random.split(key, 3)
    x = jax.random.normal(kx, (B, T, C, H, W), dtype=jnp.float32)
    # deterministic synthetic params: (heads, [key,query,value], C_out, C_in)
    weights = 0.2 * jax.random.normal(kw, (HEADS, 3, C, C), dtype=jnp.float32)
    biases = 0.1 * jax.random.normal(kb, (HEADS, 3, C), dtype=jnp.float32)

    out = temporal_self_attention(x, weights, biases)
    out = jax.block_until_ready(out)

    ref = _reference(x, weights, biases)
    assert out.shape == (B, T, C, H, W)
    err = float(jnp.max(jnp.abs(out - ref)))
    assert err < 1e-3, err
    print("KERNEL_OK")
</pallas_src>

<mosaic_0001>
module attributes {stable_mosaic.version = 11 : i64} {
  func.func @kernel(%arg0: i32, %arg1: i32, %arg2: memref<1x32x256xf32, #tpu.memory_space<vmem>>, %arg3: memref<64xf32, #tpu.memory_space<smem>>, %arg4: memref<16xf32, #tpu.memory_space<smem>>, %arg5: memref<1x32x256xf32, #tpu.memory_space<vmem>>) attributes {dimension_semantics = [#tpu.dimension_semantics<parallel>, #tpu.dimension_semantics<parallel>], iteration_bounds = array<i64: 2, 1>, scalar_prefetch = 0 : i64, scratch_operands = 0 : i64, tpu.core_type = #tpu.core_type<tc>, window_params = [{transform_indices = @transform_0, window_bounds = array<i64: 1, 32, 256>}, {transform_indices = @transform_1, window_bounds = array<i64: 64>}, {transform_indices = @transform_2, window_bounds = array<i64: 16>}, {transform_indices = @transform_3, window_bounds = array<i64: 1, 32, 256>}]} {
    %c0 = arith.constant 0 : index
    %0 = memref.load %arg3[%c0] : memref<64xf32, #tpu.memory_space<smem>>
    %c1 = arith.constant 1 : index
    %1 = memref.load %arg3[%c1] : memref<64xf32, #tpu.memory_space<smem>>
    %c2 = arith.constant 2 : index
    %2 = memref.load %arg3[%c2] : memref<64xf32, #tpu.memory_space<smem>>
    %c3 = arith.constant 3 : index
    %3 = memref.load %arg3[%c3] : memref<64xf32, #tpu.memory_space<smem>>
    %c4 = arith.constant 4 : index
    %4 = memref.load %arg3[%c4] : memref<64xf32, #tpu.memory_space<smem>>
    %c5 = arith.constant 5 : index
    %5 = memref.load %arg3[%c5] : memref<64xf32, #tpu.memory_space<smem>>
    %c6 = arith.constant 6 : index
    %6 = memref.load %arg3[%c6] : memref<64xf32, #tpu.memory_space<smem>>
    %c7 = arith.constant 7 : index
    %7 = memref.load %arg3[%c7] : memref<64xf32, #tpu.memory_space<smem>>
    %c8 = arith.constant 8 : index
    %8 = memref.load %arg3[%c8] : memref<64xf32, #tpu.memory_space<smem>>
    %c9 = arith.constant 9 : index
    %9 = memref.load %arg3[%c9] : memref<64xf32, #tpu.memory_space<smem>>
    %c10 = arith.constant 10 : index
    %10 = memref.load %arg3[%c10] : memref<64xf32, #tpu.memory_space<smem>>
    %c11 = arith.constant 11 : index
    %11 = memref.load %arg3[%c11] : memref<64xf32, #tpu.memory_space<smem>>
    %c12 = arith.constant 12 : index
    %12 = memref.load %arg3[%c12] : memref<64xf32, #tpu.memory_space<smem>>
    %c13 = arith.constant 13 : index
    %13 = memref.load %arg3[%c13] : memref<64xf32, #tpu.memory_space<smem>>
    %c14 = arith.constant 14 : index
    %14 = memref.load %arg3[%c14] : memref<64xf32, #tpu.memory_space<smem>>
    %c15 = arith.constant 15 : index
    %15 = memref.load %arg3[%c15] : memref<64xf32, #tpu.memory_space<smem>>
    %c32 = arith.constant 32 : index
    %16 = memref.load %arg3[%c32] : memref<64xf32, #tpu.memory_space<smem>>
    %c33 = arith.constant 33 : index
    %17 = memref.load %arg3[%c33] : memref<64xf32, #tpu.memory_space<smem>>
    %c34 = arith.constant 34 : index
    %18 = memref.load %arg3[%c34] : memref<64xf32, #tpu.memory_space<smem>>
    %c35 = arith.constant 35 : index
    %19 = memref.load %arg3[%c35] : memref<64xf32, #tpu.memory_space<smem>>
    %c36 = arith.constant 36 : index
    %20 = memref.load %arg3[%c36] : memref<64xf32, #tpu.memory_space<smem>>
    %c37 = arith.constant 37 : index
    %21 = memref.load %arg3[%c37] : memref<64xf32, #tpu.memory_space<smem>>
    %c38 = arith.constant 38 : index
    %22 = memref.load %arg3[%c38] : memref<64xf32, #tpu.memory_space<smem>>
    %c39 = arith.constant 39 : index
    %23 = memref.load %arg3[%c39] : memref<64xf32, #tpu.memory_space<smem>>
    %c40 = arith.constant 40 : index
    %24 = memref.load %arg3[%c40] : memref<64xf32, #tpu.memory_space<smem>>
    %c41 = arith.constant 41 : index
    %25 = memref.load %arg3[%c41] : memref<64xf32, #tpu.memory_space<smem>>
    %c42 = arith.constant 42 : index
    %26 = memref.load %arg3[%c42] : memref<64xf32, #tpu.memory_space<smem>>
    %c43 = arith.constant 43 : index
    %27 = memref.load %arg3[%c43] : memref<64xf32, #tpu.memory_space<smem>>
    %c44 = arith.constant 44 : index
    %28 = memref.load %arg3[%c44] : memref<64xf32, #tpu.memory_space<smem>>
    %c45 = arith.constant 45 : index
    %29 = memref.load %arg3[%c45] : memref<64xf32, #tpu.memory_space<smem>>
    %c46 = arith.constant 46 : index
    %30 = memref.load %arg3[%c46] : memref<64xf32, #tpu.memory_space<smem>>
    %c47 = arith.constant 47 : index
    %31 = memref.load %arg3[%c47] : memref<64xf32, #tpu.memory_space<smem>>
    %c16 = arith.constant 16 : index
    %32 = memref.load %arg3[%c16] : memref<64xf32, #tpu.memory_space<smem>>
    %c17 = arith.constant 17 : index
    %33 = memref.load %arg3[%c17] : memref<64xf32, #tpu.memory_space<smem>>
    %c18 = arith.constant 18 : index
    %34 = memref.load %arg3[%c18] : memref<64xf32, #tpu.memory_space<smem>>
    %c19 = arith.constant 19 : index
    %35 = memref.load %arg3[%c19] : memref<64xf32, #tpu.memory_space<smem>>
    %c20 = arith.constant 20 : index
    %36 = memref.load %arg3[%c20] : memref<64xf32, #tpu.memory_space<smem>>
    %c21 = arith.constant 21 : index
    %37 = memref.load %arg3[%c21] : memref<64xf32, #tpu.memory_space<smem>>
    %c22 = arith.constant 22 : index
    %38 = memref.load %arg3[%c22] : memref<64xf32, #tpu.memory_space<smem>>
    %c23 = arith.constant 23 : index
    %39 = memref.load %arg3[%c23] : memref<64xf32, #tpu.memory_space<smem>>
    %c24 = arith.constant 24 : index
    %40 = memref.load %arg3[%c24] : memref<64xf32, #tpu.memory_space<smem>>
    %c25 = arith.constant 25 : index
    %41 = memref.load %arg3[%c25] : memref<64xf32, #tpu.memory_space<smem>>
    %c26 = arith.constant 26 : index
    %42 = memref.load %arg3[%c26] : memref<64xf32, #tpu.memory_space<smem>>
    %c27 = arith.constant 27 : index
    %43 = memref.load %arg3[%c27] : memref<64xf32, #tpu.memory_space<smem>>
    %c28 = arith.constant 28 : index
    %44 = memref.load %arg3[%c28] : memref<64xf32, #tpu.memory_space<smem>>
    %c29 = arith.constant 29 : index
    %45 = memref.load %arg3[%c29] : memref<64xf32, #tpu.memory_space<smem>>
    %c30 = arith.constant 30 : index
    %46 = memref.load %arg3[%c30] : memref<64xf32, #tpu.memory_space<smem>>
    %c31 = arith.constant 31 : index
    %47 = memref.load %arg3[%c31] : memref<64xf32, #tpu.memory_space<smem>>
    %c48 = arith.constant 48 : index
    %48 = memref.load %arg3[%c48] : memref<64xf32, #tpu.memory_space<smem>>
    %c49 = arith.constant 49 : index
    %49 = memref.load %arg3[%c49] : memref<64xf32, #tpu.memory_space<smem>>
    %c50 = arith.constant 50 : index
    %50 = memref.load %arg3[%c50] : memref<64xf32, #tpu.memory_space<smem>>
    %c51 = arith.constant 51 : index
    %51 = memref.load %arg3[%c51] : memref<64xf32, #tpu.memory_space<smem>>
    %c52 = arith.constant 52 : index
    %52 = memref.load %arg3[%c52] : memref<64xf32, #tpu.memory_space<smem>>
    %c53 = arith.constant 53 : index
    %53 = memref.load %arg3[%c53] : memref<64xf32, #tpu.memory_space<smem>>
    %c54 = arith.constant 54 : index
    %54 = memref.load %arg3[%c54] : memref<64xf32, #tpu.memory_space<smem>>
    %c55 = arith.constant 55 : index
    %55 = memref.load %arg3[%c55] : memref<64xf32, #tpu.memory_space<smem>>
    %c56 = arith.constant 56 : index
    %56 = memref.load %arg3[%c56] : memref<64xf32, #tpu.memory_space<smem>>
    %c57 = arith.constant 57 : index
    %57 = memref.load %arg3[%c57] : memref<64xf32, #tpu.memory_space<smem>>
    %c58 = arith.constant 58 : index
    %58 = memref.load %arg3[%c58] : memref<64xf32, #tpu.memory_space<smem>>
    %c59 = arith.constant 59 : index
    %59 = memref.load %arg3[%c59] : memref<64xf32, #tpu.memory_space<smem>>
    %c60 = arith.constant 60 : index
    %60 = memref.load %arg3[%c60] : memref<64xf32, #tpu.memory_space<smem>>
    %c61 = arith.constant 61 : index
    %61 = memref.load %arg3[%c61] : memref<64xf32, #tpu.memory_space<smem>>
    %c62 = arith.constant 62 : index
    %62 = memref.load %arg3[%c62] : memref<64xf32, #tpu.memory_space<smem>>
    %c63 = arith.constant 63 : index
    %63 = memref.load %arg3[%c63] : memref<64xf32, #tpu.memory_space<smem>>
    %c0_0 = arith.constant 0 : index
    %64 = memref.load %arg4[%c0_0] : memref<16xf32, #tpu.memory_space<smem>>
    %c1_1 = arith.constant 1 : index
    %65 = memref.load %arg4[%c1_1] : memref<16xf32, #tpu.memory_space<smem>>
    %c2_2 = arith.constant 2 : index
    %66 = memref.load %arg4[%c2_2] : memref<16xf32, #tpu.memory_space<smem>>
    %c3_3 = arith.constant 3 : index
    %67 = memref.load %arg4[%c3_3] : memref<16xf32, #tpu.memory_space<smem>>
    %c8_4 = arith.constant 8 : index
    %68 = memref.load %arg4[%c8_4] : memref<16xf32, #tpu.memory_space<smem>>
    %c9_5 = arith.constant 9 : index
    %69 = memref.load %arg4[%c9_5] : memref<16xf32, #tpu.memory_space<smem>>
    %c10_6 = arith.constant 10 : index
    %70 = memref.load %arg4[%c10_6] : memref<16xf32, #tpu.memory_space<smem>>
    %c11_7 = arith.constant 11 : index
    %71 = memref.load %arg4[%c11_7] : memref<16xf32, #tpu.memory_space<smem>>
    %c4_8 = arith.constant 4 : index
    %72 = memref.load %arg4[%c4_8] : memref<16xf32, #tpu.memory_space<smem>>
    %c5_9 = arith.constant 5 : index
    %73 = memref.load %arg4[%c5_9] : memref<16xf32, #tpu.memory_space<smem>>
    %c6_10 = arith.constant 6 : index
    %74 = memref.load %arg4[%c6_10] : memref<16xf32, #tpu.memory_space<smem>>
    %c7_11 = arith.constant 7 : index
    %75 = memref.load %arg4[%c7_11] : memref<16xf32, #tpu.memory_space<smem>>
    %c12_12 = arith.constant 12 : index
    %76 = memref.load %arg4[%c12_12] : memref<16xf32, #tpu.memory_space<smem>>
    %c13_13 = arith.constant 13 : index
    %77 = memref.load %arg4[%c13_13] : memref<16xf32, #tpu.memory_space<smem>>
    %c14_14 = arith.constant 14 : index
    %78 = memref.load %arg4[%c14_14] : memref<16xf32, #tpu.memory_space<smem>>
    %c15_15 = arith.constant 15 : index
    %79 = memref.load %arg4[%c15_15] : memref<16xf32, #tpu.memory_space<smem>>
    %c0_16 = arith.constant 0 : index
    %c0_17 = arith.constant 0 : index
    %c0_18 = arith.constant 0 : index
    %80 = vector.load %arg2[%c0_16, %c0_17, %c0_18] : memref<1x32x256xf32, #tpu.memory_space<vmem>>, vector<1x8x256xf32>
    %81 = vector.shape_cast %80 : vector<1x8x256xf32> to vector<8x256xf32>
    %c0_19 = arith.constant 0 : index
    %c8_20 = arith.constant 8 : index
    %c0_21 = arith.constant 0 : index
    %82 = vector.load %arg2[%c0_19, %c8_20, %c0_21] : memref<1x32x256xf32, #tpu.memory_space<vmem>>, vector<1x8x256xf32>
    %83 = vector.shape_cast %82 : vector<1x8x256xf32> to vector<8x256xf32>
    %c0_22 = arith.constant 0 : index
    %c16_23 = arith.constant 16 : index
    %c0_24 = arith.constant 0 : index
    %84 = vector.load %arg2[%c0_22, %c16_23, %c0_24] : memref<1x32x256xf32, #tpu.memory_space<vmem>>, vector<1x8x256xf32>
    %85 = vector.shape_cast %84 : vector<1x8x256xf32> to vector<8x256xf32>
    %c0_25 = arith.constant 0 : index
    %c24_26 = arith.constant 24 : index
    %c0_27 = arith.constant 0 : index
    %86 = vector.load %arg2[%c0_25, %c24_26, %c0_27] : memref<1x32x256xf32, #tpu.memory_space<vmem>>, vector<1x8x256xf32>
    %87 = vector.shape_cast %86 : vector<1x8x256xf32> to vector<8x256xf32>
    %88 = vector.broadcast %0 : f32 to vector<8x256xf32>
    %89 = arith.mulf %88, %81 : vector<8x256xf32>
    %90 = vector.broadcast %32 : f32 to vector<8x256xf32>
    %91 = arith.mulf %90, %81 : vector<8x256xf32>
    %92 = vector.broadcast %1 : f32 to vector<8x256xf32>
    %93 = arith.mulf %92, %83 : vector<8x256xf32>
    %94 = arith.addf %89, %93 : vector<8x256xf32>
    %95 = vector.broadcast %33 : f32 to vector<8x256xf32>
    %96 = arith.mulf %95, %83 : vector<8x256xf32>
    %97 = arith.addf %91, %96 : vector<8x256xf32>
    %98 = vector.broadcast %2 : f32 to vector<8x256xf32>
    %99 = arith.mulf %98, %85 : vector<8x256xf32>
    %100 = arith.addf %94, %99 : vector<8x256xf32>
    %101 = vector.broadcast %34 : f32 to vector<8x256xf32>
    %102 = arith.mulf %101, %85 : vector<8x256xf32>
    %103 = arith.addf %97, %102 : vector<8x256xf32>
    %104 = vector.broadcast %3 : f32 to vector<8x256xf32>
    %105 = arith.mulf %104, %87 : vector<8x256xf32>
    %106 = arith.addf %100, %105 : vector<8x256xf32>
    %107 = vector.broadcast %35 : f32 to vector<8x256xf32>
    %108 = arith.mulf %107, %87 : vector<8x256xf32>
    %109 = arith.addf %103, %108 : vector<8x256xf32>
    %110 = vector.broadcast %64 : f32 to vector<8x256xf32>
    %111 = arith.addf %106, %110 : vector<8x256xf32>
    %112 = vector.broadcast %72 : f32 to vector<8x256xf32>
    %113 = arith.addf %109, %112 : vector<8x256xf32>
    %114 = vector.broadcast %4 : f32 to vector<8x256xf32>
    %115 = arith.mulf %114, %81 : vector<8x256xf32>
    %116 = vector.broadcast %36 : f32 to vector<8x256xf32>
    %117 = arith.mulf %116, %81 : vector<8x256xf32>
    %118 = vector.broadcast %5 : f32 to vector<8x256xf32>
    %119 = arith.mulf %118, %83 : vector<8x256xf32>
    %120 = arith.addf %115, %119 : vector<8x256xf32>
    %121 = vector.broadcast %37 : f32 to vector<8x256xf32>
    %122 = arith.mulf %121, %83 : vector<8x256xf32>
    %123 = arith.addf %117, %122 : vector<8x256xf32>
    %124 = vector.broadcast %6 : f32 to vector<8x256xf32>
    %125 = arith.mulf %124, %85 : vector<8x256xf32>
    %126 = arith.addf %120, %125 : vector<8x256xf32>
    %127 = vector.broadcast %38 : f32 to vector<8x256xf32>
    %128 = arith.mulf %127, %85 : vector<8x256xf32>
    %129 = arith.addf %123, %128 : vector<8x256xf32>
    %130 = vector.broadcast %7 : f32 to vector<8x256xf32>
    %131 = arith.mulf %130, %87 : vector<8x256xf32>
    %132 = arith.addf %126, %131 : vector<8x256xf32>
    %133 = vector.broadcast %39 : f32 to vector<8x256xf32>
    %134 = arith.mulf %133, %87 : vector<8x256xf32>
    %135 = arith.addf %129, %134 : vector<8x256xf32>
    %136 = vector.broadcast %65 : f32 to vector<8x256xf32>
    %137 = arith.addf %132, %136 : vector<8x256xf32>
    %138 = vector.broadcast %73 : f32 to vector<8x256xf32>
    %139 = arith.addf %135, %138 : vector<8x256xf32>
    %140 = vector.broadcast %8 : f32 to vector<8x256xf32>
    %141 = arith.mulf %140, %81 : vector<8x256xf32>
    %142 = vector.broadcast %40 : f32 to vector<8x256xf32>
    %143 = arith.mulf %142, %81 : vector<8x256xf32>
    %144 = vector.broadcast %9 : f32 to vector<8x256xf32>
    %145 = arith.mulf %144, %83 : vector<8x256xf32>
    %146 = arith.addf %141, %145 : vector<8x256xf32>
    %147 = vector.broadcast %41 : f32 to vector<8x256xf32>
    %148 = arith.mulf %147, %83 : vector<8x256xf32>
    %149 = arith.addf %143, %148 : vector<8x256xf32>
    %150 = vector.broadcast %10 : f32 to vector<8x256xf32>
    %151 = arith.mulf %150, %85 : vector<8x256xf32>
    %152 = arith.addf %146, %151 : vector<8x256xf32>
    %153 = vector.broadcast %42 : f32 to vector<8x256xf32>
    %154 = arith.mulf %153, %85 : vector<8x256xf32>
    %155 = arith.addf %149, %154 : vector<8x256xf32>
    %156 = vector.broadcast %11 : f32 to vector<8x256xf32>
    %157 = arith.mulf %156, %87 : vector<8x256xf32>
    %158 = arith.addf %152, %157 : vector<8x256xf32>
    %159 = vector.broadcast %43 : f32 to vector<8x256xf32>
    %160 = arith.mulf %159, %87 : vector<8x256xf32>
    %161 = arith.addf %155, %160 : vector<8x256xf32>
    %162 = vector.broadcast %66 : f32 to vector<8x256xf32>
    %163 = arith.addf %158, %162 : vector<8x256xf32>
    %164 = vector.broadcast %74 : f32 to vector<8x256xf32>
    %165 = arith.addf %161, %164 : vector<8x256xf32>
    %166 = vector.broadcast %12 : f32 to vector<8x256xf32>
    %167 = arith.mulf %166, %81 : vector<8x256xf32>
    %168 = vector.broadcast %44 : f32 to vector<8x256xf32>
    %169 = arith.mulf %168, %81 : vector<8x256xf32>
    %170 = vector.broadcast %13 : f32 to vector<8x256xf32>
    %171 = arith.mulf %170, %83 : vector<8x256xf32>
    %172 = arith.addf %167, %171 : vector<8x256xf32>
    %173 = vector.broadcast %45 : f32 to vector<8x256xf32>
    %174 = arith.mulf %173, %83 : vector<8x256xf32>
    %175 = arith.addf %169, %174 : vector<8x256xf32>
    %176 = vector.broadcast %14 : f32 to vector<8x256xf32>
    %177 = arith.mulf %176, %85 : vector<8x256xf32>
    %178 = arith.addf %172, %177 : vector<8x256xf32>
    %179 = vector.broadcast %46 : f32 to vector<8x256xf32>
    %180 = arith.mulf %179, %85 : vector<8x256xf32>
    %181 = arith.addf %175, %180 : vector<8x256xf32>
    %182 = vector.broadcast %15 : f32 to vector<8x256xf32>
    %183 = arith.mulf %182, %87 : vector<8x256xf32>
    %184 = arith.addf %178, %183 : vector<8x256xf32>
    %185 = vector.broadcast %47 : f32 to vector<8x256xf32>
    %186 = arith.mulf %185, %87 : vector<8x256xf32>
    %187 = arith.addf %181, %186 : vector<8x256xf32>
    %188 = vector.broadcast %67 : f32 to vector<8x256xf32>
    %189 = arith.addf %184, %188 : vector<8x256xf32>
    %190 = vector.broadcast %75 : f32 to vector<8x256xf32>
    %191 = arith.addf %187, %190 : vector<8x256xf32>
    %192 = vector.shape_cast %111 : vector<8x256xf32> to vector<8x1x256xf32>
    %193 = vector.shape_cast %81 : vector<8x256xf32> to vector<1x8x256xf32>
    %194 = vector.broadcast %192 : vector<8x1x256xf32> to vector<8x8x256xf32>
    %195 = vector.broadcast %193 : vector<1x8x256xf32> to vector<8x8x256xf32>
    %196 = arith.mulf %194, %195 : vector<8x8x256xf32>
    %197 = vector.shape_cast %137 : vector<8x256xf32> to vector<8x1x256xf32>
    %198 = vector.shape_cast %83 : vector<8x256xf32> to vector<1x8x256xf32>
    %199 = vector.broadcast %197 : vector<8x1x256xf32> to vector<8x8x256xf32>
    %200 = vector.broadcast %198 : vector<1x8x256xf32> to vector<8x8x256xf32>
    %201 = arith.mulf %199, %200 : vector<8x8x256xf32>
    %202 = arith.addf %196, %201 : vector<8x8x256xf32>
    %203 = vector.shape_cast %163 : vector<8x256xf32> to vector<8x1x256xf32>
    %204 = vector.shape_cast %85 : vector<8x256xf32> to vector<1x8x256xf32>
    %205 = vector.broadcast %203 : vector<8x1x256xf32> to vector<8x8x256xf32>
    %206 = vector.broadcast %204 : vector<1x8x256xf32> to vector<8x8x256xf32>
    %207 = arith.mulf %205, %206 : vector<8x8x256xf32>
    %208 = arith.addf %202, %207 : vector<8x8x256xf32>
    %209 = vector.shape_cast %189 : vector<8x256xf32> to vector<8x1x256xf32>
    %210 = vector.shape_cast %87 : vector<8x256xf32> to vector<1x8x256xf32>
    %211 = vector.broadcast %209 : vector<8x1x256xf32> to vector<8x8x256xf32>
    %212 = vector.broadcast %210 : vector<1x8x256xf32> to vector<8x8x256xf32>
    %213 = arith.mulf %211, %212 : vector<8x8x256xf32>
    %214 = arith.addf %208, %213 : vector<8x8x256xf32>
    %cst = arith.constant dense<0xFF800000> : vector<8x256xf32>
    %215 = vector.multi_reduction <maximumf>, %214, %cst [1] : vector<8x8x256xf32> to vector<8x256xf32>
    %216 = vector.shape_cast %215 : vector<8x256xf32> to vector<8x1x256xf32>
    %217 = vector.broadcast %216 : vector<8x1x256xf32> to vector<8x8x256xf32>
    %218 = arith.subf %214, %217 : vector<8x8x256xf32>
    %219 = math.exp %218 : vector<8x8x256xf32>
    %cst_28 = arith.constant dense<0.000000e+00> : vector<8x256xf32>
    %220 = vector.multi_reduction <add>, %219, %cst_28 [1] : vector<8x8x256xf32> to vector<8x256xf32>
    %cst_29 = arith.constant 1.000000e+00 : f32
    %221 = vector.broadcast %cst_29 : f32 to vector<8x256xf32>
    %222 = arith.divf %221, %220 : vector<8x256xf32>
    %223 = vector.shape_cast %113 : vector<8x256xf32> to vector<1x8x256xf32>
    %224 = vector.broadcast %223 : vector<1x8x256xf32> to vector<8x8x256xf32>
    %225 = arith.mulf %219, %224 : vector<8x8x256xf32>
    %cst_30 = arith.constant dense<0.000000e+00> : vector<8x256xf32>
    %226 = vector.multi_reduction <add>, %225, %cst_30 [1] : vector<8x8x256xf32> to vector<8x256xf32>
    %227 = arith.mulf %226, %222 : vector<8x256xf32>
    %228 = vector.shape_cast %139 : vector<8x256xf32> to vector<1x8x256xf32>
    %229 = vector.broadcast %228 : vector<1x8x256xf32> to vector<8x8x256xf32>
    %230 = arith.mulf %219, %229 : vector<8x8x256xf32>
    %cst_31 = arith.constant dense<0.000000e+00> : vector<8x256xf32>
    %231 = vector.multi_reduction <add>, %230, %cst_31 [1] : vector<8x8x256xf32> to vector<8x256xf32>
    %232 = arith.mulf %231, %222 : vector<8x256xf32>
    %233 = vector.shape_cast %165 : vector<8x256xf32> to vector<1x8x256xf32>
    %234 = vector.broadcast %233 : vector<1x8x256xf32> to vector<8x8x256xf32>
    %235 = arith.mulf %219, %234 : vector<8x8x256xf32>
    %cst_32 = arith.constant dense<0.000000e+00> : vector<8x256xf32>
    %236 = vector.multi_reduction <add>, %235, %cst_32 [1] : vector<8x8x256xf32> to vector<8x256xf32>
    %237 = arith.mulf %236, %222 : vector<8x256xf32>
    %238 = vector.shape_cast %191 : vector<8x256xf32> to vector<1x8x256xf32>
    %239 = vector.broadcast %238 : vector<1x8x256xf32> to vector<8x8x256xf32>
    %240 = arith.mulf %219, %239 : vector<8x8x256xf32>
    %cst_33 = arith.constant dense<0.000000e+00> : vector<8x256xf32>
    %241 = vector.multi_reduction <add>, %240, %cst_33 [1] : vector<8x8x256xf32> to vector<8x256xf32>
    %242 = arith.mulf %241, %222 : vector<8x256xf32>
    %243 = vector.broadcast %16 : f32 to vector<8x256xf32>
    %244 = arith.mulf %243, %81 : vector<8x256xf32>
    %245 = vector.broadcast %48 : f32 to vector<8x256xf32>
    %246 = arith.mulf %245, %81 : vector<8x256xf32>
    %247 = vector.broadcast %17 : f32 to vector<8x256xf32>
    %248 = arith.mulf %247, %83 : vector<8x256xf32>
    %249 = arith.addf %244, %248 : vector<8x256xf32>
    %250 = vector.broadcast %49 : f32 to vector<8x256xf32>
    %251 = arith.mulf %250, %83 : vector<8x256xf32>
    %252 = arith.addf %246, %251 : vector<8x256xf32>
    %253 = vector.broadcast %18 : f32 to vector<8x256xf32>
    %254 = arith.mulf %253, %85 : vector<8x256xf32>
    %255 = arith.addf %249, %254 : vector<8x256xf32>
    %256 = vector.broadcast %50 : f32 to vector<8x256xf32>
    %257 = arith.mulf %256, %85 : vector<8x256xf32>
    %258 = arith.addf %252, %257 : vector<8x256xf32>
    %259 = vector.broadcast %19 : f32 to vector<8x256xf32>
    %260 = arith.mulf %259, %87 : vector<8x256xf32>
    %261 = arith.addf %255, %260 : vector<8x256xf32>
    %262 = vector.broadcast %51 : f32 to vector<8x256xf32>
    %263 = arith.mulf %262, %87 : vector<8x256xf32>
    %264 = arith.addf %258, %263 : vector<8x256xf32>
    %265 = vector.broadcast %68 : f32 to vector<8x256xf32>
    %266 = arith.addf %261, %265 : vector<8x256xf32>
    %267 = vector.broadcast %76 : f32 to vector<8x256xf32>
    %268 = arith.addf %264, %267 : vector<8x256xf32>
    %269 = vector.broadcast %20 : f32 to vector<8x256xf32>
    %270 = arith.mulf %269, %81 : vector<8x256xf32>
    %271 = vector.broadcast %52 : f32 to vector<8x256xf32>
    %272 = arith.mulf %271, %81 : vector<8x256xf32>
    %273 = vector.broadcast %21 : f32 to vector<8x256xf32>
    %274 = arith.mulf %273, %83 : vector<8x256xf32>
    %275 = arith.addf %270, %274 : vector<8x256xf32>
    %276 = vector.broadcast %53 : f32 to vector<8x256xf32>
    %277 = arith.mulf %276, %83 : vector<8x256xf32>
    %278 = arith.addf %272, %277 : vector<8x256xf32>
    %279 = vector.broadcast %22 : f32 to vector<8x256xf32>
    %280 = arith.mulf %279, %85 : vector<8x256xf32>
    %281 = arith.addf %275, %280 : vector<8x256xf32>
    %282 = vector.broadcast %54 : f32 to vector<8x256xf32>
    %283 = arith.mulf %282, %85 : vector<8x256xf32>
    %284 = arith.addf %278, %283 : vector<8x256xf32>
    %285 = vector.broadcast %23 : f32 to vector<8x256xf32>
    %286 = arith.mulf %285, %87 : vector<8x256xf32>
    %287 = arith.addf %281, %286 : vector<8x256xf32>
    %288 = vector.broadcast %55 : f32 to vector<8x256xf32>
    %289 = arith.mulf %288, %87 : vector<8x256xf32>
    %290 = arith.addf %284, %289 : vector<8x256xf32>
    %291 = vector.broadcast %69 : f32 to vector<8x256xf32>
    %292 = arith.addf %287, %291 : vector<8x256xf32>
    %293 = vector.broadcast %77 : f32 to vector<8x256xf32>
    %294 = arith.addf %290, %293 : vector<8x256xf32>
    %295 = vector.broadcast %24 : f32 to vector<8x256xf32>
    %296 = arith.mulf %295, %81 : vector<8x256xf32>
    %297 = vector.broadcast %56 : f32 to vector<8x256xf32>
    %298 = arith.mulf %297, %81 : vector<8x256xf32>
    %299 = vector.broadcast %25 : f32 to vector<8x256xf32>
    %300 = arith.mulf %299, %83 : vector<8x256xf32>
    %301 = arith.addf %296, %300 : vector<8x256xf32>
    %302 = vector.broadcast %57 : f32 to vector<8x256xf32>
    %303 = arith.mulf %302, %83 : vector<8x256xf32>
    %304 = arith.addf %298, %303 : vector<8x256xf32>
    %305 = vector.broadcast %26 : f32 to vector<8x256xf32>
    %306 = arith.mulf %305, %85 : vector<8x256xf32>
    %307 = arith.addf %301, %306 : vector<8x256xf32>
    %308 = vector.broadcast %58 : f32 to vector<8x256xf32>
    %309 = arith.mulf %308, %85 : vector<8x256xf32>
    %310 = arith.addf %304, %309 : vector<8x256xf32>
    %311 = vector.broadcast %27 : f32 to vector<8x256xf32>
    %312 = arith.mulf %311, %87 : vector<8x256xf32>
    %313 = arith.addf %307, %312 : vector<8x256xf32>
    %314 = vector.broadcast %59 : f32 to vector<8x256xf32>
    %315 = arith.mulf %314, %87 : vector<8x256xf32>
    %316 = arith.addf %310, %315 : vector<8x256xf32>
    %317 = vector.broadcast %70 : f32 to vector<8x256xf32>
    %318 = arith.addf %313, %317 : vector<8x256xf32>
    %319 = vector.broadcast %78 : f32 to vector<8x256xf32>
    %320 = arith.addf %316, %319 : vector<8x256xf32>
    %321 = vector.broadcast %28 : f32 to vector<8x256xf32>
    %322 = arith.mulf %321, %81 : vector<8x256xf32>
    %323 = vector.broadcast %60 : f32 to vector<8x256xf32>
    %324 = arith.mulf %323, %81 : vector<8x256xf32>
    %325 = vector.broadcast %29 : f32 to vector<8x256xf32>
    %326 = arith.mulf %325, %83 : vector<8x256xf32>
    %327 = arith.addf %322, %326 : vector<8x256xf32>
    %328 = vector.broadcast %61 : f32 to vector<8x256xf32>
    %329 = arith.mulf %328, %83 : vector<8x256xf32>
    %330 = arith.addf %324, %329 : vector<8x256xf32>
    %331 = vector.broadcast %30 : f32 to vector<8x256xf32>
    %332 = arith.mulf %331, %85 : vector<8x256xf32>
    %333 = arith.addf %327, %332 : vector<8x256xf32>
    %334 = vector.broadcast %62 : f32 to vector<8x256xf32>
    %335 = arith.mulf %334, %85 : vector<8x256xf32>
    %336 = arith.addf %330, %335 : vector<8x256xf32>
    %337 = vector.broadcast %31 : f32 to vector<8x256xf32>
    %338 = arith.mulf %337, %87 : vector<8x256xf32>
    %339 = arith.addf %333, %338 : vector<8x256xf32>
    %340 = vector.broadcast %63 : f32 to vector<8x256xf32>
    %341 = arith.mulf %340, %87 : vector<8x256xf32>
    %342 = arith.addf %336, %341 : vector<8x256xf32>
    %343 = vector.broadcast %71 : f32 to vector<8x256xf32>
    %344 = arith.addf %339, %343 : vector<8x256xf32>
    %345 = vector.broadcast %79 : f32 to vector<8x256xf32>
    %346 = arith.addf %342, %345 : vector<8x256xf32>
    %347 = vector.shape_cast %266 : vector<8x256xf32> to vector<8x1x256xf32>
    %348 = vector.shape_cast %81 : vector<8x256xf32> to vector<1x8x256xf32>
    %349 = vector.broadcast %347 : vector<8x1x256xf32> to vector<8x8x256xf32>
    %350 = vector.broadcast %348 : vector<1x8x256xf32> to vector<8x8x256xf32>
    %351 = arith.mulf %349, %350 : vector<8x8x256xf32>
    %352 = vector.shape_cast %292 : vector<8x256xf32> to vector<8x1x256xf32>
    %353 = vector.shape_cast %83 : vector<8x256xf32> to vector<1x8x256xf32>
    %354 = vector.broadcast %352 : vector<8x1x256xf32> to vector<8x8x256xf32>
    %355 = vector.broadcast %353 : vector<1x8x256xf32> to vector<8x8x256xf32>
    %356 = arith.mulf %354, %355 : vector<8x8x256xf32>
    %357 = arith.addf %351, %356 : vector<8x8x256xf32>
    %358 = vector.shape_cast %318 : vector<8x256xf32> to vector<8x1x256xf32>
    %359 = vector.shape_cast %85 : vector<8x256xf32> to vector<1x8x256xf32>
    %360 = vector.broadcast %358 : vector<8x1x256xf32> to vector<8x8x256xf32>
    %361 = vector.broadcast %359 : vector<1x8x256xf32> to vector<8x8x256xf32>
    %362 = arith.mulf %360, %361 : vector<8x8x256xf32>
    %363 = arith.addf %357, %362 : vector<8x8x256xf32>
    %364 = vector.shape_cast %344 : vector<8x256xf32> to vector<8x1x256xf32>
    %365 = vector.shape_cast %87 : vector<8x256xf32> to vector<1x8x256xf32>
    %366 = vector.broadcast %364 : vector<8x1x256xf32> to vector<8x8x256xf32>
    %367 = vector.broadcast %365 : vector<1x8x256xf32> to vector<8x8x256xf32>
    %368 = arith.mulf %366, %367 : vector<8x8x256xf32>
    %369 = arith.addf %363, %368 : vector<8x8x256xf32>
    %cst_34 = arith.constant dense<0xFF800000> : vector<8x256xf32>
    %370 = vector.multi_reduction <maximumf>, %369, %cst_34 [1] : vector<8x8x256xf32> to vector<8x256xf32>
    %371 = vector.shape_cast %370 : vector<8x256xf32> to vector<8x1x256xf32>
    %372 = vector.broadcast %371 : vector<8x1x256xf32> to vector<8x8x256xf32>
    %373 = arith.subf %369, %372 : vector<8x8x256xf32>
    %374 = math.exp %373 : vector<8x8x256xf32>
    %cst_35 = arith.constant dense<0.000000e+00> : vector<8x256xf32>
    %375 = vector.multi_reduction <add>, %374, %cst_35 [1] : vector<8x8x256xf32> to vector<8x256xf32>
    %cst_36 = arith.constant 1.000000e+00 : f32
    %376 = vector.broadcast %cst_36 : f32 to vector<8x256xf32>
    %377 = arith.divf %376, %375 : vector<8x256xf32>
    %378 = vector.shape_cast %268 : vector<8x256xf32> to vector<1x8x256xf32>
    %379 = vector.broadcast %378 : vector<1x8x256xf32> to vector<8x8x256xf32>
    %380 = arith.mulf %374, %379 : vector<8x8x256xf32>
    %cst_37 = arith.constant dense<0.000000e+00> : vector<8x256xf32>
    %381 = vector.multi_reduction <add>, %380, %cst_37 [1] : vector<8x8x256xf32> to vector<8x256xf32>
    %382 = arith.mulf %381, %377 : vector<8x256xf32>
    %383 = arith.addf %227, %382 : vector<8x256xf32>
    %384 = vector.shape_cast %294 : vector<8x256xf32> to vector<1x8x256xf32>
    %385 = vector.broadcast %384 : vector<1x8x256xf32> to vector<8x8x256xf32>
    %386 = arith.mulf %374, %385 : vector<8x8x256xf32>
    %cst_38 = arith.constant dense<0.000000e+00> : vector<8x256xf32>
    %387 = vector.multi_reduction <add>, %386, %cst_38 [1] : vector<8x8x256xf32> to vector<8x256xf32>
    %388 = arith.mulf %387, %377 : vector<8x256xf32>
    %389 = arith.addf %232, %388 : vector<8x256xf32>
    %390 = vector.shape_cast %320 : vector<8x256xf32> to vector<1x8x256xf32>
    %391 = vector.broadcast %390 : vector<1x8x256xf32> to vector<8x8x256xf32>
    %392 = arith.mulf %374, %391 : vector<8x8x256xf32>
    %cst_39 = arith.constant dense<0.000000e+00> : vector<8x256xf32>
    %393 = vector.multi_reduction <add>, %392, %cst_39 [1] : vector<8x8x256xf32> to vector<8x256xf32>
    %394 = arith.mulf %393, %377 : vector<8x256xf32>
    %395 = arith.addf %237, %394 : vector<8x256xf32>
    %396 = vector.shape_cast %346 : vector<8x256xf32> to vector<1x8x256xf32>
    %397 = vector.broadcast %396 : vector<1x8x256xf32> to vector<8x8x256xf32>
    %398 = arith.mulf %374, %397 : vector<8x8x256xf32>
    %cst_40 = arith.constant dense<0.000000e+00> : vector<8x256xf32>
    %399 = vector.multi_reduction <add>, %398, %cst_40 [1] : vector<8x8x256xf32> to vector<8x256xf32>
    %400 = arith.mulf %399, %377 : vector<8x256xf32>
    %401 = arith.addf %242, %400 : vector<8x256xf32>
    %402 = arith.addf %383, %81 : vector<8x256xf32>
    %c0_41 = arith.constant 0 : index
    %c0_42 = arith.constant 0 : index
    %c0_43 = arith.constant 0 : index
    %403 = vector.load %arg5[%c0_41, %c0_42, %c0_43] : memref<1x32x256xf32, #tpu.memory_space<vmem>>, vector<1x8x256xf32>
    %404 = vector.shape_cast %403 : vector<1x8x256xf32> to vector<8x256xf32>
    %405 = vector.shape_cast %402 : vector<8x256xf32> to vector<1x8x256xf32>
    tpu.vector_store %arg5[%c0_41, %c0_42, %c0_43], %405 {strides = array<i32>} : memref<1x32x256xf32, #tpu.memory_space<vmem>>, vector<1x8x256xf32>,
    %406 = arith.addf %389, %83 : vector<8x256xf32>
    %c0_44 = arith.constant 0 : index
    %c8_45 = arith.constant 8 : index
    %c0_46 = arith.constant 0 : index
    %407 = vector.load %arg5[%c0_44, %c8_45, %c0_46] : memref<1x32x256xf32, #tpu.memory_space<vmem>>, vector<1x8x256xf32>
    %408 = vector.shape_cast %407 : vector<1x8x256xf32> to vector<8x256xf32>
    %409 = vector.shape_cast %406 : vector<8x256xf32> to vector<1x8x256xf32>
    tpu.vector_store %arg5[%c0_44, %c8_45, %c0_46], %409 {strides = array<i32>} : memref<1x32x256xf32, #tpu.memory_space<vmem>>, vector<1x8x256xf32>,
    %410 = arith.addf %395, %85 : vector<8x256xf32>
    %c0_47 = arith.constant 0 : index
    %c16_48 = arith.constant 16 : index
    %c0_49 = arith.constant 0 : index
    %411 = vector.load %arg5[%c0_47, %c16_48, %c0_49] : memref<1x32x256xf32, #tpu.memory_space<vmem>>, vector<1x8x256xf32>
    %412 = vector.shape_cast %411 : vector<1x8x256xf32> to vector<8x256xf32>
    %413 = vector.shape_cast %410 : vector<8x256xf32> to vector<1x8x256xf32>
    tpu.vector_store %arg5[%c0_47, %c16_48, %c0_49], %413 {strides = array<i32>} : memref<1x32x256xf32, #tpu.memory_space<vmem>>, vector<1x8x256xf32>,
    %414 = arith.addf %401, %87 : vector<8x256xf32>
    %c0_50 = arith.constant 0 : index
    %c24_51 = arith.constant 24 : index
    %c0_52 = arith.constant 0 : index
    %415 = vector.load %arg5[%c0_50, %c24_51, %c0_52] : memref<1x32x256xf32, #tpu.memory_space<vmem>>, vector<1x8x256xf32>
    %416 = vector.shape_cast %415 : vector<1x8x256xf32> to vector<8x256xf32>
    %417 = vector.shape_cast %414 : vector<8x256xf32> to vector<1x8x256xf32>
    tpu.vector_store %arg5[%c0_50, %c24_51, %c0_52], %417 {strides = array<i32>} : memref<1x32x256xf32, #tpu.memory_space<vmem>>, vector<1x8x256xf32>,
    return
  }
  func.func @transform_0(%arg0: i32, %arg1: i32) -> (i32, i32, i32) {
    %c0_i32 = arith.constant 0 : i32
    %c0_i32_0 = arith.constant 0 : i32
    return %arg0, %c0_i32, %arg1 : i32, i32, i32
  }
  func.func @transform_1(%arg0: i32, %arg1: i32) -> i32 {
    %c0_i32 = arith.constant 0 : i32
    %c0_i32_0 = arith.constant 0 : i32
    return %c0_i32 : i32
  }
  func.func @transform_2(%arg0: i32, %arg1: i32) -> i32 {
    %c0_i32 = arith.constant 0 : i32
    %c0_i32_0 = arith.constant 0 : i32
    return %c0_i32 : i32
  }
  func.func @transform_3(%arg0: i32, %arg1: i32) -> (i32, i32, i32) {
    %c0_i32 = arith.constant 0 : i32
    %c0_i32_0 = arith.constant 0 : i32
    return %arg0, %c0_i32, %arg1 : i32, i32, i32
  }
}

</mosaic_0001>

<llo_original>
// kernel: tpu_custom_call.1
$region0: #{tpu_custom_call.1}
  #allocation0 [shape = 'u32[]', space=smem, size = 0x4, offset = 0x4, fixed_abs, tag = 'smem constant byte address 0x4 - core index']
  #allocation1 [shape = 'u32[144,128]{1,0:T(1,128)}', space=vmem, size = 0x12000, scoped, tag = 'internal scratch']
  %s0 = inlined_call_operand.hbm [shape: f32[2,32,256], index: 0, kind: input, shape index: {}]
  %s1 = inlined_call_operand.vmem [shape: f32[64], index: 1, kind: input, shape index: {}]
  %s2 = inlined_call_operand.vmem [shape: f32[16], index: 2, kind: input, shape index: {}]
  %s3 = inlined_call_operand.hbm [shape: f32[2,32,256], index: 3, kind: output, shape index: {}]
  %s4 = sld [smem:[#allocation0]]
  $region57: #{tpu_custom_call.1} parent=0
    _
  %s6 = ssub.s32 1, %s4
  %s7 = scalar_select 0, %s6, %s4
  $region1: #{tpu_custom_call.1} parent=0
    #allocation2 [shape = 'u8[65536]{0}', space=vmem, size = 0x10000, scoped, tag = 'input window, operand 0']
    #allocation3 [shape = 's32[2]{0}', space=sflag, size = 0x8, scoped, tag = 'scoped memory for tpu_custom_call.1']
    #allocation4 [shape = 's32[2]{0}', space=sflag, size = 0x8, scoped, tag = 'scoped memory for tpu_custom_call.1']
    #allocation5 [shape = 's32[2]{0}', space=sflag, size = 0x8, scoped, tag = 'scoped memory for tpu_custom_call.1']
    #allocation6 [shape = 'u8[512]{0}', space=smem, size = 0x200, scoped, tag = 'input window, operand 1, single buffered']
    #allocation7 [shape = 'u8[512]{0}', space=smem, size = 0x200, scoped, tag = 'input window, operand 2, single buffered']
    #allocation8 [shape = 's32[1]{0}', space=sflag, size = 0x4, scoped, tag = 'scoped memory for tpu_custom_call.1']
    #allocation9 [shape = 'u8[65536]{0}', space=vmem, size = 0x10000, scoped, tag = 'output window, operand 0']
    %8 = vsyncpa [#allocation3], 0
    %s9 = scalar_lea.sflag [#allocation3], 1
    %10 = vsyncpa %s9, 0
    %11 = vsyncpa [#allocation5], 0
    %12 = vsyncpa [#allocation8], 0
    %13 = vsyncpa [#allocation4], 0
    %s14 = scalar_lea.sflag [#allocation4], 1
    %15 = vsyncpa %s14, 0
    loop: start=0, step=1, limit=4
    $region2: #{tpu_custom_call.1} parent=1 // loop_pre_header
      _
    $region3: #{tpu_custom_call.1} parent=1 // loop_header
      %s17 = sphi 0, %s21
      %p18 = scmp.ge.s32.totalorder %s17, 4
      %s24 = sphi 0, %s36
      %s25 = sphi 0, %s32
      %s26 = sphi 0, %s24
      %s27 = sphi 0, %s25
      %s28 = sphi 0, %s26
      %s29 = sphi 0, %s27
      %s41 = sphi 0, %s43
      %s44 = sphi 0, %s41
      %s45 = sphi 0, %s44
      %s61 = sphi 0, %s45
      %s65 = sphi 0, %s65
      %s67 = sphi 0, %s65
      %s68 = sphi 0, %s67
      %s82 = sphi 0, %s68
      %s86 = sphi 0, %s86
      %s88 = sphi 0, %s86
      %s89 = sphi 0, %s88
      %s103 = sphi 0, %s89
      %s111 = sphi 0, %s113
      %s114 = sphi 0, %s111
      %s115 = sphi 0, %s114
      %s131 = sphi 0, %s115
    $region4: #{tpu_custom_call.1} parent=1 // loop_header_branch
      %20 = sbr.rel (%p18) target = $region8
    $region5: #{tpu_custom_call.1} parent=1 // loop_body
      %s22 = ssub.s32 %s17, 1
      %s23 = ssub.s32 %s17, 2
      %s30 = sadd.s32 1, %s25
      %p31 = scmp.ge.s32.totalorder %s30, 1
      %s32 = scalar_select %p31, 0, %s30
      %s33 = sadd.s32 1, %s24
      %s34 = scalar_select %p31, %s33, %s24
      %p35 = scmp.ge.s32.totalorder %s34, 2
      %s36 = scalar_select %p35, 0, %s34
      %s37 = ssub.s32 %s24, %s36
      %s38 = ssub.s32 %s25, %s32
      %s39 = sor.u32 %s37, %s38
      %p40 = scmp.eq.s32.totalorder %s39, 0
      %s42 = sadd.s32 %s41, 1
      %s43 = scalar_select %p40, %s41, %s42
      %p46 = pneg %p40
      %p47 = scmp.eq.s32.totalorder %s17, 1
      %p48 = por %p46, %p47
      %p49 = scmp.ne.s32.totalorder %s41, %s44
      %p50 = scmp.eq.s32.totalorder %s17, 0
      %p51 = por %p49, %p50
      %p52 = scmp.ne.s32.totalorder %s41, %s44
      %p53 = scmp.eq.s32.totalorder %s22, 1
      %p54 = por %p52, %p53
      %p55 = scmp.ne.s32.totalorder %s44, %s45
      %p56 = scmp.eq.s32.totalorder %s22, 0
      %p57 = por %p55, %p56
      %p58 = scmp.ne.s32.totalorder %s44, %s45
      %p59 = scmp.eq.s32.totalorder %s23, 1
      %p60 = por %p58, %p59
      %p62 = scmp.ne.s32.totalorder %s45, %s61
      %p63 = scmp.eq.s32.totalorder %s23, 0
      %p64 = por %p62, %p63
      %s66 = sadd.s32 %s65, 1
      %p69 = scmp.eq.s32.totalorder %s17, 1
      %p70 = scmp.ne.s32.totalorder %s65, %s67
      %p71 = scmp.eq.s32.totalorder %s17, 0
      %p72 = por %p70, %p71
      %p73 = scmp.ne.s32.totalorder %s65, %s67
      %p74 = scmp.eq.s32.totalorder %s22, 1
      %p75 = por %p73, %p74
      %p76 = scmp.ne.s32.totalorder %s67, %s68
      %p77 = scmp.eq.s32.totalorder %s22, 0
      %p78 = por %p76, %p77
      %p79 = scmp.ne.s32.totalorder %s67, %s68
      %p80 = scmp.eq.s32.totalorder %s23, 1
      %p81 = por %p79, %p80
      %p83 = scmp.ne.s32.totalorder %s68, %s82
      %p84 = scmp.eq.s32.totalorder %s23, 0
      %p85 = por %p83, %p84
      %s87 = sadd.s32 %s86, 1
      %p90 = scmp.eq.s32.totalorder %s17, 1
      %p91 = scmp.ne.s32.totalorder %s86, %s88
      %p92 = scmp.eq.s32.totalorder %s17, 0
      %p93 = por %p91, %p92
      %p94 = scmp.ne.s32.totalorder %s86, %s88
      %p95 = scmp.eq.s32.totalorder %s22, 1
      %p96 = por %p94, %p95
      %p97 = scmp.ne.s32.totalorder %s88, %s89
      %p98 = scmp.eq.s32.totalorder %s22, 0
      %p99 = por %p97, %p98
      %p100 = scmp.ne.s32.totalorder %s88, %s89
      %p101 = scmp.eq.s32.totalorder %s23, 1
      %p102 = por %p100, %p101
      %p104 = scmp.ne.s32.totalorder %s89, %s103
      %p105 = scmp.eq.s32.totalorder %s23, 0
      %p106 = por %p104, %p105
      %s107 = ssub.s32 %s24, %s36
      %s108 = ssub.s32 %s25, %s32
      %s109 = sor.u32 %s107, %s108
      %p110 = scmp.eq.s32.totalorder %s109, 0
      %s112 = sadd.s32 %s111, 1
      %s113 = scalar_select %p110, %s111, %s112
      %p116 = pneg %p110
      %p117 = scmp.eq.s32.totalorder %s17, 1
      %p118 = por %p116, %p117
      %p119 = scmp.ne.s32.totalorder %s111, %s114
      %p120 = scmp.eq.s32.totalorder %s17, 0
      %p121 = por %p119, %p120
      %p122 = scmp.ne.s32.totalorder %s111, %s114
      %p123 = scmp.eq.s32.totalorder %s22, 1
      %p124 = por %p122, %p123
      %p125 = scmp.ne.s32.totalorder %s114, %s115
      %p126 = scmp.eq.s32.totalorder %s22, 0
      %p127 = por %p125, %p126
      %p128 = scmp.ne.s32.totalorder %s114, %s115
      %p129 = scmp.eq.s32.totalorder %s23, 1
      %p130 = por %p128, %p129
      %p132 = scmp.ne.s32.totalorder %s115, %s131
      %p133 = scmp.eq.s32.totalorder %s23, 0
      %p134 = por %p132, %p133
      %p135 = scmp.le.s32.totalorder 1, %s17
      %p136 = scmp.lt.s32.totalorder %s17, 3
      %p137 = pnand %p135, %p136
      %p138 = pneg %p137
      // Predicated region
      $region9: #{tpu_custom_call.1} parent=5 // pred_check
        _
      $region10: #{tpu_custom_call.1} parent=5 // pred_check_branch
        %140 = sbr.rel (%p137) target = $region12
      $region11: #{tpu_custom_call.1} parent=5 // pred_region
        %s141 = ssub.s32 %s17, 1
        // Predicated region
        $region13: #{tpu_custom_call.1} parent=11 // pred_check
          %p142 = pneg %p78
        $region14: #{tpu_custom_call.1} parent=11 // pred_check_branch
          %144 = sbr.rel (%p142) target = $region16
        $region15: #{tpu_custom_call.1} parent=11 // pred_region
          %s146 = ssub.s32 16, 16
          %147 = vsyncadd [#allocation5], %s146
          %s149 = sshll.u32 %s1, 4
          %s150 = int_to_ptr.vmem [resolvable:$true] %s149
          %152 = dma.vmem_to_smem %s150, 16, [#allocation6], [#allocation5]
        $region16: #{tpu_custom_call.1} parent=11 // pred_fallthru
          _
        // Predicated region
        $region17: #{tpu_custom_call.1} parent=11 // pred_check
          %p153 = pneg %p99
        $region18: #{tpu_custom_call.1} parent=11 // pred_check_branch
          %155 = sbr.rel (%p153) target = $region20
        $region19: #{tpu_custom_call.1} parent=11 // pred_region
          %s157 = ssub.s32 16, 16
          %158 = vsyncadd [#allocation8], %s157
          %s160 = sshll.u32 %s2, 4
          %s161 = int_to_ptr.vmem [resolvable:$true] %s160
          %163 = dma.vmem_to_smem %s161, 16, [#allocation7], [#allocation8]
        $region20: #{tpu_custom_call.1} parent=11 // pred_fallthru
          _
      $region12: #{tpu_custom_call.1} parent=5 // pred_fallthru
        _
      %p164 = scmp.lt.s32.totalorder %s17, 2
      // Predicated region
      $region21: #{tpu_custom_call.1} parent=5 // pred_check
        %p165 = pneg %p164
      $region22: #{tpu_custom_call.1} parent=5 // pred_check_branch
        %167 = sbr.rel (%p165) target = $region24
      $region23: #{tpu_custom_call.1} parent=5 // pred_region
        // Predicated region
        $region25: #{tpu_custom_call.1} parent=23 // pred_check
          %p168 = pneg %p51
        $region26: #{tpu_custom_call.1} parent=23 // pred_check_branch
          %170 = sbr.rel (%p168) target = $region28
        $region27: #{tpu_custom_call.1} parent=23 // pred_region
          %s171 = sand.u32 %s41, 1
          %s172 = scalar_lea.sflag [#allocation3], %s171
          %s173 = sand.u32 %s41, 1
          %s174 = smul.addr %s173, 64
          %s175 = scalar_lea.vmem [#allocation2], %s174
          %s176 = smul.u32 2, %s25
          %s178 = ssub.s32 1024, 1024
          %179 = vsyncadd %s172, %s178
          %s180 = smul.addr %s24, 8
          %s181 = sadd.s32 %s176, %s180
          %s182 = smul.addr %s181, 128
          %s183 = scalar_lea.hbm %s0, %s182
          %s184 = sshll.u32 %s175, 4
          %s185 = int_to_ptr.vmem [resolvable:$true] %s184
          %190 = dma.hbm_to_vmem [thread:$0]  %s183, 1024, %s185, %s172, 256, 256, 16
        $region28: #{tpu_custom_call.1} parent=23 // pred_fallthru
          _
      $region24: #{tpu_custom_call.1} parent=5 // pred_fallthru
        _
      %p191 = scmp.le.s32.totalorder 1, %s17
      %p192 = scmp.lt.s32.totalorder %s17, 3
      %p193 = pnand %p191, %p192
      %p194 = pneg %p193
      // Predicated region
      $region29: #{tpu_custom_call.1} parent=5 // pred_check
        _
      $region30: #{tpu_custom_call.1} parent=5 // pred_check_branch
        %196 = sbr.rel (%p193) target = $region32
      $region31: #{tpu_custom_call.1} parent=5 // pred_region
        %s197 = ssub.s32 %s17, 1
        %s198 = sand.u32 %s44, 1
        %s199 = scalar_lea.sflag [#allocation3], %s198
        %s200 = sand.u32 %s44, 1
        %s201 = smul.addr %s200, 64
        %s202 = scalar_lea.vmem [#allocation2], %s201
        // Predicated region
        $region33: #{tpu_custom_call.1} parent=31 // pred_check
          %p203 = pneg %p57
        $region34: #{tpu_custom_call.1} parent=31 // pred_check_branch
          %205 = sbr.rel (%p203) target = $region36
        $region35: #{tpu_custom_call.1} parent=31 // pred_region
          %206 = dma.done %s199, 1024
        $region36: #{tpu_custom_call.1} parent=31 // pred_fallthru
          _
        // Predicated region
        $region37: #{tpu_custom_call.1} parent=31 // pred_check
          %p207 = pneg %p78
        $region38: #{tpu_custom_call.1} parent=31 // pred_check_branch
          %209 = sbr.rel (%p207) target = $region40
        $region39: #{tpu_custom_call.1} parent=31 // pred_region
          %210 = dma.done [#allocation5], 16
        $region40: #{tpu_custom_call.1} parent=31 // pred_fallthru
          _
        // Predicated region
        $region41: #{tpu_custom_call.1} parent=31 // pred_check
          %p211 = pneg %p99
        $region42: #{tpu_custom_call.1} parent=31 // pred_check_branch
          %213 = sbr.rel (%p211) target = $region44
        $region43: #{tpu_custom_call.1} parent=31 // pred_region
          %214 = dma.done [#allocation8], 16
        $region44: #{tpu_custom_call.1} parent=31 // pred_fallthru
          _
        %215 = sfence
        %s216 = sand.u32 %s44, 1
        %s217 = scalar_lea.sflag [#allocation3], %s216
        %s218 = sand.u32 %s44, 1
        %s219 = smul.addr %s218, 64
        %s220 = scalar_lea.vmem [#allocation2], %s219
        %p221 = pneg %p57
        %p222 = pneg %p54
        %p223 = pneg %p78
        %p224 = pneg %p75
        %p225 = pneg %p99
        %p226 = pneg %p96
        %p227 = pneg %p127
        %p228 = pneg %p124
        %s229 = sand.u32 %s114, 1
        %s230 = scalar_lea.sflag [#allocation4], %s229
        %s231 = sand.u32 %s114, 1
        %s232 = smul.addr %s231, 64
        %s233 = scalar_lea.vmem [#allocation9], %s232
        %s234 = smul.u32 2, %s27
        %s235 = smul.u32 2, %s27
        %s236 = sld [smem:[#allocation6]]
        %s237 = sld [smem:[#allocation6 + $0x1]]
        %s238 = sld [smem:[#allocation6 + $0x2]]
        %s239 = sld [smem:[#allocation6 + $0x3]]
        %s240 = sld [smem:[#allocation6 + $0x4]]
        %s241 = sld [smem:[#allocation6 + $0x5]]
        %s242 = sld [smem:[#allocation6 + $0x6]]
        %s243 = sld [smem:[#allocation6 + $0x7]]
        %s244 = sld [smem:[#allocation6 + $0x8]]
        %s245 = sld [smem:[#allocation6 + $0x9]]
        %s246 = sld [smem:[#allocation6 + $0xa]]
        %s247 = sld [smem:[#allocation6 + $0xb]]
        %s248 = sld [smem:[#allocation6 + $0xc]]
        %s249 = sld [smem:[#allocation6 + $0xd]]
        %s250 = sld [smem:[#allocation6 + $0xe]]
        %s251 = sld [smem:[#allocation6 + $0xf]]
        %s252 = sld [smem:[#allocation6 + $0x20]]
        %s253 = sld [smem:[#allocation6 + $0x21]]
        %s254 = sld [smem:[#allocation6 + $0x22]]
        %s255 = sld [smem:[#allocation6 + $0x23]]
        %s256 = sld [smem:[#allocation6 + $0x24]]
        %s257 = sld [smem:[#allocation6 + $0x25]]
        %s258 = sld [smem:[#allocation6 + $0x26]]
        %s259 = sld [smem:[#allocation6 + $0x27]]
        %s260 = sld [smem:[#allocation6 + $0x28]]
        %s261 = sld [smem:[#allocation6 + $0x29]]
        %s262 = sld [smem:[#allocation6 + $0x2a]]
        %s263 = sld [smem:[#allocation6 + $0x2b]]
        %s264 = sld [smem:[#allocation6 + $0x2c]]
        %s265 = sld [smem:[#allocation6 + $0x2d]]
        %s266 = sld [smem:[#allocation6 + $0x2e]]
        %s267 = sld [smem:[#allocation6 + $0x2f]]
        %s268 = sld [smem:[#allocation6 + $0x10]]
        %s269 = sld [smem:[#allocation6 + $0x11]]
        %s270 = sld [smem:[#allocation6 + $0x12]]
        %s271 = sld [smem:[#allocation6 + $0x13]]
        %s272 = sld [smem:[#allocation6 + $0x14]]
        %s273 = sld [smem:[#allocation6 + $0x15]]
        %s274 = sld [smem:[#allocation6 + $0x16]]
        %s275 = sld [smem:[#allocation6 + $0x17]]
        %s276 = sld [smem:[#allocation6 + $0x18]]
        %s277 = sld [smem:[#allocation6 + $0x19]]
        %s278 = sld [smem:[#allocation6 + $0x1a]]
        %s279 = sld [smem:[#allocation6 + $0x1b]]
        %s280 = sld [smem:[#allocation6 + $0x1c]]
        %s281 = sld [smem:[#allocation6 + $0x1d]]
        %s282 = sld [smem:[#allocation6 + $0x1e]]
        %s283 = sld [smem:[#allocation6 + $0x1f]]
        %s284 = sld [smem:[#allocation6 + $0x30]]
        %s285 = sld [smem:[#allocation6 + $0x31]]
        %s286 = sld [smem:[#allocation6 + $0x32]]
        %s287 = sld [smem:[#allocation6 + $0x33]]
        %s288 = sld [smem:[#allocation6 + $0x34]]
        %s289 = sld [smem:[#allocation6 + $0x35]]
        %s290 = sld [smem:[#allocation6 + $0x36]]
        %s291 = sld [smem:[#allocation6 + $0x37]]
        %s292 = sld [smem:[#allocation6 + $0x38]]
        %s293 = sld [smem:[#allocation6 + $0x39]]
        %s294 = sld [smem:[#allocation6 + $0x3a]]
        %s295 = sld [smem:[#allocation6 + $0x3b]]
        %s296 = sld [smem:[#allocation6 + $0x3c]]
        %s297 = sld [smem:[#allocation6 + $0x3d]]
        %s298 = sld [smem:[#allocation6 + $0x3e]]
        %s299 = sld [smem:[#allocation6 + $0x3f]]
        %s300 = sld [smem:[#allocation7]]
        %s301 = sld [smem:[#allocation7 + $0x1]]
        %s302 = sld [smem:[#allocation7 + $0x2]]
        %s303 = sld [smem:[#allocation7 + $0x3]]
        %s304 = sld [smem:[#allocation7 + $0x8]]
        %s305 = sld [smem:[#allocation7 + $0x9]]
        %s306 = sld [smem:[#allocation7 + $0xa]]
        %s307 = sld [smem:[#allocation7 + $0xb]]
        %s308 = sld [smem:[#allocation7 + $0x4]]
        %s309 = sld [smem:[#allocation7 + $0x5]]
        %s310 = sld [smem:[#allocation7 + $0x6]]
        %s311 = sld [smem:[#allocation7 + $0x7]]
        %s312 = sld [smem:[#allocation7 + $0xc]]
        %s313 = sld [smem:[#allocation7 + $0xd]]
        %s314 = sld [smem:[#allocation7 + $0xe]]
        %s315 = sld [smem:[#allocation7 + $0xf]]
        %v316 = vld [vmem:[%s202] sm:$0xff]
        %v317 = vld [vmem:[%s202 + $0x8] sm:$0xff]
        %v318 = vld [vmem:[%s202 + $0x10] sm:$0xff]
        %v319 = vld [vmem:[%s202 + $0x18] sm:$0xff]
        %v320 = vld [vmem:[%s202 + $0x20] sm:$0xff]
        %v321 = vld [vmem:[%s202 + $0x28] sm:$0xff]
        %v322 = vld [vmem:[%s202 + $0x30] sm:$0xff]
        %v323 = vld [vmem:[%s202 + $0x38] sm:$0xff]
        %v324 = vstv %s236
        %v325 = vmul.f32 %v324, %v316
        %v326 = vmul.f32 %v324, %v317
        %v327 = vstv %s268
        %v328 = vmul.f32 %v327, %v316
        %v329 = vmul.f32 %v327, %v317
        %v330 = vstv %s237
        %v331 = vmul.f32 %v330, %v318
        %v332 = vmul.f32 %v330, %v319
        %v333 = vadd.f32 %v325, %v331
        %v334 = vadd.f32 %v326, %v332
        %v335 = vstv %s269
        %v336 = vmul.f32 %v335, %v318
        %v337 = vmul.f32 %v335, %v319
        %v338 = vadd.f32 %v328, %v336
        %v339 = vadd.f32 %v329, %v337
        %v340 = vstv %s238
        %v341 = vmul.f32 %v340, %v320
        %v342 = vmul.f32 %v340, %v321
        %v343 = vadd.f32 %v333, %v341
        %v344 = vadd.f32 %v334, %v342
        %v345 = vstv %s270
        %v346 = vmul.f32 %v345, %v320
        %v347 = vmul.f32 %v345, %v321
        %v348 = vadd.f32 %v338, %v346
        %v349 = vadd.f32 %v339, %v347
        %v350 = vstv %s239
        %v351 = vmul.f32 %v350, %v322
        %v352 = vmul.f32 %v350, %v323
        %v353 = vadd.f32 %v343, %v351
        %v354 = vadd.f32 %v344, %v352
        %v355 = vstv %s271
        %v356 = vmul.f32 %v355, %v322
        %v357 = vmul.f32 %v355, %v323
        %v358 = vadd.f32 %v348, %v356
        %v359 = vadd.f32 %v349, %v357
        %v360 = vstv %s300
        %v361 = vadd.f32 %v353, %v360
        %v362 = vadd.f32 %v354, %v360
        %v363 = vstv %s308
        %v364 = vadd.f32 %v358, %v363
        %v365 = vadd.f32 %v359, %v363
        %v366 = vstv %s240
        %v367 = vmul.f32 %v366, %v316
        %v368 = vmul.f32 %v366, %v317
        %v369 = vstv %s272
        %v370 = vmul.f32 %v369, %v316
        %v371 = vmul.f32 %v369, %v317
        %v372 = vstv %s241
        %v373 = vmul.f32 %v372, %v318
        %v374 = vmul.f32 %v372, %v319
        %v375 = vadd.f32 %v367, %v373
        %v376 = vadd.f32 %v368, %v374
        %v377 = vstv %s273
        %v378 = vmul.f32 %v377, %v318
        %v379 = vmul.f32 %v377, %v319
        %v380 = vadd.f32 %v370, %v378
        %v381 = vadd.f32 %v371, %v379
        %v382 = vstv %s242
        %v383 = vmul.f32 %v382, %v320
        %v384 = vmul.f32 %v382, %v321
        %v385 = vadd.f32 %v375, %v383
        %v386 = vadd.f32 %v376, %v384
        %v387 = vstv %s274
        %v388 = vmul.f32 %v387, %v320
        %v389 = vmul.f32 %v387, %v321
        %v390 = vadd.f32 %v380, %v388
        %v391 = vadd.f32 %v381, %v389
        %v392 = vstv %s243
        %v393 = vmul.f32 %v392, %v322
        %v394 = vmul.f32 %v392, %v323
        %v395 = vadd.f32 %v385, %v393
        %v396 = vadd.f32 %v386, %v394
        %v397 = vstv %s275
        %v398 = vmul.f32 %v397, %v322
        %v399 = vmul.f32 %v397, %v323
        %v400 = vadd.f32 %v390, %v398
        %v401 = vadd.f32 %v391, %v399
        %v402 = vstv %s301
        %v403 = vadd.f32 %v395, %v402
        %v404 = vadd.f32 %v396, %v402
        %v405 = vstv %s309
        %v406 = vadd.f32 %v400, %v405
        %v407 = vadd.f32 %v401, %v405
        %v408 = vstv %s244
        %v409 = vmul.f32 %v408, %v316
        %v410 = vmul.f32 %v408, %v317
        %v411 = vstv %s276
        %v412 = vmul.f32 %v411, %v316
        %v413 = vmul.f32 %v411, %v317
        %v414 = vstv %s245
        %v415 = vmul.f32 %v414, %v318
        %v416 = vmul.f32 %v414, %v319
        %v417 = vadd.f32 %v409, %v415
        %v418 = vadd.f32 %v410, %v416
        %v419 = vstv %s277
        %v420 = vmul.f32 %v419, %v318
        %v421 = vmul.f32 %v419, %v319
        %v422 = vadd.f32 %v412, %v420
        %v423 = vadd.f32 %v413, %v421
        %v424 = vstv %s246
        %v425 = vmul.f32 %v424, %v320
        %v426 = vmul.f32 %v424, %v321
        %v427 = vadd.f32 %v417, %v425
        %v428 = vadd.f32 %v418, %v426
        %v429 = vstv %s278
        %v430 = vmul.f32 %v429, %v320
        %v431 = vmul.f32 %v429, %v321
        %v432 = vadd.f32 %v422, %v430
        %v433 = vadd.f32 %v423, %v431
        %v434 = vstv %s247
        %v435 = vmul.f32 %v434, %v322
        %v436 = vmul.f32 %v434, %v323
        %v437 = vadd.f32 %v427, %v435
        %v438 = vadd.f32 %v428, %v436
        %v439 = vstv %s279
        %v440 = vmul.f32 %v439, %v322
        %v441 = vmul.f32 %v439, %v323
        %v442 = vadd.f32 %v432, %v440
        %v443 = vadd.f32 %v433, %v441
        %v444 = vstv %s302
        %v445 = vadd.f32 %v437, %v444
        %v446 = vadd.f32 %v438, %v444
        %v447 = vstv %s310
        %v448 = vadd.f32 %v442, %v447
        %v449 = vadd.f32 %v443, %v447
        %v450 = vstv %s248
        %v451 = vmul.f32 %v450, %v316
        %v452 = vmul.f32 %v450, %v317
        %v453 = vstv %s280
        %v454 = vmul.f32 %v453, %v316
        %v455 = vmul.f32 %v453, %v317
        %v456 = vstv %s249
        %v457 = vmul.f32 %v456, %v318
        %v458 = vmul.f32 %v456, %v319
        %v459 = vadd.f32 %v451, %v457
        %v460 = vadd.f32 %v452, %v458
        %v461 = vstv %s281
        %v462 = vmul.f32 %v461, %v318
        %v463 = vmul.f32 %v461, %v319
        %v464 = vadd.f32 %v454, %v462
        %v465 = vadd.f32 %v455, %v463
        %v466 = vstv %s250
        %v467 = vmul.f32 %v466, %v320
        %v468 = vmul.f32 %v466, %v321
        %v469 = vadd.f32 %v459, %v467
        %v470 = vadd.f32 %v460, %v468
        %v471 = vstv %s282
        %v472 = vmul.f32 %v471, %v320
        %v473 = vmul.f32 %v471, %v321
        %v474 = vadd.f32 %v464, %v472
        %v475 = vadd.f32 %v465, %v473
        %v476 = vstv %s251
        %v477 = vmul.f32 %v476, %v322
        %v478 = vmul.f32 %v476, %v323
        %v479 = vadd.f32 %v469, %v477
        %v480 = vadd.f32 %v470, %v478
        %v481 = vstv %s283
        %v482 = vmul.f32 %v481, %v322
        %v483 = vmul.f32 %v481, %v323
        %v484 = vadd.f32 %v474, %v482
        %v485 = vadd.f32 %v475, %v483
        %v486 = vstv %s303
        %v487 = vadd.f32 %v479, %v486
        %v488 = vadd.f32 %v480, %v486
        %v489 = vstv %s311
        %v490 = vadd.f32 %v484, %v489
        %v491 = vadd.f32 %v485, %v489
        %v494 = vcombine.low %v361, %v362
        %v495 = vcombine.high %v361, %v362
        %v497 = vunpack.c.l.s4 1966171168
        %v498 = vunpack.c.0.s8 %v497
        %v499 = vlaneseq
        %v500 = vshrl.u32 %v499, 7
        %v501 = vsub.s32 %v498, %v500
        %v502 = vrot.slane %v494, %v501
        %v504 = vunpack.c.l.s4 1966171168
        %v505 = vunpack.c.0.s8 %v504
        %v506 = vlaneseq
        %v507 = vshrl.u32 %v506, 7
        %v508 = vsub.s32 %v505, %v507
        %v509 = vrot.slane %v495, %v508
        %v510 = vcombine.high %v502, %v502
        %v511 = vcombine.high %v509, %v509
        %v513 = vunpack.c.l.s4 1966171168
        %v514 = vunpack.c.0.s8 %v513
        %v515 = vlaneseq
        %v516 = vshrl.u32 %v515, 7
        %v517 = vsub.s32 %v514, %v516
        %v518 = vrot.slane %v502, %v517
        %v520 = vunpack.c.l.s4 1966171168
        %v521 = vunpack.c.0.s8 %v520
        %v522 = vlaneseq
        %v523 = vshrl.u32 %v522, 7
        %v524 = vsub.s32 %v521, %v523
        %v525 = vrot.slane %v509, %v524
        %v527 = vunpack.c.l.s4 1966171168
        %v528 = vunpack.c.0.s8 %v527
        %v529 = vlaneseq
        %v530 = vshrl.u32 %v529, 7
        %v531 = vsub.s32 %v528, %v530
        %v532 = vrot.slane %v510, %v531
        %v534 = vunpack.c.l.s4 1966171168
        %v535 = vunpack.c.0.s8 %v534
        %v536 = vlaneseq
        %v537 = vshrl.u32 %v536, 7
        %v538 = vsub.s32 %v535, %v537
        %v539 = vrot.slane %v511, %v538
        %v540 = vcombine.high %v518, %v518
        %v541 = vcombine.high %v525, %v525
        %v542 = vcombine.high %v532, %v532
        %v543 = vcombine.high %v539, %v539
        %v544 = vlaneseq
        %v545 = vshrl.u32 %v544, 7
        %v546 = vsub.s32 0, %v545
        %v547 = vrot.slane %v518, %v546
        %v548 = vlaneseq
        %v549 = vshrl.u32 %v548, 7
        %v550 = vsub.s32 1, %v549
        %v551 = vrot.slane %v518, %v550
        %v552 = vlaneseq
        %v553 = vshrl.u32 %v552, 7
        %v554 = vsub.s32 0, %v553
        %v555 = vrot.slane %v532, %v554
        %v556 = vlaneseq
        %v557 = vshrl.u32 %v556, 7
        %v558 = vsub.s32 1, %v557
        %v559 = vrot.slane %v532, %v558
        %v560 = vlaneseq
        %v561 = vshrl.u32 %v560, 7
        %v562 = vsub.s32 0, %v561
        %v563 = vrot.slane %v540, %v562
        %v564 = vlaneseq
        %v565 = vshrl.u32 %v564, 7
        %v566 = vsub.s32 1, %v565
        %v567 = vrot.slane %v540, %v566
        %v568 = vlaneseq
        %v569 = vshrl.u32 %v568, 7
        %v570 = vsub.s32 0, %v569
        %v571 = vrot.slane %v542, %v570
        %v572 = vlaneseq
        %v573 = vshrl.u32 %v572, 7
        %v574 = vsub.s32 1, %v573
        %v575 = vrot.slane %v542, %v574
        %v576 = vlaneseq
        %v577 = vshrl.u32 %v576, 7
        %v578 = vsub.s32 0, %v577
        %v579 = vrot.slane %v525, %v578
        %v580 = vlaneseq
        %v581 = vshrl.u32 %v580, 7
        %v582 = vsub.s32 1, %v581
        %v583 = vrot.slane %v525, %v582
        %v584 = vlaneseq
        %v585 = vshrl.u32 %v584, 7
        %v586 = vsub.s32 0, %v585
        %v587 = vrot.slane %v539, %v586
        %v588 = vlaneseq
        %v589 = vshrl.u32 %v588, 7
        %v590 = vsub.s32 1, %v589
        %v591 = vrot.slane %v539, %v590
        %v592 = vlaneseq
        %v593 = vshrl.u32 %v592, 7
        %v594 = vsub.s32 0, %v593
        %v595 = vrot.slane %v541, %v594
        %v596 = vlaneseq
        %v597 = vshrl.u32 %v596, 7
        %v598 = vsub.s32 1, %v597
        %v599 = vrot.slane %v541, %v598
        %v600 = vlaneseq
        %v601 = vshrl.u32 %v600, 7
        %v602 = vsub.s32 0, %v601
        %v603 = vrot.slane %v543, %v602
        %v604 = vlaneseq
        %v605 = vshrl.u32 %v604, 7
        %v606 = vsub.s32 1, %v605
        %v607 = vrot.slane %v543, %v606
        %v624 = vmul.f32 %v547, %v316
        %v625 = vmul.f32 %v551, %v317
        %v626 = vmul.f32 %v555, %v316
        %v627 = vmul.f32 %v559, %v317
        %v628 = vmul.f32 %v563, %v316
        %v629 = vmul.f32 %v567, %v317
        %v630 = vmul.f32 %v571, %v316
        %v631 = vmul.f32 %v575, %v317
        %v632 = vmul.f32 %v579, %v316
        %v633 = vmul.f32 %v583, %v317
        %v634 = vmul.f32 %v587, %v316
        %v635 = vmul.f32 %v591, %v317
        %v636 = vmul.f32 %v595, %v316
        %v637 = vmul.f32 %v599, %v317
        %v638 = vmul.f32 %v603, %v316
        %v639 = vmul.f32 %v607, %v317
        %v642 = vcombine.low %v403, %v404
        %v643 = vcombine.high %v403, %v404
        %v645 = vunpack.c.l.s4 1966171168
        %v646 = vunpack.c.0.s8 %v645
        %v647 = vlaneseq
        %v648 = vshrl.u32 %v647, 7
        %v649 = vsub.s32 %v646, %v648
        %v650 = vrot.slane %v642, %v649
        %v652 = vunpack.c.l.s4 1966171168
        %v653 = vunpack.c.0.s8 %v652
        %v654 = vlaneseq
        %v655 = vshrl.u32 %v654, 7
        %v656 = vsub.s32 %v653, %v655
        %v657 = vrot.slane %v643, %v656
        %v658 = vcombine.high %v650, %v650
        %v659 = vcombine.high %v657, %v657
        %v661 = vunpack.c.l.s4 1966171168
        %v662 = vunpack.c.0.s8 %v661
        %v663 = vlaneseq
        %v664 = vshrl.u32 %v663, 7
        %v665 = vsub.s32 %v662, %v664
        %v666 = vrot.slane %v650, %v665
        %v668 = vunpack.c.l.s4 1966171168
        %v669 = vunpack.c.0.s8 %v668
        %v670 = vlaneseq
        %v671 = vshrl.u32 %v670, 7
        %v672 = vsub.s32 %v669, %v671
        %v673 = vrot.slane %v657, %v672
        %v675 = vunpack.c.l.s4 1966171168
        %v676 = vunpack.c.0.s8 %v675
        %v677 = vlaneseq
        %v678 = vshrl.u32 %v677, 7
        %v679 = vsub.s32 %v676, %v678
        %v680 = vrot.slane %v658, %v679
        %v682 = vunpack.c.l.s4 1966171168
        %v683 = vunpack.c.0.s8 %v682
        %v684 = vlaneseq
        %v685 = vshrl.u32 %v684, 7
        %v686 = vsub.s32 %v683, %v685
        %v687 = vrot.slane %v659, %v686
        %v688 = vcombine.high %v666, %v666
        %v689 = vcombine.high %v673, %v673
        %v690 = vcombine.high %v680, %v680
        %v691 = vcombine.high %v687, %v687
        %v692 = vlaneseq
        %v693 = vshrl.u32 %v692, 7
        %v694 = vsub.s32 0, %v693
        %v695 = vrot.slane %v666, %v694
        %v696 = vlaneseq
        %v697 = vshrl.u32 %v696, 7
        %v698 = vsub.s32 1, %v697
        %v699 = vrot.slane %v666, %v698
        %v700 = vlaneseq
        %v701 = vshrl.u32 %v700, 7
        %v702 = vsub.s32 0, %v701
        %v703 = vrot.slane %v680, %v702
        %v704 = vlaneseq
        %v705 = vshrl.u32 %v704, 7
        %v706 = vsub.s32 1, %v705
        %v707 = vrot.slane %v680, %v706
        %v708 = vlaneseq
        %v709 = vshrl.u32 %v708, 7
        %v710 = vsub.s32 0, %v709
        %v711 = vrot.slane %v688, %v710
        %v712 = vlaneseq
        %v713 = vshrl.u32 %v712, 7
        %v714 = vsub.s32 1, %v713
        %v715 = vrot.slane %v688, %v714
        %v716 = vlaneseq
        %v717 = vshrl.u32 %v716, 7
        %v718 = vsub.s32 0, %v717
        %v719 = vrot.slane %v690, %v718
        %v720 = vlaneseq
        %v721 = vshrl.u32 %v720, 7
        %v722 = vsub.s32 1, %v721
        %v723 = vrot.slane %v690, %v722
        %v724 = vlaneseq
        %v725 = vshrl.u32 %v724, 7
        %v726 = vsub.s32 0, %v725
        %v727 = vrot.slane %v673, %v726
        %v728 = vlaneseq
        %v729 = vshrl.u32 %v728, 7
        %v730 = vsub.s32 1, %v729
        %v731 = vrot.slane %v673, %v730
        %v732 = vlaneseq
        %v733 = vshrl.u32 %v732, 7
        %v734 = vsub.s32 0, %v733
        %v735 = vrot.slane %v687, %v734
        %v736 = vlaneseq
        %v737 = vshrl.u32 %v736, 7
        %v738 = vsub.s32 1, %v737
        %v739 = vrot.slane %v687, %v738
        %v740 = vlaneseq
        %v741 = vshrl.u32 %v740, 7
        %v742 = vsub.s32 0, %v741
        %v743 = vrot.slane %v689, %v742
        %v744 = vlaneseq
        %v745 = vshrl.u32 %v744, 7
        %v746 = vsub.s32 1, %v745
        %v747 = vrot.slane %v689, %v746
        %v748 = vlaneseq
        %v749 = vshrl.u32 %v748, 7
        %v750 = vsub.s32 0, %v749
        %v751 = vrot.slane %v691, %v750
        %v752 = vlaneseq
        %v753 = vshrl.u32 %v752, 7
        %v754 = vsub.s32 1, %v753
        %v755 = vrot.slane %v691, %v754
        %v772 = vmul.f32 %v695, %v318
        %v773 = vmul.f32 %v699, %v319
        %v774 = vmul.f32 %v703, %v318
        %v775 = vmul.f32 %v707, %v319
        %v776 = vmul.f32 %v711, %v318
        %v777 = vmul.f32 %v715, %v319
        %v778 = vmul.f32 %v719, %v318
        %v779 = vmul.f32 %v723, %v319
        %v780 = vmul.f32 %v727, %v318
        %v781 = vmul.f32 %v731, %v319
        %v782 = vmul.f32 %v735, %v318
        %v783 = vmul.f32 %v739, %v319
        %v784 = vmul.f32 %v743, %v318
        %v785 = vmul.f32 %v747, %v319
        %v786 = vmul.f32 %v751, %v318
        %v787 = vmul.f32 %v755, %v319
        %v788 = vadd.f32 %v624, %v772
        %v789 = vadd.f32 %v625, %v773
        %v790 = vadd.f32 %v626, %v774
        %v791 = vadd.f32 %v627, %v775
        %v792 = vadd.f32 %v628, %v776
        %v793 = vadd.f32 %v629, %v777
        %v794 = vadd.f32 %v630, %v778
        %v795 = vadd.f32 %v631, %v779
        %v796 = vadd.f32 %v632, %v780
        %v797 = vadd.f32 %v633, %v781
        %v798 = vadd.f32 %v634, %v782
        %v799 = vadd.f32 %v635, %v783
        %v800 = vadd.f32 %v636, %v784
        %v801 = vadd.f32 %v637, %v785
        %v802 = vadd.f32 %v638, %v786
        %v803 = vadd.f32 %v639, %v787
        %v806 = vcombine.low %v445, %v446
        %v807 = vcombine.high %v445, %v446
        %v809 = vunpack.c.l.s4 1966171168
        %v810 = vunpack.c.0.s8 %v809
        %v811 = vlaneseq
        %v812 = vshrl.u32 %v811, 7
        %v813 = vsub.s32 %v810, %v812
        %v814 = vrot.slane %v806, %v813
        %v816 = vunpack.c.l.s4 1966171168
        %v817 = vunpack.c.0.s8 %v816
        %v818 = vlaneseq
        %v819 = vshrl.u32 %v818, 7
        %v820 = vsub.s32 %v817, %v819
        %v821 = vrot.slane %v807, %v820
        %v822 = vcombine.high %v814, %v814
        %v823 = vcombine.high %v821, %v821
        %v825 = vunpack.c.l.s4 1966171168
        %v826 = vunpack.c.0.s8 %v825
        %v827 = vlaneseq
        %v828 = vshrl.u32 %v827, 7
        %v829 = vsub.s32 %v826, %v828
        %v830 = vrot.slane %v814, %v829
        %v832 = vunpack.c.l.s4 1966171168
        %v833 = vunpack.c.0.s8 %v832
        %v834 = vlaneseq
        %v835 = vshrl.u32 %v834, 7
        %v836 = vsub.s32 %v833, %v835
        %v837 = vrot.slane %v821, %v836
        %v839 = vunpack.c.l.s4 1966171168
        %v840 = vunpack.c.0.s8 %v839
        %v841 = vlaneseq
        %v842 = vshrl.u32 %v841, 7
        %v843 = vsub.s32 %v840, %v842
        %v844 = vrot.slane %v822, %v843
        %v846 = vunpack.c.l.s4 1966171168
        %v847 = vunpack.c.0.s8 %v846
        %v848 = vlaneseq
        %v849 = vshrl.u32 %v848, 7
        %v850 = vsub.s32 %v847, %v849
        %v851 = vrot.slane %v823, %v850
        %v852 = vcombine.high %v830, %v830
        %v853 = vcombine.high %v837, %v837
        %v854 = vcombine.high %v844, %v844
        %v855 = vcombine.high %v851, %v851
        %v856 = vlaneseq
        %v857 = vshrl.u32 %v856, 7
        %v858 = vsub.s32 0, %v857
        %v859 = vrot.slane %v830, %v858
        %v860 = vlaneseq
        %v861 = vshrl.u32 %v860, 7
        %v862 = vsub.s32 1, %v861
        %v863 = vrot.slane %v830, %v862
        %v864 = vlaneseq
        %v865 = vshrl.u32 %v864, 7
        %v866 = vsub.s32 0, %v865
        %v867 = vrot.slane %v844, %v866
        %v868 = vlaneseq
        %v869 = vshrl.u32 %v868, 7
        %v870 = vsub.s32 1, %v869
        %v871 = vrot.slane %v844, %v870
        %v872 = vlaneseq
        %v873 = vshrl.u32 %v872, 7
        %v874 = vsub.s32 0, %v873
        %v875 = vrot.slane %v852, %v874
        %v876 = vlaneseq
        %v877 = vshrl.u32 %v876, 7
        %v878 = vsub.s32 1, %v877
        %v879 = vrot.slane %v852, %v878
        %v880 = vlaneseq
        %v881 = vshrl.u32 %v880, 7
        %v882 = vsub.s32 0, %v881
        %v883 = vrot.slane %v854, %v882
        %v884 = vlaneseq
        %v885 = vshrl.u32 %v884, 7
        %v886 = vsub.s32 1, %v885
        %v887 = vrot.slane %v854, %v886
        %v888 = vlaneseq
        %v889 = vshrl.u32 %v888, 7
        %v890 = vsub.s32 0, %v889
        %v891 = vrot.slane %v837, %v890
        %v892 = vlaneseq
        %v893 = vshrl.u32 %v892, 7
        %v894 = vsub.s32 1, %v893
        %v895 = vrot.slane %v837, %v894
        %v896 = vlaneseq
        %v897 = vshrl.u32 %v896, 7
        %v898 = vsub.s32 0, %v897
        %v899 = vrot.slane %v851, %v898
        %v900 = vlaneseq
        %v901 = vshrl.u32 %v900, 7
        %v902 = vsub.s32 1, %v901
        %v903 = vrot.slane %v851, %v902
        %v904 = vlaneseq
        %v905 = vshrl.u32 %v904, 7
        %v906 = vsub.s32 0, %v905
        %v907 = vrot.slane %v853, %v906
        %v908 = vlaneseq
        %v909 = vshrl.u32 %v908, 7
        %v910 = vsub.s32 1, %v909
        %v911 = vrot.slane %v853, %v910
        %v912 = vlaneseq
        %v913 = vshrl.u32 %v912, 7
        %v914 = vsub.s32 0, %v913
        %v915 = vrot.slane %v855, %v914
        %v916 = vlaneseq
        %v917 = vshrl.u32 %v916, 7
        %v918 = vsub.s32 1, %v917
        %v919 = vrot.slane %v855, %v918
        %v936 = vmul.f32 %v859, %v320
        %v937 = vmul.f32 %v863, %v321
        %v938 = vmul.f32 %v867, %v320
        %v939 = vmul.f32 %v871, %v321
        %v940 = vmul.f32 %v875, %v320
        %v941 = vmul.f32 %v879, %v321
        %v942 = vmul.f32 %v883, %v320
        %v943 = vmul.f32 %v887, %v321
        %v944 = vmul.f32 %v891, %v320
        %v945 = vmul.f32 %v895, %v321
        %v946 = vmul.f32 %v899, %v320
        %v947 = vmul.f32 %v903, %v321
        %v948 = vmul.f32 %v907, %v320
        %v949 = vmul.f32 %v911, %v321
        %v950 = vmul.f32 %v915, %v320
        %v951 = vmul.f32 %v919, %v321
        %v952 = vadd.f32 %v788, %v936
        %v953 = vadd.f32 %v789, %v937
        %v954 = vadd.f32 %v790, %v938
        %v955 = vadd.f32 %v791, %v939
        %v956 = vadd.f32 %v792, %v940
        %v957 = vadd.f32 %v793, %v941
        %v958 = vadd.f32 %v794, %v942
        %v959 = vadd.f32 %v795, %v943
        %v960 = vadd.f32 %v796, %v944
        %v961 = vadd.f32 %v797, %v945
        %v962 = vadd.f32 %v798, %v946
        %v963 = vadd.f32 %v799, %v947
        %v964 = vadd.f32 %v800, %v948
        %v965 = vadd.f32 %v801, %v949
        %v966 = vadd.f32 %v802, %v950
        %v967 = vadd.f32 %v803, %v951
        %v970 = vcombine.low %v487, %v488
        %v971 = vcombine.high %v487, %v488
        %v973 = vunpack.c.l.s4 1966171168
        %v974 = vunpack.c.0.s8 %v973
        %v975 = vlaneseq
        %v976 = vshrl.u32 %v975, 7
        %v977 = vsub.s32 %v974, %v976
        %v978 = vrot.slane %v970, %v977
        %v980 = vunpack.c.l.s4 1966171168
        %v981 = vunpack.c.0.s8 %v980
        %v982 = vlaneseq
        %v983 = vshrl.u32 %v982, 7
        %v984 = vsub.s32 %v981, %v983
        %v985 = vrot.slane %v971, %v984
        %v986 = vcombine.high %v978, %v978
        %v987 = vcombine.high %v985, %v985
        %v989 = vunpack.c.l.s4 1966171168
        %v990 = vunpack.c.0.s8 %v989
        %v991 = vlaneseq
        %v992 = vshrl.u32 %v991, 7
        %v993 = vsub.s32 %v990, %v992
        %v994 = vrot.slane %v978, %v993
        %v996 = vunpack.c.l.s4 1966171168
        %v997 = vunpack.c.0.s8 %v996
        %v998 = vlaneseq
        %v999 = vshrl.u32 %v998, 7
        %v1000 = vsub.s32 %v997, %v999
        %v1001 = vrot.slane %v985, %v1000
        %v1003 = vunpack.c.l.s4 1966171168
        %v1004 = vunpack.c.0.s8 %v1003
        %v1005 = vlaneseq
        %v1006 = vshrl.u32 %v1005, 7
        %v1007 = vsub.s32 %v1004, %v1006
        %v1008 = vrot.slane %v986, %v1007
        %v1010 = vunpack.c.l.s4 1966171168
        %v1011 = vunpack.c.0.s8 %v1010
        %v1012 = vlaneseq
        %v1013 = vshrl.u32 %v1012, 7
        %v1014 = vsub.s32 %v1011, %v1013
        %v1015 = vrot.slane %v987, %v1014
        %v1016 = vcombine.high %v994, %v994
        %v1017 = vcombine.high %v1001, %v1001
        %v1018 = vcombine.high %v1008, %v1008
        %v1019 = vcombine.high %v1015, %v1015
        %v1020 = vlaneseq
        %v1021 = vshrl.u32 %v1020, 7
        %v1022 = vsub.s32 0, %v1021
        %v1023 = vrot.slane %v994, %v1022
        %v1024 = vlaneseq
        %v1025 = vshrl.u32 %v1024, 7
        %v1026 = vsub.s32 1, %v1025
        %v1027 = vrot.slane %v994, %v1026
        %v1028 = vlaneseq
        %v1029 = vshrl.u32 %v1028, 7
        %v1030 = vsub.s32 0, %v1029
        %v1031 = vrot.slane %v1008, %v1030
        %v1032 = vlaneseq
        %v1033 = vshrl.u32 %v1032, 7
        %v1034 = vsub.s32 1, %v1033
        %v1035 = vrot.slane %v1008, %v1034
        %v1036 = vlaneseq
        %v1037 = vshrl.u32 %v1036, 7
        %v1038 = vsub.s32 0, %v1037
        %v1039 = vrot.slane %v1016, %v1038
        %v1040 = vlaneseq
        %v1041 = vshrl.u32 %v1040, 7
        %v1042 = vsub.s32 1, %v1041
        %v1043 = vrot.slane %v1016, %v1042
        %v1044 = vlaneseq
        %v1045 = vshrl.u32 %v1044, 7
        %v1046 = vsub.s32 0, %v1045
        %v1047 = vrot.slane %v1018, %v1046
        %v1048 = vlaneseq
        %v1049 = vshrl.u32 %v1048, 7
        %v1050 = vsub.s32 1, %v1049
        %v1051 = vrot.slane %v1018, %v1050
        %v1052 = vlaneseq
        %v1053 = vshrl.u32 %v1052, 7
        %v1054 = vsub.s32 0, %v1053
        %v1055 = vrot.slane %v1001, %v1054
        %v1056 = vlaneseq
        %v1057 = vshrl.u32 %v1056, 7
        %v1058 = vsub.s32 1, %v1057
        %v1059 = vrot.slane %v1001, %v1058
        %v1060 = vlaneseq
        %v1061 = vshrl.u32 %v1060, 7
        %v1062 = vsub.s32 0, %v1061
        %v1063 = vrot.slane %v1015, %v1062
        %v1064 = vlaneseq
        %v1065 = vshrl.u32 %v1064, 7
        %v1066 = vsub.s32 1, %v1065
        %v1067 = vrot.slane %v1015, %v1066
        %v1068 = vlaneseq
        %v1069 = vshrl.u32 %v1068, 7
        %v1070 = vsub.s32 0, %v1069
        %v1071 = vrot.slane %v1017, %v1070
        %v1072 = vlaneseq
        %v1073 = vshrl.u32 %v1072, 7
        %v1074 = vsub.s32 1, %v1073
        %v1075 = vrot.slane %v1017, %v1074
        %v1076 = vlaneseq
        %v1077 = vshrl.u32 %v1076, 7
        %v1078 = vsub.s32 0, %v1077
        %v1079 = vrot.slane %v1019, %v1078
        %v1080 = vlaneseq
        %v1081 = vshrl.u32 %v1080, 7
        %v1082 = vsub.s32 1, %v1081
        %v1083 = vrot.slane %v1019, %v1082
        %v1100 = vmul.f32 %v1023, %v322
        %v1101 = vmul.f32 %v1027, %v323
        %v1102 = vmul.f32 %v1031, %v322
        %v1103 = vmul.f32 %v1035, %v323
        %v1104 = vmul.f32 %v1039, %v322
        %v1105 = vmul.f32 %v1043, %v323
        %v1106 = vmul.f32 %v1047, %v322
        %v1107 = vmul.f32 %v1051, %v323
        %v1108 = vmul.f32 %v1055, %v322
        %v1109 = vmul.f32 %v1059, %v323
        %v1110 = vmul.f32 %v1063, %v322
        %v1111 = vmul.f32 %v1067, %v323
        %v1112 = vmul.f32 %v1071, %v322
        %v1113 = vmul.f32 %v1075, %v323
        %v1114 = vmul.f32 %v1079, %v322
        %v1115 = vmul.f32 %v1083, %v323
        %v1116 = vadd.f32 %v952, %v1100
        %v1117 = vadd.f32 %v953, %v1101
        %v1118 = vadd.f32 %v954, %v1102
        %v1119 = vadd.f32 %v955, %v1103
        %v1120 = vadd.f32 %v956, %v1104
        %v1121 = vadd.f32 %v957, %v1105
        %v1122 = vadd.f32 %v958, %v1106
        %v1123 = vadd.f32 %v959, %v1107
        %v1124 = vadd.f32 %v960, %v1108
        %v1125 = vadd.f32 %v961, %v1109
        %v1126 = vadd.f32 %v962, %v1110
        %v1127 = vadd.f32 %v963, %v1111
        %v1128 = vadd.f32 %v964, %v1112
        %v1129 = vadd.f32 %v965, %v1113
        %v1130 = vadd.f32 %v966, %v1114
        %v1131 = vadd.f32 %v967, %v1115
        %v1132 = vrot.slane %v1116, 4
        %v1133 = vmax.f32 %v1116, %v1132
        %v1134 = vrot.slane %v1133, 2
        %v1135 = vmax.f32 %v1133, %v1134
        %v1136 = vrot.slane %v1135, 1
        %v1137 = vmax.f32 %v1135, %v1136
        %v1138 = vrot.slane %v1117, 4
        %v1139 = vmax.f32 %v1117, %v1138
        %v1140 = vrot.slane %v1139, 2
        %v1141 = vmax.f32 %v1139, %v1140
        %v1142 = vrot.slane %v1141, 1
        %v1143 = vmax.f32 %v1141, %v1142
        %v1144 = vrot.slane %v1118, 4
        %v1145 = vmax.f32 %v1118, %v1144
        %v1146 = vrot.slane %v1145, 2
        %v1147 = vmax.f32 %v1145, %v1146
        %v1148 = vrot.slane %v1147, 1
        %v1149 = vmax.f32 %v1147, %v1148
        %v1150 = vrot.slane %v1119, 4
        %v1151 = vmax.f32 %v1119, %v1150
        %v1152 = vrot.slane %v1151, 2
        %v1153 = vmax.f32 %v1151, %v1152
        %v1154 = vrot.slane %v1153, 1
        %v1155 = vmax.f32 %v1153, %v1154
        %v1156 = vrot.slane %v1120, 4
        %v1157 = vmax.f32 %v1120, %v1156
        %v1158 = vrot.slane %v1157, 2
        %v1159 = vmax.f32 %v1157, %v1158
        %v1160 = vrot.slane %v1159, 1
        %v1161 = vmax.f32 %v1159, %v1160
        %v1162 = vrot.slane %v1121, 4
        %v1163 = vmax.f32 %v1121, %v1162
        %v1164 = vrot.slane %v1163, 2
        %v1165 = vmax.f32 %v1163, %v1164
        %v1166 = vrot.slane %v1165, 1
        %v1167 = vmax.f32 %v1165, %v1166
        %v1168 = vrot.slane %v1122, 4
        %v1169 = vmax.f32 %v1122, %v1168
        %v1170 = vrot.slane %v1169, 2
        %v1171 = vmax.f32 %v1169, %v1170
        %v1172 = vrot.slane %v1171, 1
        %v1173 = vmax.f32 %v1171, %v1172
        %v1174 = vrot.slane %v1123, 4
        %v1175 = vmax.f32 %v1123, %v1174
        %v1176 = vrot.slane %v1175, 2
        %v1177 = vmax.f32 %v1175, %v1176
        %v1178 = vrot.slane %v1177, 1
        %v1179 = vmax.f32 %v1177, %v1178
        %v1180 = vrot.slane %v1124, 4
        %v1181 = vmax.f32 %v1124, %v1180
        %v1182 = vrot.slane %v1181, 2
        %v1183 = vmax.f32 %v1181, %v1182
        %v1184 = vrot.slane %v1183, 1
        %v1185 = vmax.f32 %v1183, %v1184
        %v1186 = vrot.slane %v1125, 4
        %v1187 = vmax.f32 %v1125, %v1186
        %v1188 = vrot.slane %v1187, 2
        %v1189 = vmax.f32 %v1187, %v1188
        %v1190 = vrot.slane %v1189, 1
        %v1191 = vmax.f32 %v1189, %v1190
        %v1192 = vrot.slane %v1126, 4
        %v1193 = vmax.f32 %v1126, %v1192
        %v1194 = vrot.slane %v1193, 2
        %v1195 = vmax.f32 %v1193, %v1194
        %v1196 = vrot.slane %v1195, 1
        %v1197 = vmax.f32 %v1195, %v1196
        %v1198 = vrot.slane %v1127, 4
        %v1199 = vmax.f32 %v1127, %v1198
        %v1200 = vrot.slane %v1199, 2
        %v1201 = vmax.f32 %v1199, %v1200
        %v1202 = vrot.slane %v1201, 1
        %v1203 = vmax.f32 %v1201, %v1202
        %v1204 = vrot.slane %v1128, 4
        %v1205 = vmax.f32 %v1128, %v1204
        %v1206 = vrot.slane %v1205, 2
        %v1207 = vmax.f32 %v1205, %v1206
        %v1208 = vrot.slane %v1207, 1
        %v1209 = vmax.f32 %v1207, %v1208
        %v1210 = vrot.slane %v1129, 4
        %v1211 = vmax.f32 %v1129, %v1210
        %v1212 = vrot.slane %v1211, 2
        %v1213 = vmax.f32 %v1211, %v1212
        %v1214 = vrot.slane %v1213, 1
        %v1215 = vmax.f32 %v1213, %v1214
        %v1216 = vrot.slane %v1130, 4
        %v1217 = vmax.f32 %v1130, %v1216
        %v1218 = vrot.slane %v1217, 2
        %v1219 = vmax.f32 %v1217, %v1218
        %v1220 = vrot.slane %v1219, 1
        %v1221 = vmax.f32 %v1219, %v1220
        %v1222 = vrot.slane %v1131, 4
        %v1223 = vmax.f32 %v1131, %v1222
        %v1224 = vrot.slane %v1223, 2
        %v1225 = vmax.f32 %v1223, %v1224
        %v1226 = vrot.slane %v1225, 1
        %v1227 = vmax.f32 %v1225, %v1226
        %v1228 = vsub.f32 %v1116, %v1137
        %v1229 = vsub.f32 %v1117, %v1143
        %v1230 = vsub.f32 %v1118, %v1149
        %v1231 = vsub.f32 %v1119, %v1155
        %v1232 = vsub.f32 %v1120, %v1161
        %v1233 = vsub.f32 %v1121, %v1167
        %v1234 = vsub.f32 %v1122, %v1173
        %v1235 = vsub.f32 %v1123, %v1179
        %v1236 = vsub.f32 %v1124, %v1185
        %v1237 = vsub.f32 %v1125, %v1191
        %v1238 = vsub.f32 %v1126, %v1197
        %v1239 = vsub.f32 %v1127, %v1203
        %v1240 = vsub.f32 %v1128, %v1209
        %v1241 = vsub.f32 %v1129, %v1215
        %v1242 = vsub.f32 %v1130, %v1221
        %v1243 = vsub.f32 %v1131, %v1227
        %v1244 = vmul.f32 %v1228, 1.442695
        %v1245 = vpow.pop %v1244
        %v1246 = vmul.f32 %v1229, 1.442695
        %v1247 = vpow.pop %v1246
        %v1248 = vmul.f32 %v1230, 1.442695
        %v1249 = vpow.pop %v1248
        %v1250 = vmul.f32 %v1231, 1.442695
        %v1251 = vpow.pop %v1250
        %v1252 = vmul.f32 %v1232, 1.442695
        %v1253 = vpow.pop %v1252
        %v1254 = vmul.f32 %v1233, 1.442695
        %v1255 = vpow.pop %v1254
        %v1256 = vmul.f32 %v1234, 1.442695
        %v1257 = vpow.pop %v1256
        %v1258 = vmul.f32 %v1235, 1.442695
        %v1259 = vpow.pop %v1258
        %v1260 = vmul.f32 %v1236, 1.442695
        %v1261 = vpow.pop %v1260
        %v1262 = vmul.f32 %v1237, 1.442695
        %v1263 = vpow.pop %v1262
        %v1264 = vmul.f32 %v1238, 1.442695
        %v1265 = vpow.pop %v1264
        %v1266 = vmul.f32 %v1239, 1.442695
        %v1267 = vpow.pop %v1266
        %v1268 = vmul.f32 %v1240, 1.442695
        %v1269 = vpow.pop %v1268
        %v1270 = vmul.f32 %v1241, 1.442695
        %v1271 = vpow.pop %v1270
        %v1272 = vmul.f32 %v1242, 1.442695
        %v1273 = vpow.pop %v1272
        %v1274 = vmul.f32 %v1243, 1.442695
        %v1275 = vpow.pop %v1274
        %v1276 = vrot.slane %v1245, 4
        %v1277 = vadd.f32 %v1245, %v1276
        %v1278 = vrot.slane %v1277, 2
        %v1279 = vadd.f32 %v1277, %v1278
        %v1280 = vrot.slane %v1279, 1
        %v1281 = vadd.f32 %v1279, %v1280
        %v1282 = vrot.slane %v1247, 4
        %v1283 = vadd.f32 %v1247, %v1282
        %v1284 = vrot.slane %v1283, 2
        %v1285 = vadd.f32 %v1283, %v1284
        %v1286 = vrot.slane %v1285, 1
        %v1287 = vadd.f32 %v1285, %v1286
        %v1288 = vrot.slane %v1249, 4
        %v1289 = vadd.f32 %v1249, %v1288
        %v1290 = vrot.slane %v1289, 2
        %v1291 = vadd.f32 %v1289, %v1290
        %v1292 = vrot.slane %v1291, 1
        %v1293 = vadd.f32 %v1291, %v1292
        %v1294 = vrot.slane %v1251, 4
        %v1295 = vadd.f32 %v1251, %v1294
        %v1296 = vrot.slane %v1295, 2
        %v1297 = vadd.f32 %v1295, %v1296
        %v1298 = vrot.slane %v1297, 1
        %v1299 = vadd.f32 %v1297, %v1298
        %v1300 = vrot.slane %v1253, 4
        %v1301 = vadd.f32 %v1253, %v1300
        %v1302 = vrot.slane %v1301, 2
        %v1303 = vadd.f32 %v1301, %v1302
        %v1304 = vrot.slane %v1303, 1
        %v1305 = vadd.f32 %v1303, %v1304
        %v1306 = vrot.slane %v1255, 4
        %v1307 = vadd.f32 %v1255, %v1306
        %v1308 = vrot.slane %v1307, 2
        %v1309 = vadd.f32 %v1307, %v1308
        %v1310 = vrot.slane %v1309, 1
        %v1311 = vadd.f32 %v1309, %v1310
        %v1312 = vrot.slane %v1257, 4
        %v1313 = vadd.f32 %v1257, %v1312
        %v1314 = vrot.slane %v1313, 2
        %v1315 = vadd.f32 %v1313, %v1314
        %v1316 = vrot.slane %v1315, 1
        %v1317 = vadd.f32 %v1315, %v1316
        %v1318 = vrot.slane %v1259, 4
        %v1319 = vadd.f32 %v1259, %v1318
        %v1320 = vrot.slane %v1319, 2
        %v1321 = vadd.f32 %v1319, %v1320
        %v1322 = vrot.slane %v1321, 1
        %v1323 = vadd.f32 %v1321, %v1322
        %v1324 = vrot.slane %v1261, 4
        %v1325 = vadd.f32 %v1261, %v1324
        %v1326 = vrot.slane %v1325, 2
        %v1327 = vadd.f32 %v1325, %v1326
        %v1328 = vrot.slane %v1327, 1
        %v1329 = vadd.f32 %v1327, %v1328
        %v1330 = vrot.slane %v1263, 4
        %v1331 = vadd.f32 %v1263, %v1330
        %v1332 = vrot.slane %v1331, 2
        %v1333 = vadd.f32 %v1331, %v1332
        %v1334 = vrot.slane %v1333, 1
        %v1335 = vadd.f32 %v1333, %v1334
        %v1336 = vrot.slane %v1265, 4
        %v1337 = vadd.f32 %v1265, %v1336
        %v1338 = vrot.slane %v1337, 2
        %v1339 = vadd.f32 %v1337, %v1338
        %v1340 = vrot.slane %v1339, 1
        %v1341 = vadd.f32 %v1339, %v1340
        %v1342 = vrot.slane %v1267, 4
        %v1343 = vadd.f32 %v1267, %v1342
        %v1344 = vrot.slane %v1343, 2
        %v1345 = vadd.f32 %v1343, %v1344
        %v1346 = vrot.slane %v1345, 1
        %v1347 = vadd.f32 %v1345, %v1346
        %v1348 = vrot.slane %v1269, 4
        %v1349 = vadd.f32 %v1269, %v1348
        %v1350 = vrot.slane %v1349, 2
        %v1351 = vadd.f32 %v1349, %v1350
        %v1352 = vrot.slane %v1351, 1
        %v1353 = vadd.f32 %v1351, %v1352
        %v1354 = vrot.slane %v1271, 4
        %v1355 = vadd.f32 %v1271, %v1354
        %v1356 = vrot.slane %v1355, 2
        %v1357 = vadd.f32 %v1355, %v1356
        %v1358 = vrot.slane %v1357, 1
        %v1359 = vadd.f32 %v1357, %v1358
        %v1360 = vrot.slane %v1273, 4
        %v1361 = vadd.f32 %v1273, %v1360
        %v1362 = vrot.slane %v1361, 2
        %v1363 = vadd.f32 %v1361, %v1362
        %v1364 = vrot.slane %v1363, 1
        %v1365 = vadd.f32 %v1363, %v1364
        %v1366 = vrot.slane %v1275, 4
        %v1367 = vadd.f32 %v1275, %v1366
        %v1368 = vrot.slane %v1367, 2
        %v1369 = vadd.f32 %v1367, %v1368
        %v1370 = vrot.slane %v1369, 1
        %v1371 = vadd.f32 %v1369, %v1370
        %v1372 = vrcp.pop %v1281
        %v1373 = vmul.f32 1.0, %v1372
        %v1374 = vrcp.pop %v1287
        %v1375 = vmul.f32 1.0, %v1374
        %v1376 = vrcp.pop %v1293
        %v1377 = vmul.f32 1.0, %v1376
        %v1378 = vrcp.pop %v1299
        %v1379 = vmul.f32 1.0, %v1378
        %v1380 = vrcp.pop %v1305
        %v1381 = vmul.f32 1.0, %v1380
        %v1382 = vrcp.pop %v1311
        %v1383 = vmul.f32 1.0, %v1382
        %v1384 = vrcp.pop %v1317
        %v1385 = vmul.f32 1.0, %v1384
        %v1386 = vrcp.pop %v1323
        %v1387 = vmul.f32 1.0, %v1386
        %v1388 = vrcp.pop %v1329
        %v1389 = vmul.f32 1.0, %v1388
        %v1390 = vrcp.pop %v1335
        %v1391 = vmul.f32 1.0, %v1390
        %v1392 = vrcp.pop %v1341
        %v1393 = vmul.f32 1.0, %v1392
        %v1394 = vrcp.pop %v1347
        %v1395 = vmul.f32 1.0, %v1394
        %v1396 = vrcp.pop %v1353
        %v1397 = vmul.f32 1.0, %v1396
        %v1398 = vrcp.pop %v1359
        %v1399 = vmul.f32 1.0, %v1398
        %v1400 = vrcp.pop %v1365
        %v1401 = vmul.f32 1.0, %v1400
        %v1402 = vrcp.pop %v1371
        %v1403 = vmul.f32 1.0, %v1402
        %v1404 = vmul.f32 %v1245, %v364
        %v1405 = vmul.f32 %v1247, %v365
        %v1406 = vmul.f32 %v1249, %v364
        %v1407 = vmul.f32 %v1251, %v365
        %v1408 = vmul.f32 %v1253, %v364
        %v1409 = vmul.f32 %v1255, %v365
        %v1410 = vmul.f32 %v1257, %v364
        %v1411 = vmul.f32 %v1259, %v365
        %v1412 = vmul.f32 %v1261, %v364
        %v1413 = vmul.f32 %v1263, %v365
        %v1414 = vmul.f32 %v1265, %v364
        %v1415 = vmul.f32 %v1267, %v365
        %v1416 = vmul.f32 %v1269, %v364
        %v1417 = vmul.f32 %v1271, %v365
        %v1418 = vmul.f32 %v1273, %v364
        %v1419 = vmul.f32 %v1275, %v365
        %v1420 = vrot.slane %v1404, 4
        %v1421 = vadd.f32 %v1404, %v1420
        %v1422 = vrot.slane %v1421, 2
        %v1423 = vadd.f32 %v1421, %v1422
        %v1424 = vrot.slane %v1423, 1
        %v1425 = vadd.f32 %v1423, %v1424
        %v1426 = vrot.slane %v1405, 4
        %v1427 = vadd.f32 %v1405, %v1426
        %v1428 = vrot.slane %v1427, 2
        %v1429 = vadd.f32 %v1427, %v1428
        %v1430 = vrot.slane %v1429, 1
        %v1431 = vadd.f32 %v1429, %v1430
        %v1432 = vrot.slane %v1406, 4
        %v1433 = vadd.f32 %v1406, %v1432
        %v1434 = vrot.slane %v1433, 2
        %v1435 = vadd.f32 %v1433, %v1434
        %v1436 = vrot.slane %v1435, 1
        %v1437 = vadd.f32 %v1435, %v1436
        %v1438 = vrot.slane %v1407, 4
        %v1439 = vadd.f32 %v1407, %v1438
        %v1440 = vrot.slane %v1439, 2
        %v1441 = vadd.f32 %v1439, %v1440
        %v1442 = vrot.slane %v1441, 1
        %v1443 = vadd.f32 %v1441, %v1442
        %v1444 = vrot.slane %v1408, 4
        %v1445 = vadd.f32 %v1408, %v1444
        %v1446 = vrot.slane %v1445, 2
        %v1447 = vadd.f32 %v1445, %v1446
        %v1448 = vrot.slane %v1447, 1
        %v1449 = vadd.f32 %v1447, %v1448
        %v1450 = vrot.slane %v1409, 4
        %v1451 = vadd.f32 %v1409, %v1450
        %v1452 = vrot.slane %v1451, 2
        %v1453 = vadd.f32 %v1451, %v1452
        %v1454 = vrot.slane %v1453, 1
        %v1455 = vadd.f32 %v1453, %v1454
        %v1456 = vrot.slane %v1410, 4
        %v1457 = vadd.f32 %v1410, %v1456
        %v1458 = vrot.slane %v1457, 2
        %v1459 = vadd.f32 %v1457, %v1458
        %v1460 = vrot.slane %v1459, 1
        %v1461 = vadd.f32 %v1459, %v1460
        %v1462 = vrot.slane %v1411, 4
        %v1463 = vadd.f32 %v1411, %v1462
        %v1464 = vrot.slane %v1463, 2
        %v1465 = vadd.f32 %v1463, %v1464
        %v1466 = vrot.slane %v1465, 1
        %v1467 = vadd.f32 %v1465, %v1466
        %v1468 = vrot.slane %v1412, 4
        %v1469 = vadd.f32 %v1412, %v1468
        %v1470 = vrot.slane %v1469, 2
        %v1471 = vadd.f32 %v1469, %v1470
        %v1472 = vrot.slane %v1471, 1
        %v1473 = vadd.f32 %v1471, %v1472
        %v1474 = vrot.slane %v1413, 4
        %v1475 = vadd.f32 %v1413, %v1474
        %v1476 = vrot.slane %v1475, 2
        %v1477 = vadd.f32 %v1475, %v1476
        %v1478 = vrot.slane %v1477, 1
        %v1479 = vadd.f32 %v1477, %v1478
        %v1480 = vrot.slane %v1414, 4
        %v1481 = vadd.f32 %v1414, %v1480
        %v1482 = vrot.slane %v1481, 2
        %v1483 = vadd.f32 %v1481, %v1482
        %v1484 = vrot.slane %v1483, 1
        %v1485 = vadd.f32 %v1483, %v1484
        %v1486 = vrot.slane %v1415, 4
        %v1487 = vadd.f32 %v1415, %v1486
        %v1488 = vrot.slane %v1487, 2
        %v1489 = vadd.f32 %v1487, %v1488
        %v1490 = vrot.slane %v1489, 1
        %v1491 = vadd.f32 %v1489, %v1490
        %v1492 = vrot.slane %v1416, 4
        %v1493 = vadd.f32 %v1416, %v1492
        %v1494 = vrot.slane %v1493, 2
        %v1495 = vadd.f32 %v1493, %v1494
        %v1496 = vrot.slane %v1495, 1
        %v1497 = vadd.f32 %v1495, %v1496
        %v1498 = vrot.slane %v1417, 4
        %v1499 = vadd.f32 %v1417, %v1498
        %v1500 = vrot.slane %v1499, 2
        %v1501 = vadd.f32 %v1499, %v1500
        %v1502 = vrot.slane %v1501, 1
        %v1503 = vadd.f32 %v1501, %v1502
        %v1504 = vrot.slane %v1418, 4
        %v1505 = vadd.f32 %v1418, %v1504
        %v1506 = vrot.slane %v1505, 2
        %v1507 = vadd.f32 %v1505, %v1506
        %v1508 = vrot.slane %v1507, 1
        %v1509 = vadd.f32 %v1507, %v1508
        %v1510 = vrot.slane %v1419, 4
        %v1511 = vadd.f32 %v1419, %v1510
        %v1512 = vrot.slane %v1511, 2
        %v1513 = vadd.f32 %v1511, %v1512
        %v1514 = vrot.slane %v1513, 1
        %v1515 = vadd.f32 %v1513, %v1514
        %v1516 = vmul.f32 %v1425, %v1373
        %v1517 = vmul.f32 %v1431, %v1375
        %v1518 = vmul.f32 %v1437, %v1377
        %v1519 = vmul.f32 %v1443, %v1379
        %v1520 = vmul.f32 %v1449, %v1381
        %v1521 = vmul.f32 %v1455, %v1383
        %v1522 = vmul.f32 %v1461, %v1385
        %v1523 = vmul.f32 %v1467, %v1387
        %v1524 = vmul.f32 %v1473, %v1389
        %v1525 = vmul.f32 %v1479, %v1391
        %v1526 = vmul.f32 %v1485, %v1393
        %v1527 = vmul.f32 %v1491, %v1395
        %v1528 = vmul.f32 %v1497, %v1397
        %v1529 = vmul.f32 %v1503, %v1399
        %v1530 = vmul.f32 %v1509, %v1401
        %v1531 = vmul.f32 %v1515, %v1403
        %v1532 = vmul.f32 %v1245, %v406
        %v1533 = vmul.f32 %v1247, %v407
        %v1534 = vmul.f32 %v1249, %v406
        %v1535 = vmul.f32 %v1251, %v407
        %v1536 = vmul.f32 %v1253, %v406
        %v1537 = vmul.f32 %v1255, %v407
        %v1538 = vmul.f32 %v1257, %v406
        %v1539 = vmul.f32 %v1259, %v407
        %v1540 = vmul.f32 %v1261, %v406
        %v1541 = vmul.f32 %v1263, %v407
        %v1542 = vmul.f32 %v1265, %v406
        %v1543 = vmul.f32 %v1267, %v407
        %v1544 = vmul.f32 %v1269, %v406
        %v1545 = vmul.f32 %v1271, %v407
        %v1546 = vmul.f32 %v1273, %v406
        %v1547 = vmul.f32 %v1275, %v407
        %v1548 = vrot.slane %v1532, 4
        %v1549 = vadd.f32 %v1532, %v1548
        %v1550 = vrot.slane %v1549, 2
        %v1551 = vadd.f32 %v1549, %v1550
        %v1552 = vrot.slane %v1551, 1
        %v1553 = vadd.f32 %v1551, %v1552
        %v1554 = vrot.slane %v1533, 4
        %v1555 = vadd.f32 %v1533, %v1554
        %v1556 = vrot.slane %v1555, 2
        %v1557 = vadd.f32 %v1555, %v1556
        %v1558 = vrot.slane %v1557, 1
        %v1559 = vadd.f32 %v1557, %v1558
        %v1560 = vrot.slane %v1534, 4
        %v1561 = vadd.f32 %v1534, %v1560
        %v1562 = vrot.slane %v1561, 2
        %v1563 = vadd.f32 %v1561, %v1562
        %v1564 = vrot.slane %v1563, 1
        %v1565 = vadd.f32 %v1563, %v1564
        %v1566 = vrot.slane %v1535, 4
        %v1567 = vadd.f32 %v1535, %v1566
        %v1568 = vrot.slane %v1567, 2
        %v1569 = vadd.f32 %v1567, %v1568
        %v1570 = vrot.slane %v1569, 1
        %v1571 = vadd.f32 %v1569, %v1570
        %v1572 = vrot.slane %v1536, 4
        %v1573 = vadd.f32 %v1536, %v1572
        %v1574 = vrot.slane %v1573, 2
        %v1575 = vadd.f32 %v1573, %v1574
        %v1576 = vrot.slane %v1575, 1
        %v1577 = vadd.f32 %v1575, %v1576
        %v1578 = vrot.slane %v1537, 4
        %v1579 = vadd.f32 %v1537, %v1578
        %v1580 = vrot.slane %v1579, 2
        %v1581 = vadd.f32 %v1579, %v1580
        %v1582 = vrot.slane %v1581, 1
        %v1583 = vadd.f32 %v1581, %v1582
        %v1584 = vrot.slane %v1538, 4
        %v1585 = vadd.f32 %v1538, %v1584
        %v1586 = vrot.slane %v1585, 2
        %v1587 = vadd.f32 %v1585, %v1586
        %v1588 = vrot.slane %v1587, 1
        %v1589 = vadd.f32 %v1587, %v1588
        %v1590 = vrot.slane %v1539, 4
        %v1591 = vadd.f32 %v1539, %v1590
        %v1592 = vrot.slane %v1591, 2
        %v1593 = vadd.f32 %v1591, %v1592
        %v1594 = vrot.slane %v1593, 1
        %v1595 = vadd.f32 %v1593, %v1594
        %v1596 = vrot.slane %v1540, 4
        %v1597 = vadd.f32 %v1540, %v1596
        %v1598 = vrot.slane %v1597, 2
        %v1599 = vadd.f32 %v1597, %v1598
        %v1600 = vrot.slane %v1599, 1
        %v1601 = vadd.f32 %v1599, %v1600
        %v1602 = vrot.slane %v1541, 4
        %v1603 = vadd.f32 %v1541, %v1602
        %v1604 = vrot.slane %v1603, 2
        %v1605 = vadd.f32 %v1603, %v1604
        %v1606 = vrot.slane %v1605, 1
        %v1607 = vadd.f32 %v1605, %v1606
        %v1608 = vrot.slane %v1542, 4
        %v1609 = vadd.f32 %v1542, %v1608
        %v1610 = vrot.slane %v1609, 2
        %v1611 = vadd.f32 %v1609, %v1610
        %v1612 = vrot.slane %v1611, 1
        %v1613 = vadd.f32 %v1611, %v1612
        %v1614 = vrot.slane %v1543, 4
        %v1615 = vadd.f32 %v1543, %v1614
        %v1616 = vrot.slane %v1615, 2
        %v1617 = vadd.f32 %v1615, %v1616
        %v1618 = vrot.slane %v1617, 1
        %v1619 = vadd.f32 %v1617, %v1618
        %v1620 = vrot.slane %v1544, 4
        %v1621 = vadd.f32 %v1544, %v1620
        %v1622 = vrot.slane %v1621, 2
        %v1623 = vadd.f32 %v1621, %v1622
        %v1624 = vrot.slane %v1623, 1
        %v1625 = vadd.f32 %v1623, %v1624
        %v1626 = vrot.slane %v1545, 4
        %v1627 = vadd.f32 %v1545, %v1626
        %v1628 = vrot.slane %v1627, 2
        %v1629 = vadd.f32 %v1627, %v1628
        %v1630 = vrot.slane %v1629, 1
        %v1631 = vadd.f32 %v1629, %v1630
        %v1632 = vrot.slane %v1546, 4
        %v1633 = vadd.f32 %v1546, %v1632
        %v1634 = vrot.slane %v1633, 2
        %v1635 = vadd.f32 %v1633, %v1634
        %v1636 = vrot.slane %v1635, 1
        %v1637 = vadd.f32 %v1635, %v1636
        %v1638 = vrot.slane %v1547, 4
        %v1639 = vadd.f32 %v1547, %v1638
        %v1640 = vrot.slane %v1639, 2
        %v1641 = vadd.f32 %v1639, %v1640
        %v1642 = vrot.slane %v1641, 1
        %v1643 = vadd.f32 %v1641, %v1642
        %v1644 = vmul.f32 %v1553, %v1373
        %v1645 = vmul.f32 %v1559, %v1375
        %v1646 = vmul.f32 %v1565, %v1377
        %v1647 = vmul.f32 %v1571, %v1379
        %v1648 = vmul.f32 %v1577, %v1381
        %v1649 = vmul.f32 %v1583, %v1383
        %v1650 = vmul.f32 %v1589, %v1385
        %v1651 = vmul.f32 %v1595, %v1387
        %v1652 = vmul.f32 %v1601, %v1389
        %v1653 = vmul.f32 %v1607, %v1391
        %v1654 = vmul.f32 %v1613, %v1393
        %v1655 = vmul.f32 %v1619, %v1395
        %v1656 = vmul.f32 %v1625, %v1397
        %v1657 = vmul.f32 %v1631, %v1399
        %v1658 = vmul.f32 %v1637, %v1401
        %v1659 = vmul.f32 %v1643, %v1403
        %v1660 = vmul.f32 %v1245, %v448
        %v1661 = vmul.f32 %v1247, %v449
        %v1662 = vmul.f32 %v1249, %v448
        %v1663 = vmul.f32 %v1251, %v449
        %v1664 = vmul.f32 %v1253, %v448
        %v1665 = vmul.f32 %v1255, %v449
        %v1666 = vmul.f32 %v1257, %v448
        %v1667 = vmul.f32 %v1259, %v449
        %v1668 = vmul.f32 %v1261, %v448
        %v1669 = vmul.f32 %v1263, %v449
        %v1670 = vmul.f32 %v1265, %v448
        %v1671 = vmul.f32 %v1267, %v449
        %v1672 = vmul.f32 %v1269, %v448
        %v1673 = vmul.f32 %v1271, %v449
        %v1674 = vmul.f32 %v1273, %v448
        %v1675 = vmul.f32 %v1275, %v449
        %v1676 = vrot.slane %v1660, 4
        %v1677 = vadd.f32 %v1660, %v1676
        %v1678 = vrot.slane %v1677, 2
        %v1679 = vadd.f32 %v1677, %v1678
        %v1680 = vrot.slane %v1679, 1
        %v1681 = vadd.f32 %v1679, %v1680
        %v1682 = vrot.slane %v1661, 4
        %v1683 = vadd.f32 %v1661, %v1682
        %v1684 = vrot.slane %v1683, 2
        %v1685 = vadd.f32 %v1683, %v1684
        %v1686 = vrot.slane %v1685, 1
        %v1687 = vadd.f32 %v1685, %v1686
        %v1688 = vrot.slane %v1662, 4
        %v1689 = vadd.f32 %v1662, %v1688
        %v1690 = vrot.slane %v1689, 2
        %v1691 = vadd.f32 %v1689, %v1690
        %v1692 = vrot.slane %v1691, 1
        %v1693 = vadd.f32 %v1691, %v1692
        %v1694 = vrot.slane %v1663, 4
        %v1695 = vadd.f32 %v1663, %v1694
        %v1696 = vrot.slane %v1695, 2
        %v1697 = vadd.f32 %v1695, %v1696
        %v1698 = vrot.slane %v1697, 1
        %v1699 = vadd.f32 %v1697, %v1698
        %v1700 = vrot.slane %v1664, 4
        %v1701 = vadd.f32 %v1664, %v1700
        %v1702 = vrot.slane %v1701, 2
        %v1703 = vadd.f32 %v1701, %v1702
        %v1704 = vrot.slane %v1703, 1
        %v1705 = vadd.f32 %v1703, %v1704
        %v1706 = vrot.slane %v1665, 4
        %v1707 = vadd.f32 %v1665, %v1706
        %v1708 = vrot.slane %v1707, 2
        %v1709 = vadd.f32 %v1707, %v1708
        %v1710 = vrot.slane %v1709, 1
        %v1711 = vadd.f32 %v1709, %v1710
        %v1712 = vrot.slane %v1666, 4
        %v1713 = vadd.f32 %v1666, %v1712
        %v1714 = vrot.slane %v1713, 2
        %v1715 = vadd.f32 %v1713, %v1714
        %v1716 = vrot.slane %v1715, 1
        %v1717 = vadd.f32 %v1715, %v1716
        %v1718 = vrot.slane %v1667, 4
        %v1719 = vadd.f32 %v1667, %v1718
        %v1720 = vrot.slane %v1719, 2
        %v1721 = vadd.f32 %v1719, %v1720
        %v1722 = vrot.slane %v1721, 1
        %v1723 = vadd.f32 %v1721, %v1722
        %v1724 = vrot.slane %v1668, 4
        %v1725 = vadd.f32 %v1668, %v1724
        %v1726 = vrot.slane %v1725, 2
        %v1727 = vadd.f32 %v1725, %v1726
        %v1728 = vrot.slane %v1727, 1
        %v1729 = vadd.f32 %v1727, %v1728
        %v1730 = vrot.slane %v1669, 4
        %v1731 = vadd.f32 %v1669, %v1730
        %v1732 = vrot.slane %v1731, 2
        %v1733 = vadd.f32 %v1731, %v1732
        %v1734 = vrot.slane %v1733, 1
        %v1735 = vadd.f32 %v1733, %v1734
        %v1736 = vrot.slane %v1670, 4
        %v1737 = vadd.f32 %v1670, %v1736
        %v1738 = vrot.slane %v1737, 2
        %v1739 = vadd.f32 %v1737, %v1738
        %v1740 = vrot.slane %v1739, 1
        %v1741 = vadd.f32 %v1739, %v1740
        %v1742 = vrot.slane %v1671, 4
        %v1743 = vadd.f32 %v1671, %v1742
        %v1744 = vrot.slane %v1743, 2
        %v1745 = vadd.f32 %v1743, %v1744
        %v1746 = vrot.slane %v1745, 1
        %v1747 = vadd.f32 %v1745, %v1746
        %v1748 = vrot.slane %v1672, 4
        %v1749 = vadd.f32 %v1672, %v1748
        %v1750 = vrot.slane %v1749, 2
        %v1751 = vadd.f32 %v1749, %v1750
        %v1752 = vrot.slane %v1751, 1
        %v1753 = vadd.f32 %v1751, %v1752
        %v1754 = vrot.slane %v1673, 4
        %v1755 = vadd.f32 %v1673, %v1754
        %v1756 = vrot.slane %v1755, 2
        %v1757 = vadd.f32 %v1755, %v1756
        %v1758 = vrot.slane %v1757, 1
        %v1759 = vadd.f32 %v1757, %v1758
        %v1760 = vrot.slane %v1674, 4
        %v1761 = vadd.f32 %v1674, %v1760
        %v1762 = vrot.slane %v1761, 2
        %v1763 = vadd.f32 %v1761, %v1762
        %v1764 = vrot.slane %v1763, 1
        %v1765 = vadd.f32 %v1763, %v1764
        %v1766 = vrot.slane %v1675, 4
        %v1767 = vadd.f32 %v1675, %v1766
        %v1768 = vrot.slane %v1767, 2
        %v1769 = vadd.f32 %v1767, %v1768
        %v1770 = vrot.slane %v1769, 1
        %v1771 = vadd.f32 %v1769, %v1770
        %v1772 = vmul.f32 %v1681, %v1373
        %v1773 = vmul.f32 %v1687, %v1375
        %v1774 = vmul.f32 %v1693, %v1377
        %v1775 = vmul.f32 %v1699, %v1379
        %v1776 = vmul.f32 %v1705, %v1381
        %v1777 = vmul.f32 %v1711, %v1383
        %v1778 = vmul.f32 %v1717, %v1385
        %v1779 = vmul.f32 %v1723, %v1387
        %v1780 = vmul.f32 %v1729, %v1389
        %v1781 = vmul.f32 %v1735, %v1391
        %v1782 = vmul.f32 %v1741, %v1393
        %v1783 = vmul.f32 %v1747, %v1395
        %v1784 = vmul.f32 %v1753, %v1397
        %v1785 = vmul.f32 %v1759, %v1399
        %v1786 = vmul.f32 %v1765, %v1401
        %v1787 = vmul.f32 %v1771, %v1403
        %v1788 = vmul.f32 %v1245, %v490
        %v1789 = vmul.f32 %v1247, %v491
        %v1790 = vmul.f32 %v1249, %v490
        %v1791 = vmul.f32 %v1251, %v491
        %v1792 = vmul.f32 %v1253, %v490
        %v1793 = vmul.f32 %v1255, %v491
        %v1794 = vmul.f32 %v1257, %v490
        %v1795 = vmul.f32 %v1259, %v491
        %v1796 = vmul.f32 %v1261, %v490
        %v1797 = vmul.f32 %v1263, %v491
        %v1798 = vmul.f32 %v1265, %v490
        %v1799 = vmul.f32 %v1267, %v491
        %v1800 = vmul.f32 %v1269, %v490
        %v1801 = vmul.f32 %v1271, %v491
        %v1802 = vmul.f32 %v1273, %v490
        %v1803 = vmul.f32 %v1275, %v491
        %v1804 = vrot.slane %v1788, 4
        %v1805 = vadd.f32 %v1788, %v1804
        %v1806 = vrot.slane %v1805, 2
        %v1807 = vadd.f32 %v1805, %v1806
        %v1808 = vrot.slane %v1807, 1
        %v1809 = vadd.f32 %v1807, %v1808
        %v1810 = vrot.slane %v1789, 4
        %v1811 = vadd.f32 %v1789, %v1810
        %v1812 = vrot.slane %v1811, 2
        %v1813 = vadd.f32 %v1811, %v1812
        %v1814 = vrot.slane %v1813, 1
        %v1815 = vadd.f32 %v1813, %v1814
        %v1816 = vrot.slane %v1790, 4
        %v1817 = vadd.f32 %v1790, %v1816
        %v1818 = vrot.slane %v1817, 2
        %v1819 = vadd.f32 %v1817, %v1818
        %v1820 = vrot.slane %v1819, 1
        %v1821 = vadd.f32 %v1819, %v1820
        %v1822 = vrot.slane %v1791, 4
        %v1823 = vadd.f32 %v1791, %v1822
        %v1824 = vrot.slane %v1823, 2
        %v1825 = vadd.f32 %v1823, %v1824
        %v1826 = vrot.slane %v1825, 1
        %v1827 = vadd.f32 %v1825, %v1826
        %v1828 = vrot.slane %v1792, 4
        %v1829 = vadd.f32 %v1792, %v1828
        %v1830 = vrot.slane %v1829, 2
        %v1831 = vadd.f32 %v1829, %v1830
        %v1832 = vrot.slane %v1831, 1
        %v1833 = vadd.f32 %v1831, %v1832
        %v1834 = vrot.slane %v1793, 4
        %v1835 = vadd.f32 %v1793, %v1834
        %v1836 = vrot.slane %v1835, 2
        %v1837 = vadd.f32 %v1835, %v1836
        %v1838 = vrot.slane %v1837, 1
        %v1839 = vadd.f32 %v1837, %v1838
        %v1840 = vrot.slane %v1794, 4
        %v1841 = vadd.f32 %v1794, %v1840
        %v1842 = vrot.slane %v1841, 2
        %v1843 = vadd.f32 %v1841, %v1842
        %v1844 = vrot.slane %v1843, 1
        %v1845 = vadd.f32 %v1843, %v1844
        %v1846 = vrot.slane %v1795, 4
        %v1847 = vadd.f32 %v1795, %v1846
        %v1848 = vrot.slane %v1847, 2
        %v1849 = vadd.f32 %v1847, %v1848
        %v1850 = vrot.slane %v1849, 1
        %v1851 = vadd.f32 %v1849, %v1850
        %v1852 = vrot.slane %v1796, 4
        %v1853 = vadd.f32 %v1796, %v1852
        %v1854 = vrot.slane %v1853, 2
        %v1855 = vadd.f32 %v1853, %v1854
        %v1856 = vrot.slane %v1855, 1
        %v1857 = vadd.f32 %v1855, %v1856
        %v1858 = vrot.slane %v1797, 4
        %v1859 = vadd.f32 %v1797, %v1858
        %v1860 = vrot.slane %v1859, 2
        %v1861 = vadd.f32 %v1859, %v1860
        %v1862 = vrot.slane %v1861, 1
        %v1863 = vadd.f32 %v1861, %v1862
        %v1864 = vrot.slane %v1798, 4
        %v1865 = vadd.f32 %v1798, %v1864
        %v1866 = vrot.slane %v1865, 2
        %v1867 = vadd.f32 %v1865, %v1866
        %v1868 = vrot.slane %v1867, 1
        %v1869 = vadd.f32 %v1867, %v1868
        %v1870 = vrot.slane %v1799, 4
        %v1871 = vadd.f32 %v1799, %v1870
        %v1872 = vrot.slane %v1871, 2
        %v1873 = vadd.f32 %v1871, %v1872
        %v1874 = vrot.slane %v1873, 1
        %v1875 = vadd.f32 %v1873, %v1874
        %v1876 = vrot.slane %v1800, 4
        %v1877 = vadd.f32 %v1800, %v1876
        %v1878 = vrot.slane %v1877, 2
        %v1879 = vadd.f32 %v1877, %v1878
        %v1880 = vrot.slane %v1879, 1
        %v1881 = vadd.f32 %v1879, %v1880
        %v1882 = vrot.slane %v1801, 4
        %v1883 = vadd.f32 %v1801, %v1882
        %v1884 = vrot.slane %v1883, 2
        %v1885 = vadd.f32 %v1883, %v1884
        %v1886 = vrot.slane %v1885, 1
        %v1887 = vadd.f32 %v1885, %v1886
        %v1888 = vrot.slane %v1802, 4
        %v1889 = vadd.f32 %v1802, %v1888
        %v1890 = vrot.slane %v1889, 2
        %v1891 = vadd.f32 %v1889, %v1890
        %v1892 = vrot.slane %v1891, 1
        %v1893 = vadd.f32 %v1891, %v1892
        %v1894 = vrot.slane %v1803, 4
        %v1895 = vadd.f32 %v1803, %v1894
        %v1896 = vrot.slane %v1895, 2
        %v1897 = vadd.f32 %v1895, %v1896
        %v1898 = vrot.slane %v1897, 1
        %v1899 = vadd.f32 %v1897, %v1898
        %v1900 = vmul.f32 %v1809, %v1373
        %v1901 = vmul.f32 %v1815, %v1375
        %v1902 = vmul.f32 %v1821, %v1377
        %v1903 = vmul.f32 %v1827, %v1379
        %v1904 = vmul.f32 %v1833, %v1381
        %v1905 = vmul.f32 %v1839, %v1383
        %v1906 = vmul.f32 %v1845, %v1385
        %v1907 = vmul.f32 %v1851, %v1387
        %v1908 = vmul.f32 %v1857, %v1389
        %v1909 = vmul.f32 %v1863, %v1391
        %v1910 = vmul.f32 %v1869, %v1393
        %v1911 = vmul.f32 %v1875, %v1395
        %v1912 = vmul.f32 %v1881, %v1397
        %v1913 = vmul.f32 %v1887, %v1399
        %v1914 = vmul.f32 %v1893, %v1401
        %v1915 = vmul.f32 %v1899, %v1403
        %v1916 = vstv %s252
        %v1917 = vmul.f32 %v1916, %v316
        %v1918 = vmul.f32 %v1916, %v317
        %v1919 = vstv %s284
        %v1920 = vmul.f32 %v1919, %v316
        %v1921 = vmul.f32 %v1919, %v317
        %v1922 = vstv %s253
        %v1923 = vmul.f32 %v1922, %v318
        %v1924 = vmul.f32 %v1922, %v319
        %v1925 = vadd.f32 %v1917, %v1923
        %v1926 = vadd.f32 %v1918, %v1924
        %v1927 = vstv %s285
        %v1928 = vmul.f32 %v1927, %v318
        %v1929 = vmul.f32 %v1927, %v319
        %v1930 = vadd.f32 %v1920, %v1928
        %v1931 = vadd.f32 %v1921, %v1929
        %v1932 = vstv %s254
        %v1933 = vmul.f32 %v1932, %v320
        %v1934 = vmul.f32 %v1932, %v321
        %v1935 = vadd.f32 %v1925, %v1933
        %v1936 = vadd.f32 %v1926, %v1934
        %v1937 = vstv %s286
        %v1938 = vmul.f32 %v1937, %v320
        %v1939 = vmul.f32 %v1937, %v321
        %v1940 = vadd.f32 %v1930, %v1938
        %v1941 = vadd.f32 %v1931, %v1939
        %v1942 = vstv %s255
        %v1943 = vmul.f32 %v1942, %v322
        %v1944 = vmul.f32 %v1942, %v323
        %v1945 = vadd.f32 %v1935, %v1943
        %v1946 = vadd.f32 %v1936, %v1944
        %v1947 = vstv %s287
        %v1948 = vmul.f32 %v1947, %v322
        %v1949 = vmul.f32 %v1947, %v323
        %v1950 = vadd.f32 %v1940, %v1948
        %v1951 = vadd.f32 %v1941, %v1949
        %v1952 = vstv %s304
        %v1953 = vadd.f32 %v1945, %v1952
        %v1954 = vadd.f32 %v1946, %v1952
        %v1955 = vstv %s312
        %v1956 = vadd.f32 %v1950, %v1955
        %v1957 = vadd.f32 %v1951, %v1955
        %v1958 = vstv %s256
        %v1959 = vmul.f32 %v1958, %v316
        %v1960 = vmul.f32 %v1958, %v317
        %v1961 = vstv %s288
        %v1962 = vmul.f32 %v1961, %v316
        %v1963 = vmul.f32 %v1961, %v317
        %v1964 = vstv %s257
        %v1965 = vmul.f32 %v1964, %v318
        %v1966 = vmul.f32 %v1964, %v319
        %v1967 = vadd.f32 %v1959, %v1965
        %v1968 = vadd.f32 %v1960, %v1966
        %v1969 = vstv %s289
        %v1970 = vmul.f32 %v1969, %v318
        %v1971 = vmul.f32 %v1969, %v319
        %v1972 = vadd.f32 %v1962, %v1970
        %v1973 = vadd.f32 %v1963, %v1971
        %v1974 = vstv %s258
        %v1975 = vmul.f32 %v1974, %v320
        %v1976 = vmul.f32 %v1974, %v321
        %v1977 = vadd.f32 %v1967, %v1975
        %v1978 = vadd.f32 %v1968, %v1976
        %v1979 = vstv %s290
        %v1980 = vmul.f32 %v1979, %v320
        %v1981 = vmul.f32 %v1979, %v321
        %v1982 = vadd.f32 %v1972, %v1980
        %v1983 = vadd.f32 %v1973, %v1981
        %v1984 = vstv %s259
        %v1985 = vmul.f32 %v1984, %v322
        %v1986 = vmul.f32 %v1984, %v323
        %v1987 = vadd.f32 %v1977, %v1985
        %v1988 = vadd.f32 %v1978, %v1986
        %v1989 = vstv %s291
        %v1990 = vmul.f32 %v1989, %v322
        %v1991 = vmul.f32 %v1989, %v323
        %v1992 = vadd.f32 %v1982, %v1990
        %v1993 = vadd.f32 %v1983, %v1991
        %v1994 = vstv %s305
        %v1995 = vadd.f32 %v1987, %v1994
        %v1996 = vadd.f32 %v1988, %v1994
        %v1997 = vstv %s313
        %v1998 = vadd.f32 %v1992, %v1997
        %v1999 = vadd.f32 %v1993, %v1997
        %v2000 = vstv %s260
        %v2001 = vmul.f32 %v2000, %v316
        %v2002 = vmul.f32 %v2000, %v317
        %v2003 = vstv %s292
        %v2004 = vmul.f32 %v2003, %v316
        %v2005 = vmul.f32 %v2003, %v317
        %v2006 = vstv %s261
        %v2007 = vmul.f32 %v2006, %v318
        %v2008 = vmul.f32 %v2006, %v319
        %v2009 = vadd.f32 %v2001, %v2007
        %v2010 = vadd.f32 %v2002, %v2008
        %v2011 = vstv %s293
        %v2012 = vmul.f32 %v2011, %v318
        %v2013 = vmul.f32 %v2011, %v319
        %v2014 = vadd.f32 %v2004, %v2012
        %v2015 = vadd.f32 %v2005, %v2013
        %v2016 = vstv %s262
        %v2017 = vmul.f32 %v2016, %v320
        %v2018 = vmul.f32 %v2016, %v321
        %v2019 = vadd.f32 %v2009, %v2017
        %v2020 = vadd.f32 %v2010, %v2018
        %v2021 = vstv %s294
        %v2022 = vmul.f32 %v2021, %v320
        %v2023 = vmul.f32 %v2021, %v321
        %v2024 = vadd.f32 %v2014, %v2022
        %v2025 = vadd.f32 %v2015, %v2023
        %v2026 = vstv %s263
        %v2027 = vmul.f32 %v2026, %v322
        %v2028 = vmul.f32 %v2026, %v323
        %v2029 = vadd.f32 %v2019, %v2027
        %v2030 = vadd.f32 %v2020, %v2028
        %v2031 = vstv %s295
        %v2032 = vmul.f32 %v2031, %v322
        %v2033 = vmul.f32 %v2031, %v323
        %v2034 = vadd.f32 %v2024, %v2032
        %v2035 = vadd.f32 %v2025, %v2033
        %v2036 = vstv %s306
        %v2037 = vadd.f32 %v2029, %v2036
        %v2038 = vadd.f32 %v2030, %v2036
        %v2039 = vstv %s314
        %v2040 = vadd.f32 %v2034, %v2039
        %v2041 = vadd.f32 %v2035, %v2039
        %v2042 = vstv %s264
        %v2043 = vmul.f32 %v2042, %v316
        %v2044 = vmul.f32 %v2042, %v317
        %v2045 = vstv %s296
        %v2046 = vmul.f32 %v2045, %v316
        %v2047 = vmul.f32 %v2045, %v317
        %v2048 = vstv %s265
        %v2049 = vmul.f32 %v2048, %v318
        %v2050 = vmul.f32 %v2048, %v319
        %v2051 = vadd.f32 %v2043, %v2049
        %v2052 = vadd.f32 %v2044, %v2050
        %v2053 = vstv %s297
        %v2054 = vmul.f32 %v2053, %v318
        %v2055 = vmul.f32 %v2053, %v319
        %v2056 = vadd.f32 %v2046, %v2054
        %v2057 = vadd.f32 %v2047, %v2055
        %v2058 = vstv %s266
        %v2059 = vmul.f32 %v2058, %v320
        %v2060 = vmul.f32 %v2058, %v321
        %v2061 = vadd.f32 %v2051, %v2059
        %v2062 = vadd.f32 %v2052, %v2060
        %v2063 = vstv %s298
        %v2064 = vmul.f32 %v2063, %v320
        %v2065 = vmul.f32 %v2063, %v321
        %v2066 = vadd.f32 %v2056, %v2064
        %v2067 = vadd.f32 %v2057, %v2065
        %v2068 = vstv %s267
        %v2069 = vmul.f32 %v2068, %v322
        %v2070 = vmul.f32 %v2068, %v323
        %v2071 = vadd.f32 %v2061, %v2069
        %v2072 = vadd.f32 %v2062, %v2070
        %v2073 = vstv %s299
        %v2074 = vmul.f32 %v2073, %v322
        %v2075 = vmul.f32 %v2073, %v323
        %v2076 = vadd.f32 %v2066, %v2074
        %v2077 = vadd.f32 %v2067, %v2075
        %v2078 = vstv %s307
        %v2079 = vadd.f32 %v2071, %v2078
        %v2080 = vadd.f32 %v2072, %v2078
        %v2081 = vstv %s315
        %v2082 = vadd.f32 %v2076, %v2081
        %v2083 = vadd.f32 %v2077, %v2081
        %v2086 = vcombine.low %v1953, %v1954
        %v2087 = vcombine.high %v1953, %v1954
        %v2089 = vunpack.c.l.s4 1966171168
        %v2090 = vunpack.c.0.s8 %v2089
        %v2091 = vlaneseq
        %v2092 = vshrl.u32 %v2091, 7
        %v2093 = vsub.s32 %v2090, %v2092
        %v2094 = vrot.slane %v2086, %v2093
        %v2096 = vunpack.c.l.s4 1966171168
        %v2097 = vunpack.c.0.s8 %v2096
        %v2098 = vlaneseq
        %v2099 = vshrl.u32 %v2098, 7
        %v2100 = vsub.s32 %v2097, %v2099
        %v2101 = vrot.slane %v2087, %v2100
        %v2102 = vcombine.high %v2094, %v2094
        %v2103 = vcombine.high %v2101, %v2101
        %v2105 = vunpack.c.l.s4 1966171168
        %v2106 = vunpack.c.0.s8 %v2105
        %v2107 = vlaneseq
        %v2108 = vshrl.u32 %v2107, 7
        %v2109 = vsub.s32 %v2106, %v2108
        %v2110 = vrot.slane %v2094, %v2109
        %v2112 = vunpack.c.l.s4 1966171168
        %v2113 = vunpack.c.0.s8 %v2112
        %v2114 = vlaneseq
        %v2115 = vshrl.u32 %v2114, 7
        %v2116 = vsub.s32 %v2113, %v2115
        %v2117 = vrot.slane %v2101, %v2116
        %v2119 = vunpack.c.l.s4 1966171168
        %v2120 = vunpack.c.0.s8 %v2119
        %v2121 = vlaneseq
        %v2122 = vshrl.u32 %v2121, 7
        %v2123 = vsub.s32 %v2120, %v2122
        %v2124 = vrot.slane %v2102, %v2123
        %v2126 = vunpack.c.l.s4 1966171168
        %v2127 = vunpack.c.0.s8 %v2126
        %v2128 = vlaneseq
        %v2129 = vshrl.u32 %v2128, 7
        %v2130 = vsub.s32 %v2127, %v2129
        %v2131 = vrot.slane %v2103, %v2130
        %v2132 = vcombine.high %v2110, %v2110
        %v2133 = vcombine.high %v2117, %v2117
        %v2134 = vcombine.high %v2124, %v2124
        %v2135 = vcombine.high %v2131, %v2131
        %v2136 = vlaneseq
        %v2137 = vshrl.u32 %v2136, 7
        %v2138 = vsub.s32 0, %v2137
        %v2139 = vrot.slane %v2110, %v2138
        %v2140 = vlaneseq
        %v2141 = vshrl.u32 %v2140, 7
        %v2142 = vsub.s32 1, %v2141
        %v2143 = vrot.slane %v2110, %v2142
        %v2144 = vlaneseq
        %v2145 = vshrl.u32 %v2144, 7
        %v2146 = vsub.s32 0, %v2145
        %v2147 = vrot.slane %v2124, %v2146
        %v2148 = vlaneseq
        %v2149 = vshrl.u32 %v2148, 7
        %v2150 = vsub.s32 1, %v2149
        %v2151 = vrot.slane %v2124, %v2150
        %v2152 = vlaneseq
        %v2153 = vshrl.u32 %v2152, 7
        %v2154 = vsub.s32 0, %v2153
        %v2155 = vrot.slane %v2132, %v2154
        %v2156 = vlaneseq
        %v2157 = vshrl.u32 %v2156, 7
        %v2158 = vsub.s32 1, %v2157
        %v2159 = vrot.slane %v2132, %v2158
        %v2160 = vlaneseq
        %v2161 = vshrl.u32 %v2160, 7
        %v2162 = vsub.s32 0, %v2161
        %v2163 = vrot.slane %v2134, %v2162
        %v2164 = vlaneseq
        %v2165 = vshrl.u32 %v2164, 7
        %v2166 = vsub.s32 1, %v2165
        %v2167 = vrot.slane %v2134, %v2166
        %v2168 = vlaneseq
        %v2169 = vshrl.u32 %v2168, 7
        %v2170 = vsub.s32 0, %v2169
        %v2171 = vrot.slane %v2117, %v2170
        %v2172 = vlaneseq
        %v2173 = vshrl.u32 %v2172, 7
        %v2174 = vsub.s32 1, %v2173
        %v2175 = vrot.slane %v2117, %v2174
        %v2176 = vlaneseq
        %v2177 = vshrl.u32 %v2176, 7
        %v2178 = vsub.s32 0, %v2177
        %v2179 = vrot.slane %v2131, %v2178
        %v2180 = vlaneseq
        %v2181 = vshrl.u32 %v2180, 7
        %v2182 = vsub.s32 1, %v2181
        %v2183 = vrot.slane %v2131, %v2182
        %v2184 = vlaneseq
        %v2185 = vshrl.u32 %v2184, 7
        %v2186 = vsub.s32 0, %v2185
        %v2187 = vrot.slane %v2133, %v2186
        %v2188 = vlaneseq
        %v2189 = vshrl.u32 %v2188, 7
        %v2190 = vsub.s32 1, %v2189
        %v2191 = vrot.slane %v2133, %v2190
        %v2192 = vlaneseq
        %v2193 = vshrl.u32 %v2192, 7
        %v2194 = vsub.s32 0, %v2193
        %v2195 = vrot.slane %v2135, %v2194
        %v2196 = vlaneseq
        %v2197 = vshrl.u32 %v2196, 7
        %v2198 = vsub.s32 1, %v2197
        %v2199 = vrot.slane %v2135, %v2198
        %v2216 = vmul.f32 %v2139, %v316
        %v2217 = vmul.f32 %v2143, %v317
        %v2218 = vmul.f32 %v2147, %v316
        %v2219 = vmul.f32 %v2151, %v317
        %v2220 = vmul.f32 %v2155, %v316
        %v2221 = vmul.f32 %v2159, %v317
        %v2222 = vmul.f32 %v2163, %v316
        %v2223 = vmul.f32 %v2167, %v317
        %v2224 = vmul.f32 %v2171, %v316
        %v2225 = vmul.f32 %v2175, %v317
        %v2226 = vmul.f32 %v2179, %v316
        %v2227 = vmul.f32 %v2183, %v317
        %v2228 = vmul.f32 %v2187, %v316
        %v2229 = vmul.f32 %v2191, %v317
        %v2230 = vmul.f32 %v2195, %v316
        %v2231 = vmul.f32 %v2199, %v317
        %v2234 = vcombine.low %v1995, %v1996
        %v2235 = vcombine.high %v1995, %v1996
        %v2237 = vunpack.c.l.s4 1966171168
        %v2238 = vunpack.c.0.s8 %v2237
        %v2239 = vlaneseq
        %v2240 = vshrl.u32 %v2239, 7
        %v2241 = vsub.s32 %v2238, %v2240
        %v2242 = vrot.slane %v2234, %v2241
        %v2244 = vunpack.c.l.s4 1966171168
        %v2245 = vunpack.c.0.s8 %v2244
        %v2246 = vlaneseq
        %v2247 = vshrl.u32 %v2246, 7
        %v2248 = vsub.s32 %v2245, %v2247
        %v2249 = vrot.slane %v2235, %v2248
        %v2250 = vcombine.high %v2242, %v2242
        %v2251 = vcombine.high %v2249, %v2249
        %v2253 = vunpack.c.l.s4 1966171168
        %v2254 = vunpack.c.0.s8 %v2253
        %v2255 = vlaneseq
        %v2256 = vshrl.u32 %v2255, 7
        %v2257 = vsub.s32 %v2254, %v2256
        %v2258 = vrot.slane %v2242, %v2257
        %v2260 = vunpack.c.l.s4 1966171168
        %v2261 = vunpack.c.0.s8 %v2260
        %v2262 = vlaneseq
        %v2263 = vshrl.u32 %v2262, 7
        %v2264 = vsub.s32 %v2261, %v2263
        %v2265 = vrot.slane %v2249, %v2264
        %v2267 = vunpack.c.l.s4 1966171168
        %v2268 = vunpack.c.0.s8 %v2267
        %v2269 = vlaneseq
        %v2270 = vshrl.u32 %v2269, 7
        %v2271 = vsub.s32 %v2268, %v2270
        %v2272 = vrot.slane %v2250, %v2271
        %v2274 = vunpack.c.l.s4 1966171168
        %v2275 = vunpack.c.0.s8 %v2274
        %v2276 = vlaneseq
        %v2277 = vshrl.u32 %v2276, 7
        %v2278 = vsub.s32 %v2275, %v2277
        %v2279 = vrot.slane %v2251, %v2278
        %v2280 = vcombine.high %v2258, %v2258
        %v2281 = vcombine.high %v2265, %v2265
        %v2282 = vcombine.high %v2272, %v2272
        %v2283 = vcombine.high %v2279, %v2279
        %v2284 = vlaneseq
        %v2285 = vshrl.u32 %v2284, 7
        %v2286 = vsub.s32 0, %v2285
        %v2287 = vrot.slane %v2258, %v2286
        %v2288 = vlaneseq
        %v2289 = vshrl.u32 %v2288, 7
        %v2290 = vsub.s32 1, %v2289
        %v2291 = vrot.slane %v2258, %v2290
        %v2292 = vlaneseq
        %v2293 = vshrl.u32 %v2292, 7
        %v2294 = vsub.s32 0, %v2293
        %v2295 = vrot.slane %v2272, %v2294
        %v2296 = vlaneseq
        %v2297 = vshrl.u32 %v2296, 7
        %v2298 = vsub.s32 1, %v2297
        %v2299 = vrot.slane %v2272, %v2298
        %v2300 = vlaneseq
        %v2301 = vshrl.u32 %v2300, 7
        %v2302 = vsub.s32 0, %v2301
        %v2303 = vrot.slane %v2280, %v2302
        %v2304 = vlaneseq
        %v2305 = vshrl.u32 %v2304, 7
        %v2306 = vsub.s32 1, %v2305
        %v2307 = vrot.slane %v2280, %v2306
        %v2308 = vlaneseq
        %v2309 = vshrl.u32 %v2308, 7
        %v2310 = vsub.s32 0, %v2309
        %v2311 = vrot.slane %v2282, %v2310
        %v2312 = vlaneseq
        %v2313 = vshrl.u32 %v2312, 7
        %v2314 = vsub.s32 1, %v2313
        %v2315 = vrot.slane %v2282, %v2314
        %v2316 = vlaneseq
        %v2317 = vshrl.u32 %v2316, 7
        %v2318 = vsub.s32 0, %v2317
        %v2319 = vrot.slane %v2265, %v2318
        %v2320 = vlaneseq
        %v2321 = vshrl.u32 %v2320, 7
        %v2322 = vsub.s32 1, %v2321
        %v2323 = vrot.slane %v2265, %v2322
        %v2324 = vlaneseq
        %v2325 = vshrl.u32 %v2324, 7
        %v2326 = vsub.s32 0, %v2325
        %v2327 = vrot.slane %v2279, %v2326
        %v2328 = vlaneseq
        %v2329 = vshrl.u32 %v2328, 7
        %v2330 = vsub.s32 1, %v2329
        %v2331 = vrot.slane %v2279, %v2330
        %v2332 = vlaneseq
        %v2333 = vshrl.u32 %v2332, 7
        %v2334 = vsub.s32 0, %v2333
        %v2335 = vrot.slane %v2281, %v2334
        %v2336 = vlaneseq
        %v2337 = vshrl.u32 %v2336, 7
        %v2338 = vsub.s32 1, %v2337
        %v2339 = vrot.slane %v2281, %v2338
        %v2340 = vlaneseq
        %v2341 = vshrl.u32 %v2340, 7
        %v2342 = vsub.s32 0, %v2341
        %v2343 = vrot.slane %v2283, %v2342
        %v2344 = vlaneseq
        %v2345 = vshrl.u32 %v2344, 7
        %v2346 = vsub.s32 1, %v2345
        %v2347 = vrot.slane %v2283, %v2346
        %v2364 = vmul.f32 %v2287, %v318
        %v2365 = vmul.f32 %v2291, %v319
        %v2366 = vmul.f32 %v2295, %v318
        %v2367 = vmul.f32 %v2299, %v319
        %v2368 = vmul.f32 %v2303, %v318
        %v2369 = vmul.f32 %v2307, %v319
        %v2370 = vmul.f32 %v2311, %v318
        %v2371 = vmul.f32 %v2315, %v319
        %v2372 = vmul.f32 %v2319, %v318
        %v2373 = vmul.f32 %v2323, %v319
        %v2374 = vmul.f32 %v2327, %v318
        %v2375 = vmul.f32 %v2331, %v319
        %v2376 = vmul.f32 %v2335, %v318
        %v2377 = vmul.f32 %v2339, %v319
        %v2378 = vmul.f32 %v2343, %v318
        %v2379 = vmul.f32 %v2347, %v319
        %v2380 = vadd.f32 %v2216, %v2364
        %v2381 = vadd.f32 %v2217, %v2365
        %v2382 = vadd.f32 %v2218, %v2366
        %v2383 = vadd.f32 %v2219, %v2367
        %v2384 = vadd.f32 %v2220, %v2368
        %v2385 = vadd.f32 %v2221, %v2369
        %v2386 = vadd.f32 %v2222, %v2370
        %v2387 = vadd.f32 %v2223, %v2371
        %v2388 = vadd.f32 %v2224, %v2372
        %v2389 = vadd.f32 %v2225, %v2373
        %v2390 = vadd.f32 %v2226, %v2374
        %v2391 = vadd.f32 %v2227, %v2375
        %v2392 = vadd.f32 %v2228, %v2376
        %v2393 = vadd.f32 %v2229, %v2377
        %v2394 = vadd.f32 %v2230, %v2378
        %v2395 = vadd.f32 %v2231, %v2379
        %v2398 = vcombine.low %v2037, %v2038
        %v2399 = vcombine.high %v2037, %v2038
        %v2401 = vunpack.c.l.s4 1966171168
        %v2402 = vunpack.c.0.s8 %v2401
        %v2403 = vlaneseq
        %v2404 = vshrl.u32 %v2403, 7
        %v2405 = vsub.s32 %v2402, %v2404
        %v2406 = vrot.slane %v2398, %v2405
        %v2408 = vunpack.c.l.s4 1966171168
        %v2409 = vunpack.c.0.s8 %v2408
        %v2410 = vlaneseq
        %v2411 = vshrl.u32 %v2410, 7
        %v2412 = vsub.s32 %v2409, %v2411
        %v2413 = vrot.slane %v2399, %v2412
        %v2414 = vcombine.high %v2406, %v2406
        %v2415 = vcombine.high %v2413, %v2413
        %v2417 = vunpack.c.l.s4 1966171168
        %v2418 = vunpack.c.0.s8 %v2417
        %v2419 = vlaneseq
        %v2420 = vshrl.u32 %v2419, 7
        %v2421 = vsub.s32 %v2418, %v2420
        %v2422 = vrot.slane %v2406, %v2421
        %v2424 = vunpack.c.l.s4 1966171168
        %v2425 = vunpack.c.0.s8 %v2424
        %v2426 = vlaneseq
        %v2427 = vshrl.u32 %v2426, 7
        %v2428 = vsub.s32 %v2425, %v2427
        %v2429 = vrot.slane %v2413, %v2428
        %v2431 = vunpack.c.l.s4 1966171168
        %v2432 = vunpack.c.0.s8 %v2431
        %v2433 = vlaneseq
        %v2434 = vshrl.u32 %v2433, 7
        %v2435 = vsub.s32 %v2432, %v2434
        %v2436 = vrot.slane %v2414, %v2435
        %v2438 = vunpack.c.l.s4 1966171168
        %v2439 = vunpack.c.0.s8 %v2438
        %v2440 = vlaneseq
        %v2441 = vshrl.u32 %v2440, 7
        %v2442 = vsub.s32 %v2439, %v2441
        %v2443 = vrot.slane %v2415, %v2442
        %v2444 = vcombine.high %v2422, %v2422
        %v2445 = vcombine.high %v2429, %v2429
        %v2446 = vcombine.high %v2436, %v2436
        %v2447 = vcombine.high %v2443, %v2443
        %v2448 = vlaneseq
        %v2449 = vshrl.u32 %v2448, 7
        %v2450 = vsub.s32 0, %v2449
        %v2451 = vrot.slane %v2422, %v2450
        %v2452 = vlaneseq
        %v2453 = vshrl.u32 %v2452, 7
        %v2454 = vsub.s32 1, %v2453
        %v2455 = vrot.slane %v2422, %v2454
        %v2456 = vlaneseq
        %v2457 = vshrl.u32 %v2456, 7
        %v2458 = vsub.s32 0, %v2457
        %v2459 = vrot.slane %v2436, %v2458
        %v2460 = vlaneseq
        %v2461 = vshrl.u32 %v2460, 7
        %v2462 = vsub.s32 1, %v2461
        %v2463 = vrot.slane %v2436, %v2462
        %v2464 = vlaneseq
        %v2465 = vshrl.u32 %v2464, 7
        %v2466 = vsub.s32 0, %v2465
        %v2467 = vrot.slane %v2444, %v2466
        %v2468 = vlaneseq
        %v2469 = vshrl.u32 %v2468, 7
        %v2470 = vsub.s32 1, %v2469
        %v2471 = vrot.slane %v2444, %v2470
        %v2472 = vlaneseq
        %v2473 = vshrl.u32 %v2472, 7
        %v2474 = vsub.s32 0, %v2473
        %v2475 = vrot.slane %v2446, %v2474
        %v2476 = vlaneseq
        %v2477 = vshrl.u32 %v2476, 7
        %v2478 = vsub.s32 1, %v2477
        %v2479 = vrot.slane %v2446, %v2478
        %v2480 = vlaneseq
        %v2481 = vshrl.u32 %v2480, 7
        %v2482 = vsub.s32 0, %v2481
        %v2483 = vrot.slane %v2429, %v2482
        %v2484 = vlaneseq
        %v2485 = vshrl.u32 %v2484, 7
        %v2486 = vsub.s32 1, %v2485
        %v2487 = vrot.slane %v2429, %v2486
        %v2488 = vlaneseq
        %v2489 = vshrl.u32 %v2488, 7
        %v2490 = vsub.s32 0, %v2489
        %v2491 = vrot.slane %v2443, %v2490
        %v2492 = vlaneseq
        %v2493 = vshrl.u32 %v2492, 7
        %v2494 = vsub.s32 1, %v2493
        %v2495 = vrot.slane %v2443, %v2494
        %v2496 = vlaneseq
        %v2497 = vshrl.u32 %v2496, 7
        %v2498 = vsub.s32 0, %v2497
        %v2499 = vrot.slane %v2445, %v2498
        %v2500 = vlaneseq
        %v2501 = vshrl.u32 %v2500, 7
        %v2502 = vsub.s32 1, %v2501
        %v2503 = vrot.slane %v2445, %v2502
        %v2504 = vlaneseq
        %v2505 = vshrl.u32 %v2504, 7
        %v2506 = vsub.s32 0, %v2505
        %v2507 = vrot.slane %v2447, %v2506
        %v2508 = vlaneseq
        %v2509 = vshrl.u32 %v2508, 7
        %v2510 = vsub.s32 1, %v2509
        %v2511 = vrot.slane %v2447, %v2510
        %v2528 = vmul.f32 %v2451, %v320
        %v2529 = vmul.f32 %v2455, %v321
        %v2530 = vmul.f32 %v2459, %v320
        %v2531 = vmul.f32 %v2463, %v321
        %v2532 = vmul.f32 %v2467, %v320
        %v2533 = vmul.f32 %v2471, %v321
        %v2534 = vmul.f32 %v2475, %v320
        %v2535 = vmul.f32 %v2479, %v321
        %v2536 = vmul.f32 %v2483, %v320
        %v2537 = vmul.f32 %v2487, %v321
        %v2538 = vmul.f32 %v2491, %v320
        %v2539 = vmul.f32 %v2495, %v321
        %v2540 = vmul.f32 %v2499, %v320
        %v2541 = vmul.f32 %v2503, %v321
        %v2542 = vmul.f32 %v2507, %v320
        %v2543 = vmul.f32 %v2511, %v321
        %v2544 = vadd.f32 %v2380, %v2528
        %v2545 = vadd.f32 %v2381, %v2529
        %v2546 = vadd.f32 %v2382, %v2530
        %v2547 = vadd.f32 %v2383, %v2531
        %v2548 = vadd.f32 %v2384, %v2532
        %v2549 = vadd.f32 %v2385, %v2533
        %v2550 = vadd.f32 %v2386, %v2534
        %v2551 = vadd.f32 %v2387, %v2535
        %v2552 = vadd.f32 %v2388, %v2536
        %v2553 = vadd.f32 %v2389, %v2537
        %v2554 = vadd.f32 %v2390, %v2538
        %v2555 = vadd.f32 %v2391, %v2539
        %v2556 = vadd.f32 %v2392, %v2540
        %v2557 = vadd.f32 %v2393, %v2541
        %v2558 = vadd.f32 %v2394, %v2542
        %v2559 = vadd.f32 %v2395, %v2543
        %v2562 = vcombine.low %v2079, %v2080
        %v2563 = vcombine.high %v2079, %v2080
        %v2565 = vunpack.c.l.s4 1966171168
        %v2566 = vunpack.c.0.s8 %v2565
        %v2567 = vlaneseq
        %v2568 = vshrl.u32 %v2567, 7
        %v2569 = vsub.s32 %v2566, %v2568
        %v2570 = vrot.slane %v2562, %v2569
        %v2572 = vunpack.c.l.s4 1966171168
        %v2573 = vunpack.c.0.s8 %v2572
        %v2574 = vlaneseq
        %v2575 = vshrl.u32 %v2574, 7
        %v2576 = vsub.s32 %v2573, %v2575
        %v2577 = vrot.slane %v2563, %v2576
        %v2578 = vcombine.high %v2570, %v2570
        %v2579 = vcombine.high %v2577, %v2577
        %v2581 = vunpack.c.l.s4 1966171168
        %v2582 = vunpack.c.0.s8 %v2581
        %v2583 = vlaneseq
        %v2584 = vshrl.u32 %v2583, 7
        %v2585 = vsub.s32 %v2582, %v2584
        %v2586 = vrot.slane %v2570, %v2585
        %v2588 = vunpack.c.l.s4 1966171168
        %v2589 = vunpack.c.0.s8 %v2588
        %v2590 = vlaneseq
        %v2591 = vshrl.u32 %v2590, 7
        %v2592 = vsub.s32 %v2589, %v2591
        %v2593 = vrot.slane %v2577, %v2592
        %v2595 = vunpack.c.l.s4 1966171168
        %v2596 = vunpack.c.0.s8 %v2595
        %v2597 = vlaneseq
        %v2598 = vshrl.u32 %v2597, 7
        %v2599 = vsub.s32 %v2596, %v2598
        %v2600 = vrot.slane %v2578, %v2599
        %v2602 = vunpack.c.l.s4 1966171168
        %v2603 = vunpack.c.0.s8 %v2602
        %v2604 = vlaneseq
        %v2605 = vshrl.u32 %v2604, 7
        %v2606 = vsub.s32 %v2603, %v2605
        %v2607 = vrot.slane %v2579, %v2606
        %v2608 = vcombine.high %v2586, %v2586
        %v2609 = vcombine.high %v2593, %v2593
        %v2610 = vcombine.high %v2600, %v2600
        %v2611 = vcombine.high %v2607, %v2607
        %v2612 = vlaneseq
        %v2613 = vshrl.u32 %v2612, 7
        %v2614 = vsub.s32 0, %v2613
        %v2615 = vrot.slane %v2586, %v2614
        %v2616 = vlaneseq
        %v2617 = vshrl.u32 %v2616, 7
        %v2618 = vsub.s32 1, %v2617
        %v2619 = vrot.slane %v2586, %v2618
        %v2620 = vlaneseq
        %v2621 = vshrl.u32 %v2620, 7
        %v2622 = vsub.s32 0, %v2621
        %v2623 = vrot.slane %v2600, %v2622
        %v2624 = vlaneseq
        %v2625 = vshrl.u32 %v2624, 7
        %v2626 = vsub.s32 1, %v2625
        %v2627 = vrot.slane %v2600, %v2626
        %v2628 = vlaneseq
        %v2629 = vshrl.u32 %v2628, 7
        %v2630 = vsub.s32 0, %v2629
        %v2631 = vrot.slane %v2608, %v2630
        %v2632 = vlaneseq
        %v2633 = vshrl.u32 %v2632, 7
        %v2634 = vsub.s32 1, %v2633
        %v2635 = vrot.slane %v2608, %v2634
        %v2636 = vlaneseq
        %v2637 = vshrl.u32 %v2636, 7
        %v2638 = vsub.s32 0, %v2637
        %v2639 = vrot.slane %v2610, %v2638
        %v2640 = vlaneseq
        %v2641 = vshrl.u32 %v2640, 7
        %v2642 = vsub.s32 1, %v2641
        %v2643 = vrot.slane %v2610, %v2642
        %v2644 = vlaneseq
        %v2645 = vshrl.u32 %v2644, 7
        %v2646 = vsub.s32 0, %v2645
        %v2647 = vrot.slane %v2593, %v2646
        %v2648 = vlaneseq
        %v2649 = vshrl.u32 %v2648, 7
        %v2650 = vsub.s32 1, %v2649
        %v2651 = vrot.slane %v2593, %v2650
        %v2652 = vlaneseq
        %v2653 = vshrl.u32 %v2652, 7
        %v2654 = vsub.s32 0, %v2653
        %v2655 = vrot.slane %v2607, %v2654
        %v2656 = vlaneseq
        %v2657 = vshrl.u32 %v2656, 7
        %v2658 = vsub.s32 1, %v2657
        %v2659 = vrot.slane %v2607, %v2658
        %v2660 = vlaneseq
        %v2661 = vshrl.u32 %v2660, 7
        %v2662 = vsub.s32 0, %v2661
        %v2663 = vrot.slane %v2609, %v2662
        %v2664 = vlaneseq
        %v2665 = vshrl.u32 %v2664, 7
        %v2666 = vsub.s32 1, %v2665
        %v2667 = vrot.slane %v2609, %v2666
        %v2668 = vlaneseq
        %v2669 = vshrl.u32 %v2668, 7
        %v2670 = vsub.s32 0, %v2669
        %v2671 = vrot.slane %v2611, %v2670
        %v2672 = vlaneseq
        %v2673 = vshrl.u32 %v2672, 7
        %v2674 = vsub.s32 1, %v2673
        %v2675 = vrot.slane %v2611, %v2674
        %v2692 = vmul.f32 %v2615, %v322
        %v2693 = vmul.f32 %v2619, %v323
        %v2694 = vmul.f32 %v2623, %v322
        %v2695 = vmul.f32 %v2627, %v323
        %v2696 = vmul.f32 %v2631, %v322
        %v2697 = vmul.f32 %v2635, %v323
        %v2698 = vmul.f32 %v2639, %v322
        %v2699 = vmul.f32 %v2643, %v323
        %v2700 = vmul.f32 %v2647, %v322
        %v2701 = vmul.f32 %v2651, %v323
        %v2702 = vmul.f32 %v2655, %v322
        %v2703 = vmul.f32 %v2659, %v323
        %v2704 = vmul.f32 %v2663, %v322
        %v2705 = vmul.f32 %v2667, %v323
        %v2706 = vmul.f32 %v2671, %v322
        %v2707 = vmul.f32 %v2675, %v323
        %v2708 = vadd.f32 %v2544, %v2692
        %v2709 = vadd.f32 %v2545, %v2693
        %v2710 = vadd.f32 %v2546, %v2694
        %v2711 = vadd.f32 %v2547, %v2695
        %v2712 = vadd.f32 %v2548, %v2696
        %v2713 = vadd.f32 %v2549, %v2697
        %v2714 = vadd.f32 %v2550, %v2698
        %v2715 = vadd.f32 %v2551, %v2699
        %v2716 = vadd.f32 %v2552, %v2700
        %v2717 = vadd.f32 %v2553, %v2701
        %v2718 = vadd.f32 %v2554, %v2702
        %v2719 = vadd.f32 %v2555, %v2703
        %v2720 = vadd.f32 %v2556, %v2704
        %v2721 = vadd.f32 %v2557, %v2705
        %v2722 = vadd.f32 %v2558, %v2706
        %v2723 = vadd.f32 %v2559, %v2707
        %v2724 = vrot.slane %v2708, 4
        %v2725 = vmax.f32 %v2708, %v2724
        %v2726 = vrot.slane %v2725, 2
        %v2727 = vmax.f32 %v2725, %v2726
        %v2728 = vrot.slane %v2727, 1
        %v2729 = vmax.f32 %v2727, %v2728
        %v2730 = vrot.slane %v2709, 4
        %v2731 = vmax.f32 %v2709, %v2730
        %v2732 = vrot.slane %v2731, 2
        %v2733 = vmax.f32 %v2731, %v2732
        %v2734 = vrot.slane %v2733, 1
        %v2735 = vmax.f32 %v2733, %v2734
        %v2736 = vrot.slane %v2710, 4
        %v2737 = vmax.f32 %v2710, %v2736
        %v2738 = vrot.slane %v2737, 2
        %v2739 = vmax.f32 %v2737, %v2738
        %v2740 = vrot.slane %v2739, 1
        %v2741 = vmax.f32 %v2739, %v2740
        %v2742 = vrot.slane %v2711, 4
        %v2743 = vmax.f32 %v2711, %v2742
        %v2744 = vrot.slane %v2743, 2
        %v2745 = vmax.f32 %v2743, %v2744
        %v2746 = vrot.slane %v2745, 1
        %v2747 = vmax.f32 %v2745, %v2746
        %v2748 = vrot.slane %v2712, 4
        %v2749 = vmax.f32 %v2712, %v2748
        %v2750 = vrot.slane %v2749, 2
        %v2751 = vmax.f32 %v2749, %v2750
        %v2752 = vrot.slane %v2751, 1
        %v2753 = vmax.f32 %v2751, %v2752
        %v2754 = vrot.slane %v2713, 4
        %v2755 = vmax.f32 %v2713, %v2754
        %v2756 = vrot.slane %v2755, 2
        %v2757 = vmax.f32 %v2755, %v2756
        %v2758 = vrot.slane %v2757, 1
        %v2759 = vmax.f32 %v2757, %v2758
        %v2760 = vrot.slane %v2714, 4
        %v2761 = vmax.f32 %v2714, %v2760
        %v2762 = vrot.slane %v2761, 2
        %v2763 = vmax.f32 %v2761, %v2762
        %v2764 = vrot.slane %v2763, 1
        %v2765 = vmax.f32 %v2763, %v2764
        %v2766 = vrot.slane %v2715, 4
        %v2767 = vmax.f32 %v2715, %v2766
        %v2768 = vrot.slane %v2767, 2
        %v2769 = vmax.f32 %v2767, %v2768
        %v2770 = vrot.slane %v2769, 1
        %v2771 = vmax.f32 %v2769, %v2770
        %v2772 = vrot.slane %v2716, 4
        %v2773 = vmax.f32 %v2716, %v2772
        %v2774 = vrot.slane %v2773, 2
        %v2775 = vmax.f32 %v2773, %v2774
        %v2776 = vrot.slane %v2775, 1
        %v2777 = vmax.f32 %v2775, %v2776
        %v2778 = vrot.slane %v2717, 4
        %v2779 = vmax.f32 %v2717, %v2778
        %v2780 = vrot.slane %v2779, 2
        %v2781 = vmax.f32 %v2779, %v2780
        %v2782 = vrot.slane %v2781, 1
        %v2783 = vmax.f32 %v2781, %v2782
        %v2784 = vrot.slane %v2718, 4
        %v2785 = vmax.f32 %v2718, %v2784
        %v2786 = vrot.slane %v2785, 2
        %v2787 = vmax.f32 %v2785, %v2786
        %v2788 = vrot.slane %v2787, 1
        %v2789 = vmax.f32 %v2787, %v2788
        %v2790 = vrot.slane %v2719, 4
        %v2791 = vmax.f32 %v2719, %v2790
        %v2792 = vrot.slane %v2791, 2
        %v2793 = vmax.f32 %v2791, %v2792
        %v2794 = vrot.slane %v2793, 1
        %v2795 = vmax.f32 %v2793, %v2794
        %v2796 = vrot.slane %v2720, 4
        %v2797 = vmax.f32 %v2720, %v2796
        %v2798 = vrot.slane %v2797, 2
        %v2799 = vmax.f32 %v2797, %v2798
        %v2800 = vrot.slane %v2799, 1
        %v2801 = vmax.f32 %v2799, %v2800
        %v2802 = vrot.slane %v2721, 4
        %v2803 = vmax.f32 %v2721, %v2802
        %v2804 = vrot.slane %v2803, 2
        %v2805 = vmax.f32 %v2803, %v2804
        %v2806 = vrot.slane %v2805, 1
        %v2807 = vmax.f32 %v2805, %v2806
        %v2808 = vrot.slane %v2722, 4
        %v2809 = vmax.f32 %v2722, %v2808
        %v2810 = vrot.slane %v2809, 2
        %v2811 = vmax.f32 %v2809, %v2810
        %v2812 = vrot.slane %v2811, 1
        %v2813 = vmax.f32 %v2811, %v2812
        %v2814 = vrot.slane %v2723, 4
        %v2815 = vmax.f32 %v2723, %v2814
        %v2816 = vrot.slane %v2815, 2
        %v2817 = vmax.f32 %v2815, %v2816
        %v2818 = vrot.slane %v2817, 1
        %v2819 = vmax.f32 %v2817, %v2818
        %v2820 = vsub.f32 %v2708, %v2729
        %v2821 = vsub.f32 %v2709, %v2735
        %v2822 = vsub.f32 %v2710, %v2741
        %v2823 = vsub.f32 %v2711, %v2747
        %v2824 = vsub.f32 %v2712, %v2753
        %v2825 = vsub.f32 %v2713, %v2759
        %v2826 = vsub.f32 %v2714, %v2765
        %v2827 = vsub.f32 %v2715, %v2771
        %v2828 = vsub.f32 %v2716, %v2777
        %v2829 = vsub.f32 %v2717, %v2783
        %v2830 = vsub.f32 %v2718, %v2789
        %v2831 = vsub.f32 %v2719, %v2795
        %v2832 = vsub.f32 %v2720, %v2801
        %v2833 = vsub.f32 %v2721, %v2807
        %v2834 = vsub.f32 %v2722, %v2813
        %v2835 = vsub.f32 %v2723, %v2819
        %v2836 = vmul.f32 %v2820, 1.442695
        %v2837 = vpow.pop %v2836
        %v2838 = vmul.f32 %v2821, 1.442695
        %v2839 = vpow.pop %v2838
        %v2840 = vmul.f32 %v2822, 1.442695
        %v2841 = vpow.pop %v2840
        %v2842 = vmul.f32 %v2823, 1.442695
        %v2843 = vpow.pop %v2842
        %v2844 = vmul.f32 %v2824, 1.442695
        %v2845 = vpow.pop %v2844
        %v2846 = vmul.f32 %v2825, 1.442695
        %v2847 = vpow.pop %v2846
        %v2848 = vmul.f32 %v2826, 1.442695
        %v2849 = vpow.pop %v2848
        %v2850 = vmul.f32 %v2827, 1.442695
        %v2851 = vpow.pop %v2850
        %v2852 = vmul.f32 %v2828, 1.442695
        %v2853 = vpow.pop %v2852
        %v2854 = vmul.f32 %v2829, 1.442695
        %v2855 = vpow.pop %v2854
        %v2856 = vmul.f32 %v2830, 1.442695
        %v2857 = vpow.pop %v2856
        %v2858 = vmul.f32 %v2831, 1.442695
        %v2859 = vpow.pop %v2858
        %v2860 = vmul.f32 %v2832, 1.442695
        %v2861 = vpow.pop %v2860
        %v2862 = vmul.f32 %v2833, 1.442695
        %v2863 = vpow.pop %v2862
        %v2864 = vmul.f32 %v2834, 1.442695
        %v2865 = vpow.pop %v2864
        %v2866 = vmul.f32 %v2835, 1.442695
        %v2867 = vpow.pop %v2866
        %v2868 = vrot.slane %v2837, 4
        %v2869 = vadd.f32 %v2837, %v2868
        %v2870 = vrot.slane %v2869, 2
        %v2871 = vadd.f32 %v2869, %v2870
        %v2872 = vrot.slane %v2871, 1
        %v2873 = vadd.f32 %v2871, %v2872
        %v2874 = vrot.slane %v2839, 4
        %v2875 = vadd.f32 %v2839, %v2874
        %v2876 = vrot.slane %v2875, 2
        %v2877 = vadd.f32 %v2875, %v2876
        %v2878 = vrot.slane %v2877, 1
        %v2879 = vadd.f32 %v2877, %v2878
        %v2880 = vrot.slane %v2841, 4
        %v2881 = vadd.f32 %v2841, %v2880
        %v2882 = vrot.slane %v2881, 2
        %v2883 = vadd.f32 %v2881, %v2882
        %v2884 = vrot.slane %v2883, 1
        %v2885 = vadd.f32 %v2883, %v2884
        %v2886 = vrot.slane %v2843, 4
        %v2887 = vadd.f32 %v2843, %v2886
        %v2888 = vrot.slane %v2887, 2
        %v2889 = vadd.f32 %v2887, %v2888
        %v2890 = vrot.slane %v2889, 1
        %v2891 = vadd.f32 %v2889, %v2890
        %v2892 = vrot.slane %v2845, 4
        %v2893 = vadd.f32 %v2845, %v2892
        %v2894 = vrot.slane %v2893, 2
        %v2895 = vadd.f32 %v2893, %v2894
        %v2896 = vrot.slane %v2895, 1
        %v2897 = vadd.f32 %v2895, %v2896
        %v2898 = vrot.slane %v2847, 4
        %v2899 = vadd.f32 %v2847, %v2898
        %v2900 = vrot.slane %v2899, 2
        %v2901 = vadd.f32 %v2899, %v2900
        %v2902 = vrot.slane %v2901, 1
        %v2903 = vadd.f32 %v2901, %v2902
        %v2904 = vrot.slane %v2849, 4
        %v2905 = vadd.f32 %v2849, %v2904
        %v2906 = vrot.slane %v2905, 2
        %v2907 = vadd.f32 %v2905, %v2906
        %v2908 = vrot.slane %v2907, 1
        %v2909 = vadd.f32 %v2907, %v2908
        %v2910 = vrot.slane %v2851, 4
        %v2911 = vadd.f32 %v2851, %v2910
        %v2912 = vrot.slane %v2911, 2
        %v2913 = vadd.f32 %v2911, %v2912
        %v2914 = vrot.slane %v2913, 1
        %v2915 = vadd.f32 %v2913, %v2914
        %v2916 = vrot.slane %v2853, 4
        %v2917 = vadd.f32 %v2853, %v2916
        %v2918 = vrot.slane %v2917, 2
        %v2919 = vadd.f32 %v2917, %v2918
        %v2920 = vrot.slane %v2919, 1
        %v2921 = vadd.f32 %v2919, %v2920
        %v2922 = vrot.slane %v2855, 4
        %v2923 = vadd.f32 %v2855, %v2922
        %v2924 = vrot.slane %v2923, 2
        %v2925 = vadd.f32 %v2923, %v2924
        %v2926 = vrot.slane %v2925, 1
        %v2927 = vadd.f32 %v2925, %v2926
        %v2928 = vrot.slane %v2857, 4
        %v2929 = vadd.f32 %v2857, %v2928
        %v2930 = vrot.slane %v2929, 2
        %v2931 = vadd.f32 %v2929, %v2930
        %v2932 = vrot.slane %v2931, 1
        %v2933 = vadd.f32 %v2931, %v2932
        %v2934 = vrot.slane %v2859, 4
        %v2935 = vadd.f32 %v2859, %v2934
        %v2936 = vrot.slane %v2935, 2
        %v2937 = vadd.f32 %v2935, %v2936
        %v2938 = vrot.slane %v2937, 1
        %v2939 = vadd.f32 %v2937, %v2938
        %v2940 = vrot.slane %v2861, 4
        %v2941 = vadd.f32 %v2861, %v2940
        %v2942 = vrot.slane %v2941, 2
        %v2943 = vadd.f32 %v2941, %v2942
        %v2944 = vrot.slane %v2943, 1
        %v2945 = vadd.f32 %v2943, %v2944
        %v2946 = vrot.slane %v2863, 4
        %v2947 = vadd.f32 %v2863, %v2946
        %v2948 = vrot.slane %v2947, 2
        %v2949 = vadd.f32 %v2947, %v2948
        %v2950 = vrot.slane %v2949, 1
        %v2951 = vadd.f32 %v2949, %v2950
        %v2952 = vrot.slane %v2865, 4
        %v2953 = vadd.f32 %v2865, %v2952
        %v2954 = vrot.slane %v2953, 2
        %v2955 = vadd.f32 %v2953, %v2954
        %v2956 = vrot.slane %v2955, 1
        %v2957 = vadd.f32 %v2955, %v2956
        %v2958 = vrot.slane %v2867, 4
        %v2959 = vadd.f32 %v2867, %v2958
        %v2960 = vrot.slane %v2959, 2
        %v2961 = vadd.f32 %v2959, %v2960
        %v2962 = vrot.slane %v2961, 1
        %v2963 = vadd.f32 %v2961, %v2962
        %v2964 = vrcp.pop %v2873
        %v2965 = vmul.f32 1.0, %v2964
        %v2966 = vrcp.pop %v2879
        %v2967 = vmul.f32 1.0, %v2966
        %v2968 = vrcp.pop %v2885
        %v2969 = vmul.f32 1.0, %v2968
        %v2970 = vrcp.pop %v2891
        %v2971 = vmul.f32 1.0, %v2970
        %v2972 = vrcp.pop %v2897
        %v2973 = vmul.f32 1.0, %v2972
        %v2974 = vrcp.pop %v2903
        %v2975 = vmul.f32 1.0, %v2974
        %v2976 = vrcp.pop %v2909
        %v2977 = vmul.f32 1.0, %v2976
        %v2978 = vrcp.pop %v2915
        %v2979 = vmul.f32 1.0, %v2978
        %v2980 = vrcp.pop %v2921
        %v2981 = vmul.f32 1.0, %v2980
        %v2982 = vrcp.pop %v2927
        %v2983 = vmul.f32 1.0, %v2982
        %v2984 = vrcp.pop %v2933
        %v2985 = vmul.f32 1.0, %v2984
        %v2986 = vrcp.pop %v2939
        %v2987 = vmul.f32 1.0, %v2986
        %v2988 = vrcp.pop %v2945
        %v2989 = vmul.f32 1.0, %v2988
        %v2990 = vrcp.pop %v2951
        %v2991 = vmul.f32 1.0, %v2990
        %v2992 = vrcp.pop %v2957
        %v2993 = vmul.f32 1.0, %v2992
        %v2994 = vrcp.pop %v2963
        %v2995 = vmul.f32 1.0, %v2994
        %v2996 = vmul.f32 %v2837, %v1956
        %v2997 = vmul.f32 %v2839, %v1957
        %v2998 = vmul.f32 %v2841, %v1956
        %v2999 = vmul.f32 %v2843, %v1957
        %v3000 = vmul.f32 %v2845, %v1956
        %v3001 = vmul.f32 %v2847, %v1957
        %v3002 = vmul.f32 %v2849, %v1956
        %v3003 = vmul.f32 %v2851, %v1957
        %v3004 = vmul.f32 %v2853, %v1956
        %v3005 = vmul.f32 %v2855, %v1957
        %v3006 = vmul.f32 %v2857, %v1956
        %v3007 = vmul.f32 %v2859, %v1957
        %v3008 = vmul.f32 %v2861, %v1956
        %v3009 = vmul.f32 %v2863, %v1957
        %v3010 = vmul.f32 %v2865, %v1956
        %v3011 = vmul.f32 %v2867, %v1957
        %v3012 = vrot.slane %v2996, 4
        %v3013 = vadd.f32 %v2996, %v3012
        %v3014 = vrot.slane %v3013, 2
        %v3015 = vadd.f32 %v3013, %v3014
        %v3016 = vrot.slane %v3015, 1
        %v3017 = vadd.f32 %v3015, %v3016
        %v3018 = vrot.slane %v2997, 4
        %v3019 = vadd.f32 %v2997, %v3018
        %v3020 = vrot.slane %v3019, 2
        %v3021 = vadd.f32 %v3019, %v3020
        %v3022 = vrot.slane %v3021, 1
        %v3023 = vadd.f32 %v3021, %v3022
        %v3024 = vrot.slane %v2998, 4
        %v3025 = vadd.f32 %v2998, %v3024
        %v3026 = vrot.slane %v3025, 2
        %v3027 = vadd.f32 %v3025, %v3026
        %v3028 = vrot.slane %v3027, 1
        %v3029 = vadd.f32 %v3027, %v3028
        %v3030 = vrot.slane %v2999, 4
        %v3031 = vadd.f32 %v2999, %v3030
        %v3032 = vrot.slane %v3031, 2
        %v3033 = vadd.f32 %v3031, %v3032
        %v3034 = vrot.slane %v3033, 1
        %v3035 = vadd.f32 %v3033, %v3034
        %v3036 = vrot.slane %v3000, 4
        %v3037 = vadd.f32 %v3000, %v3036
        %v3038 = vrot.slane %v3037, 2
        %v3039 = vadd.f32 %v3037, %v3038
        %v3040 = vrot.slane %v3039, 1
        %v3041 = vadd.f32 %v3039, %v3040
        %v3042 = vrot.slane %v3001, 4
        %v3043 = vadd.f32 %v3001, %v3042
        %v3044 = vrot.slane %v3043, 2
        %v3045 = vadd.f32 %v3043, %v3044
        %v3046 = vrot.slane %v3045, 1
        %v3047 = vadd.f32 %v3045, %v3046
        %v3048 = vrot.slane %v3002, 4
        %v3049 = vadd.f32 %v3002, %v3048
        %v3050 = vrot.slane %v3049, 2
        %v3051 = vadd.f32 %v3049, %v3050
        %v3052 = vrot.slane %v3051, 1
        %v3053 = vadd.f32 %v3051, %v3052
        %v3054 = vrot.slane %v3003, 4
        %v3055 = vadd.f32 %v3003, %v3054
        %v3056 = vrot.slane %v3055, 2
        %v3057 = vadd.f32 %v3055, %v3056
        %v3058 = vrot.slane %v3057, 1
        %v3059 = vadd.f32 %v3057, %v3058
        %v3060 = vrot.slane %v3004, 4
        %v3061 = vadd.f32 %v3004, %v3060
        %v3062 = vrot.slane %v3061, 2
        %v3063 = vadd.f32 %v3061, %v3062
        %v3064 = vrot.slane %v3063, 1
        %v3065 = vadd.f32 %v3063, %v3064
        %v3066 = vrot.slane %v3005, 4
        %v3067 = vadd.f32 %v3005, %v3066
        %v3068 = vrot.slane %v3067, 2
        %v3069 = vadd.f32 %v3067, %v3068
        %v3070 = vrot.slane %v3069, 1
        %v3071 = vadd.f32 %v3069, %v3070
        %v3072 = vrot.slane %v3006, 4
        %v3073 = vadd.f32 %v3006, %v3072
        %v3074 = vrot.slane %v3073, 2
        %v3075 = vadd.f32 %v3073, %v3074
        %v3076 = vrot.slane %v3075, 1
        %v3077 = vadd.f32 %v3075, %v3076
        %v3078 = vrot.slane %v3007, 4
        %v3079 = vadd.f32 %v3007, %v3078
        %v3080 = vrot.slane %v3079, 2
        %v3081 = vadd.f32 %v3079, %v3080
        %v3082 = vrot.slane %v3081, 1
        %v3083 = vadd.f32 %v3081, %v3082
        %v3084 = vrot.slane %v3008, 4
        %v3085 = vadd.f32 %v3008, %v3084
        %v3086 = vrot.slane %v3085, 2
        %v3087 = vadd.f32 %v3085, %v3086
        %v3088 = vrot.slane %v3087, 1
        %v3089 = vadd.f32 %v3087, %v3088
        %v3090 = vrot.slane %v3009, 4
        %v3091 = vadd.f32 %v3009, %v3090
        %v3092 = vrot.slane %v3091, 2
        %v3093 = vadd.f32 %v3091, %v3092
        %v3094 = vrot.slane %v3093, 1
        %v3095 = vadd.f32 %v3093, %v3094
        %v3096 = vrot.slane %v3010, 4
        %v3097 = vadd.f32 %v3010, %v3096
        %v3098 = vrot.slane %v3097, 2
        %v3099 = vadd.f32 %v3097, %v3098
        %v3100 = vrot.slane %v3099, 1
        %v3101 = vadd.f32 %v3099, %v3100
        %v3102 = vrot.slane %v3011, 4
        %v3103 = vadd.f32 %v3011, %v3102
        %v3104 = vrot.slane %v3103, 2
        %v3105 = vadd.f32 %v3103, %v3104
        %v3106 = vrot.slane %v3105, 1
        %v3107 = vadd.f32 %v3105, %v3106
        %v3108 = vmul.f32 %v3017, %v2965
        %v3109 = vmul.f32 %v3023, %v2967
        %v3110 = vmul.f32 %v3029, %v2969
        %v3111 = vmul.f32 %v3035, %v2971
        %v3112 = vmul.f32 %v3041, %v2973
        %v3113 = vmul.f32 %v3047, %v2975
        %v3114 = vmul.f32 %v3053, %v2977
        %v3115 = vmul.f32 %v3059, %v2979
        %v3116 = vmul.f32 %v3065, %v2981
        %v3117 = vmul.f32 %v3071, %v2983
        %v3118 = vmul.f32 %v3077, %v2985
        %v3119 = vmul.f32 %v3083, %v2987
        %v3120 = vmul.f32 %v3089, %v2989
        %v3121 = vmul.f32 %v3095, %v2991
        %v3122 = vmul.f32 %v3101, %v2993
        %v3123 = vmul.f32 %v3107, %v2995
        %v3124 = vadd.f32 %v1516, %v3108
        %v3125 = vadd.f32 %v1517, %v3109
        %v3126 = vadd.f32 %v1518, %v3110
        %v3127 = vadd.f32 %v1519, %v3111
        %v3128 = vadd.f32 %v1520, %v3112
        %v3129 = vadd.f32 %v1521, %v3113
        %v3130 = vadd.f32 %v1522, %v3114
        %v3131 = vadd.f32 %v1523, %v3115
        %v3132 = vadd.f32 %v1524, %v3116
        %v3133 = vadd.f32 %v1525, %v3117
        %v3134 = vadd.f32 %v1526, %v3118
        %v3135 = vadd.f32 %v1527, %v3119
        %v3136 = vadd.f32 %v1528, %v3120
        %v3137 = vadd.f32 %v1529, %v3121
        %v3138 = vadd.f32 %v1530, %v3122
        %v3139 = vadd.f32 %v1531, %v3123
        %v3140 = vmul.f32 %v2837, %v1998
        %v3141 = vmul.f32 %v2839, %v1999
        %v3142 = vmul.f32 %v2841, %v1998
        %v3143 = vmul.f32 %v2843, %v1999
        %v3144 = vmul.f32 %v2845, %v1998
        %v3145 = vmul.f32 %v2847, %v1999
        %v3146 = vmul.f32 %v2849, %v1998
        %v3147 = vmul.f32 %v2851, %v1999
        %v3148 = vmul.f32 %v2853, %v1998
        %v3149 = vmul.f32 %v2855, %v1999
        %v3150 = vmul.f32 %v2857, %v1998
        %v3151 = vmul.f32 %v2859, %v1999
        %v3152 = vmul.f32 %v2861, %v1998
        %v3153 = vmul.f32 %v2863, %v1999
        %v3154 = vmul.f32 %v2865, %v1998
        %v3155 = vmul.f32 %v2867, %v1999
        %v3156 = vrot.slane %v3140, 4
        %v3157 = vadd.f32 %v3140, %v3156
        %v3158 = vrot.slane %v3157, 2
        %v3159 = vadd.f32 %v3157, %v3158
        %v3160 = vrot.slane %v3159, 1
        %v3161 = vadd.f32 %v3159, %v3160
        %v3162 = vrot.slane %v3141, 4
        %v3163 = vadd.f32 %v3141, %v3162
        %v3164 = vrot.slane %v3163, 2
        %v3165 = vadd.f32 %v3163, %v3164
        %v3166 = vrot.slane %v3165, 1
        %v3167 = vadd.f32 %v3165, %v3166
        %v3168 = vrot.slane %v3142, 4
        %v3169 = vadd.f32 %v3142, %v3168
        %v3170 = vrot.slane %v3169, 2
        %v3171 = vadd.f32 %v3169, %v3170
        %v3172 = vrot.slane %v3171, 1
        %v3173 = vadd.f32 %v3171, %v3172
        %v3174 = vrot.slane %v3143, 4
        %v3175 = vadd.f32 %v3143, %v3174
        %v3176 = vrot.slane %v3175, 2
        %v3177 = vadd.f32 %v3175, %v3176
        %v3178 = vrot.slane %v3177, 1
        %v3179 = vadd.f32 %v3177, %v3178
        %v3180 = vrot.slane %v3144, 4
        %v3181 = vadd.f32 %v3144, %v3180
        %v3182 = vrot.slane %v3181, 2
        %v3183 = vadd.f32 %v3181, %v3182
        %v3184 = vrot.slane %v3183, 1
        %v3185 = vadd.f32 %v3183, %v3184
        %v3186 = vrot.slane %v3145, 4
        %v3187 = vadd.f32 %v3145, %v3186
        %v3188 = vrot.slane %v3187, 2
        %v3189 = vadd.f32 %v3187, %v3188
        %v3190 = vrot.slane %v3189, 1
        %v3191 = vadd.f32 %v3189, %v3190
        %v3192 = vrot.slane %v3146, 4
        %v3193 = vadd.f32 %v3146, %v3192
        %v3194 = vrot.slane %v3193, 2
        %v3195 = vadd.f32 %v3193, %v3194
        %v3196 = vrot.slane %v3195, 1
        %v3197 = vadd.f32 %v3195, %v3196
        %v3198 = vrot.slane %v3147, 4
        %v3199 = vadd.f32 %v3147, %v3198
        %v3200 = vrot.slane %v3199, 2
        %v3201 = vadd.f32 %v3199, %v3200
        %v3202 = vrot.slane %v3201, 1
        %v3203 = vadd.f32 %v3201, %v3202
        %v3204 = vrot.slane %v3148, 4
        %v3205 = vadd.f32 %v3148, %v3204
        %v3206 = vrot.slane %v3205, 2
        %v3207 = vadd.f32 %v3205, %v3206
        %v3208 = vrot.slane %v3207, 1
        %v3209 = vadd.f32 %v3207, %v3208
        %v3210 = vrot.slane %v3149, 4
        %v3211 = vadd.f32 %v3149, %v3210
        %v3212 = vrot.slane %v3211, 2
        %v3213 = vadd.f32 %v3211, %v3212
        %v3214 = vrot.slane %v3213, 1
        %v3215 = vadd.f32 %v3213, %v3214
        %v3216 = vrot.slane %v3150, 4
        %v3217 = vadd.f32 %v3150, %v3216
        %v3218 = vrot.slane %v3217, 2
        %v3219 = vadd.f32 %v3217, %v3218
        %v3220 = vrot.slane %v3219, 1
        %v3221 = vadd.f32 %v3219, %v3220
        %v3222 = vrot.slane %v3151, 4
        %v3223 = vadd.f32 %v3151, %v3222
        %v3224 = vrot.slane %v3223, 2
        %v3225 = vadd.f32 %v3223, %v3224
        %v3226 = vrot.slane %v3225, 1
        %v3227 = vadd.f32 %v3225, %v3226
        %v3228 = vrot.slane %v3152, 4
        %v3229 = vadd.f32 %v3152, %v3228
        %v3230 = vrot.slane %v3229, 2
        %v3231 = vadd.f32 %v3229, %v3230
        %v3232 = vrot.slane %v3231, 1
        %v3233 = vadd.f32 %v3231, %v3232
        %v3234 = vrot.slane %v3153, 4
        %v3235 = vadd.f32 %v3153, %v3234
        %v3236 = vrot.slane %v3235, 2
        %v3237 = vadd.f32 %v3235, %v3236
        %v3238 = vrot.slane %v3237, 1
        %v3239 = vadd.f32 %v3237, %v3238
        %v3240 = vrot.slane %v3154, 4
        %v3241 = vadd.f32 %v3154, %v3240
        %v3242 = vrot.slane %v3241, 2
        %v3243 = vadd.f32 %v3241, %v3242
        %v3244 = vrot.slane %v3243, 1
        %v3245 = vadd.f32 %v3243, %v3244
        %v3246 = vrot.slane %v3155, 4
        %v3247 = vadd.f32 %v3155, %v3246
        %v3248 = vrot.slane %v3247, 2
        %v3249 = vadd.f32 %v3247, %v3248
        %v3250 = vrot.slane %v3249, 1
        %v3251 = vadd.f32 %v3249, %v3250
        %v3252 = vmul.f32 %v3161, %v2965
        %v3253 = vmul.f32 %v3167, %v2967
        %v3254 = vmul.f32 %v3173, %v2969
        %v3255 = vmul.f32 %v3179, %v2971
        %v3256 = vmul.f32 %v3185, %v2973
        %v3257 = vmul.f32 %v3191, %v2975
        %v3258 = vmul.f32 %v3197, %v2977
        %v3259 = vmul.f32 %v3203, %v2979
        %v3260 = vmul.f32 %v3209, %v2981
        %v3261 = vmul.f32 %v3215, %v2983
        %v3262 = vmul.f32 %v3221, %v2985
        %v3263 = vmul.f32 %v3227, %v2987
        %v3264 = vmul.f32 %v3233, %v2989
        %v3265 = vmul.f32 %v3239, %v2991
        %v3266 = vmul.f32 %v3245, %v2993
        %v3267 = vmul.f32 %v3251, %v2995
        %v3268 = vadd.f32 %v1644, %v3252
        %v3269 = vadd.f32 %v1645, %v3253
        %v3270 = vadd.f32 %v1646, %v3254
        %v3271 = vadd.f32 %v1647, %v3255
        %v3272 = vadd.f32 %v1648, %v3256
        %v3273 = vadd.f32 %v1649, %v3257
        %v3274 = vadd.f32 %v1650, %v3258
        %v3275 = vadd.f32 %v1651, %v3259
        %v3276 = vadd.f32 %v1652, %v3260
        %v3277 = vadd.f32 %v1653, %v3261
        %v3278 = vadd.f32 %v1654, %v3262
        %v3279 = vadd.f32 %v1655, %v3263
        %v3280 = vadd.f32 %v1656, %v3264
        %v3281 = vadd.f32 %v1657, %v3265
        %v3282 = vadd.f32 %v1658, %v3266
        %v3283 = vadd.f32 %v1659, %v3267
        %v3284 = vmul.f32 %v2837, %v2040
        %v3285 = vmul.f32 %v2839, %v2041
        %v3286 = vmul.f32 %v2841, %v2040
        %v3287 = vmul.f32 %v2843, %v2041
        %v3288 = vmul.f32 %v2845, %v2040
        %v3289 = vmul.f32 %v2847, %v2041
        %v3290 = vmul.f32 %v2849, %v2040
        %v3291 = vmul.f32 %v2851, %v2041
        %v3292 = vmul.f32 %v2853, %v2040
        %v3293 = vmul.f32 %v2855, %v2041
        %v3294 = vmul.f32 %v2857, %v2040
        %v3295 = vmul.f32 %v2859, %v2041
        %v3296 = vmul.f32 %v2861, %v2040
        %v3297 = vmul.f32 %v2863, %v2041
        %v3298 = vmul.f32 %v2865, %v2040
        %v3299 = vmul.f32 %v2867, %v2041
        %v3300 = vrot.slane %v3284, 4
        %v3301 = vadd.f32 %v3284, %v3300
        %v3302 = vrot.slane %v3301, 2
        %v3303 = vadd.f32 %v3301, %v3302
        %v3304 = vrot.slane %v3303, 1
        %v3305 = vadd.f32 %v3303, %v3304
        %v3306 = vrot.slane %v3285, 4
        %v3307 = vadd.f32 %v3285, %v3306
        %v3308 = vrot.slane %v3307, 2
        %v3309 = vadd.f32 %v3307, %v3308
        %v3310 = vrot.slane %v3309, 1
        %v3311 = vadd.f32 %v3309, %v3310
        %v3312 = vrot.slane %v3286, 4
        %v3313 = vadd.f32 %v3286, %v3312
        %v3314 = vrot.slane %v3313, 2
        %v3315 = vadd.f32 %v3313, %v3314
        %v3316 = vrot.slane %v3315, 1
        %v3317 = vadd.f32 %v3315, %v3316
        %v3318 = vrot.slane %v3287, 4
        %v3319 = vadd.f32 %v3287, %v3318
        %v3320 = vrot.slane %v3319, 2
        %v3321 = vadd.f32 %v3319, %v3320
        %v3322 = vrot.slane %v3321, 1
        %v3323 = vadd.f32 %v3321, %v3322
        %v3324 = vrot.slane %v3288, 4
        %v3325 = vadd.f32 %v3288, %v3324
        %v3326 = vrot.slane %v3325, 2
        %v3327 = vadd.f32 %v3325, %v3326
        %v3328 = vrot.slane %v3327, 1
        %v3329 = vadd.f32 %v3327, %v3328
        %v3330 = vrot.slane %v3289, 4
        %v3331 = vadd.f32 %v3289, %v3330
        %v3332 = vrot.slane %v3331, 2
        %v3333 = vadd.f32 %v3331, %v3332
        %v3334 = vrot.slane %v3333, 1
        %v3335 = vadd.f32 %v3333, %v3334
        %v3336 = vrot.slane %v3290, 4
        %v3337 = vadd.f32 %v3290, %v3336
        %v3338 = vrot.slane %v3337, 2
        %v3339 = vadd.f32 %v3337, %v3338
        %v3340 = vrot.slane %v3339, 1
        %v3341 = vadd.f32 %v3339, %v3340
        %v3342 = vrot.slane %v3291, 4
        %v3343 = vadd.f32 %v3291, %v3342
        %v3344 = vrot.slane %v3343, 2
        %v3345 = vadd.f32 %v3343, %v3344
        %v3346 = vrot.slane %v3345, 1
        %v3347 = vadd.f32 %v3345, %v3346
        %v3348 = vrot.slane %v3292, 4
        %v3349 = vadd.f32 %v3292, %v3348
        %v3350 = vrot.slane %v3349, 2
        %v3351 = vadd.f32 %v3349, %v3350
        %v3352 = vrot.slane %v3351, 1
        %v3353 = vadd.f32 %v3351, %v3352
        %v3354 = vrot.slane %v3293, 4
        %v3355 = vadd.f32 %v3293, %v3354
        %v3356 = vrot.slane %v3355, 2
        %v3357 = vadd.f32 %v3355, %v3356
        %v3358 = vrot.slane %v3357, 1
        %v3359 = vadd.f32 %v3357, %v3358
        %v3360 = vrot.slane %v3294, 4
        %v3361 = vadd.f32 %v3294, %v3360
        %v3362 = vrot.slane %v3361, 2
        %v3363 = vadd.f32 %v3361, %v3362
        %v3364 = vrot.slane %v3363, 1
        %v3365 = vadd.f32 %v3363, %v3364
        %v3366 = vrot.slane %v3295, 4
        %v3367 = vadd.f32 %v3295, %v3366
        %v3368 = vrot.slane %v3367, 2
        %v3369 = vadd.f32 %v3367, %v3368
        %v3370 = vrot.slane %v3369, 1
        %v3371 = vadd.f32 %v3369, %v3370
        %v3372 = vrot.slane %v3296, 4
        %v3373 = vadd.f32 %v3296, %v3372
        %v3374 = vrot.slane %v3373, 2
        %v3375 = vadd.f32 %v3373, %v3374
        %v3376 = vrot.slane %v3375, 1
        %v3377 = vadd.f32 %v3375, %v3376
        %v3378 = vrot.slane %v3297, 4
        %v3379 = vadd.f32 %v3297, %v3378
        %v3380 = vrot.slane %v3379, 2
        %v3381 = vadd.f32 %v3379, %v3380
        %v3382 = vrot.slane %v3381, 1
        %v3383 = vadd.f32 %v3381, %v3382
        %v3384 = vrot.slane %v3298, 4
        %v3385 = vadd.f32 %v3298, %v3384
        %v3386 = vrot.slane %v3385, 2
        %v3387 = vadd.f32 %v3385, %v3386
        %v3388 = vrot.slane %v3387, 1
        %v3389 = vadd.f32 %v3387, %v3388
        %v3390 = vrot.slane %v3299, 4
        %v3391 = vadd.f32 %v3299, %v3390
        %v3392 = vrot.slane %v3391, 2
        %v3393 = vadd.f32 %v3391, %v3392
        %v3394 = vrot.slane %v3393, 1
        %v3395 = vadd.f32 %v3393, %v3394
        %v3396 = vmul.f32 %v3305, %v2965
        %v3397 = vmul.f32 %v3311, %v2967
        %v3398 = vmul.f32 %v3317, %v2969
        %v3399 = vmul.f32 %v3323, %v2971
        %v3400 = vmul.f32 %v3329, %v2973
        %v3401 = vmul.f32 %v3335, %v2975
        %v3402 = vmul.f32 %v3341, %v2977
        %v3403 = vmul.f32 %v3347, %v2979
        %v3404 = vmul.f32 %v3353, %v2981
        %v3405 = vmul.f32 %v3359, %v2983
        %v3406 = vmul.f32 %v3365, %v2985
        %v3407 = vmul.f32 %v3371, %v2987
        %v3408 = vmul.f32 %v3377, %v2989
        %v3409 = vmul.f32 %v3383, %v2991
        %v3410 = vmul.f32 %v3389, %v2993
        %v3411 = vmul.f32 %v3395, %v2995
        %v3412 = vadd.f32 %v1772, %v3396
        %v3413 = vadd.f32 %v1773, %v3397
        %v3414 = vadd.f32 %v1774, %v3398
        %v3415 = vadd.f32 %v1775, %v3399
        %v3416 = vadd.f32 %v1776, %v3400
        %v3417 = vadd.f32 %v1777, %v3401
        %v3418 = vadd.f32 %v1778, %v3402
        %v3419 = vadd.f32 %v1779, %v3403
        %v3420 = vadd.f32 %v1780, %v3404
        %v3421 = vadd.f32 %v1781, %v3405
        %v3422 = vadd.f32 %v1782, %v3406
        %v3423 = vadd.f32 %v1783, %v3407
        %v3424 = vadd.f32 %v1784, %v3408
        %v3425 = vadd.f32 %v1785, %v3409
        %v3426 = vadd.f32 %v1786, %v3410
        %v3427 = vadd.f32 %v1787, %v3411
        %v3428 = vmul.f32 %v2837, %v2082
        %v3429 = vmul.f32 %v2839, %v2083
        %v3430 = vmul.f32 %v2841, %v2082
        %v3431 = vmul.f32 %v2843, %v2083
        %v3432 = vmul.f32 %v2845, %v2082
        %v3433 = vmul.f32 %v2847, %v2083
        %v3434 = vmul.f32 %v2849, %v2082
        %v3435 = vmul.f32 %v2851, %v2083
        %v3436 = vmul.f32 %v2853, %v2082
        %v3437 = vmul.f32 %v2855, %v2083
        %v3438 = vmul.f32 %v2857, %v2082
        %v3439 = vmul.f32 %v2859, %v2083
        %v3440 = vmul.f32 %v2861, %v2082
        %v3441 = vmul.f32 %v2863, %v2083
        %v3442 = vmul.f32 %v2865, %v2082
        %v3443 = vmul.f32 %v2867, %v2083
        %v3444 = vrot.slane %v3428, 4
        %v3445 = vadd.f32 %v3428, %v3444
        %v3446 = vrot.slane %v3445, 2
        %v3447 = vadd.f32 %v3445, %v3446
        %v3448 = vrot.slane %v3447, 1
        %v3449 = vadd.f32 %v3447, %v3448
        %v3450 = vrot.slane %v3429, 4
        %v3451 = vadd.f32 %v3429, %v3450
        %v3452 = vrot.slane %v3451, 2
        %v3453 = vadd.f32 %v3451, %v3452
        %v3454 = vrot.slane %v3453, 1
        %v3455 = vadd.f32 %v3453, %v3454
        %v3456 = vrot.slane %v3430, 4
        %v3457 = vadd.f32 %v3430, %v3456
        %v3458 = vrot.slane %v3457, 2
        %v3459 = vadd.f32 %v3457, %v3458
        %v3460 = vrot.slane %v3459, 1
        %v3461 = vadd.f32 %v3459, %v3460
        %v3462 = vrot.slane %v3431, 4
        %v3463 = vadd.f32 %v3431, %v3462
        %v3464 = vrot.slane %v3463, 2
        %v3465 = vadd.f32 %v3463, %v3464
        %v3466 = vrot.slane %v3465, 1
        %v3467 = vadd.f32 %v3465, %v3466
        %v3468 = vrot.slane %v3432, 4
        %v3469 = vadd.f32 %v3432, %v3468
        %v3470 = vrot.slane %v3469, 2
        %v3471 = vadd.f32 %v3469, %v3470
        %v3472 = vrot.slane %v3471, 1
        %v3473 = vadd.f32 %v3471, %v3472
        %v3474 = vrot.slane %v3433, 4
        %v3475 = vadd.f32 %v3433, %v3474
        %v3476 = vrot.slane %v3475, 2
        %v3477 = vadd.f32 %v3475, %v3476
        %v3478 = vrot.slane %v3477, 1
        %v3479 = vadd.f32 %v3477, %v3478
        %v3480 = vrot.slane %v3434, 4
        %v3481 = vadd.f32 %v3434, %v3480
        %v3482 = vrot.slane %v3481, 2
        %v3483 = vadd.f32 %v3481, %v3482
        %v3484 = vrot.slane %v3483, 1
        %v3485 = vadd.f32 %v3483, %v3484
        %v3486 = vrot.slane %v3435, 4
        %v3487 = vadd.f32 %v3435, %v3486
        %v3488 = vrot.slane %v3487, 2
        %v3489 = vadd.f32 %v3487, %v3488
        %v3490 = vrot.slane %v3489, 1
        %v3491 = vadd.f32 %v3489, %v3490
        %v3492 = vrot.slane %v3436, 4
        %v3493 = vadd.f32 %v3436, %v3492
        %v3494 = vrot.slane %v3493, 2
        %v3495 = vadd.f32 %v3493, %v3494
        %v3496 = vrot.slane %v3495, 1
        %v3497 = vadd.f32 %v3495, %v3496
        %v3498 = vrot.slane %v3437, 4
        %v3499 = vadd.f32 %v3437, %v3498
        %v3500 = vrot.slane %v3499, 2
        %v3501 = vadd.f32 %v3499, %v3500
        %v3502 = vrot.slane %v3501, 1
        %v3503 = vadd.f32 %v3501, %v3502
        %v3504 = vrot.slane %v3438, 4
        %v3505 = vadd.f32 %v3438, %v3504
        %v3506 = vrot.slane %v3505, 2
        %v3507 = vadd.f32 %v3505, %v3506
        %v3508 = vrot.slane %v3507, 1
        %v3509 = vadd.f32 %v3507, %v3508
        %v3510 = vrot.slane %v3439, 4
        %v3511 = vadd.f32 %v3439, %v3510
        %v3512 = vrot.slane %v3511, 2
        %v3513 = vadd.f32 %v3511, %v3512
        %v3514 = vrot.slane %v3513, 1
        %v3515 = vadd.f32 %v3513, %v3514
        %v3516 = vrot.slane %v3440, 4
        %v3517 = vadd.f32 %v3440, %v3516
        %v3518 = vrot.slane %v3517, 2
        %v3519 = vadd.f32 %v3517, %v3518
        %v3520 = vrot.slane %v3519, 1
        %v3521 = vadd.f32 %v3519, %v3520
        %v3522 = vrot.slane %v3441, 4
        %v3523 = vadd.f32 %v3441, %v3522
        %v3524 = vrot.slane %v3523, 2
        %v3525 = vadd.f32 %v3523, %v3524
        %v3526 = vrot.slane %v3525, 1
        %v3527 = vadd.f32 %v3525, %v3526
        %v3528 = vrot.slane %v3442, 4
        %v3529 = vadd.f32 %v3442, %v3528
        %v3530 = vrot.slane %v3529, 2
        %v3531 = vadd.f32 %v3529, %v3530
        %v3532 = vrot.slane %v3531, 1
        %v3533 = vadd.f32 %v3531, %v3532
        %v3534 = vrot.slane %v3443, 4
        %v3535 = vadd.f32 %v3443, %v3534
        %v3536 = vrot.slane %v3535, 2
        %v3537 = vadd.f32 %v3535, %v3536
        %v3538 = vrot.slane %v3537, 1
        %v3539 = vadd.f32 %v3537, %v3538
        %v3540 = vmul.f32 %v3449, %v2965
        %v3541 = vmul.f32 %v3455, %v2967
        %v3542 = vmul.f32 %v3461, %v2969
        %v3543 = vmul.f32 %v3467, %v2971
        %v3544 = vmul.f32 %v3473, %v2973
        %v3545 = vmul.f32 %v3479, %v2975
        %v3546 = vmul.f32 %v3485, %v2977
        %v3547 = vmul.f32 %v3491, %v2979
        %v3548 = vmul.f32 %v3497, %v2981
        %v3549 = vmul.f32 %v3503, %v2983
        %v3550 = vmul.f32 %v3509, %v2985
        %v3551 = vmul.f32 %v3515, %v2987
        %v3552 = vmul.f32 %v3521, %v2989
        %v3553 = vmul.f32 %v3527, %v2991
        %v3554 = vmul.f32 %v3533, %v2993
        %v3555 = vmul.f32 %v3539, %v2995
        %v3556 = vadd.f32 %v1900, %v3540
        %v3557 = vadd.f32 %v1901, %v3541
        %v3558 = vadd.f32 %v1902, %v3542
        %v3559 = vadd.f32 %v1903, %v3543
        %v3560 = vadd.f32 %v1904, %v3544
        %v3561 = vadd.f32 %v1905, %v3545
        %v3562 = vadd.f32 %v1906, %v3546
        %v3563 = vadd.f32 %v1907, %v3547
        %v3564 = vadd.f32 %v1908, %v3548
        %v3565 = vadd.f32 %v1909, %v3549
        %v3566 = vadd.f32 %v1910, %v3550
        %v3567 = vadd.f32 %v1911, %v3551
        %v3568 = vadd.f32 %v1912, %v3552
        %v3569 = vadd.f32 %v1913, %v3553
        %v3570 = vadd.f32 %v1914, %v3554
        %v3571 = vadd.f32 %v1915, %v3555
        %v3574 = vrot.slane %v316, 1
        %v3575 = vrot.slane %v317, 1
        %v3576 = vrot.slane %v316, 2
        %v3577 = vrot.slane %v317, 2
        %v3578 = vrot.slane %v316, 3
        %v3579 = vrot.slane %v317, 3
        %v3580 = vrot.slane %v316, 4
        %v3581 = vrot.slane %v317, 4
        %v3582 = vrot.slane %v316, 5
        %v3583 = vrot.slane %v317, 5
        %v3584 = vrot.slane %v316, 6
        %v3585 = vrot.slane %v317, 6
        %v3586 = vrot.slane %v316, 7
        %v3587 = vrot.slane %v317, 7
        %v3604 = vadd.f32 %v3124, %v316
        %v3605 = vadd.f32 %v3125, %v317
        %v3606 = vadd.f32 %v3126, %v3574
        %v3607 = vadd.f32 %v3127, %v3575
        %v3608 = vadd.f32 %v3128, %v3576
        %v3609 = vadd.f32 %v3129, %v3577
        %v3610 = vadd.f32 %v3130, %v3578
        %v3611 = vadd.f32 %v3131, %v3579
        %v3612 = vadd.f32 %v3132, %v3580
        %v3613 = vadd.f32 %v3133, %v3581
        %v3614 = vadd.f32 %v3134, %v3582
        %v3615 = vadd.f32 %v3135, %v3583
        %v3616 = vadd.f32 %v3136, %v3584
        %v3617 = vadd.f32 %v3137, %v3585
        %v3618 = vadd.f32 %v3138, %v3586
        %v3619 = vadd.f32 %v3139, %v3587
        %v3636 = vrot.slane %v3606, 7
        %vm3637 = vcmask 1041409
        %v3638 = vsel %vm3637, %v3636, %v3604
        %v3639 = vrot.slane %v3608, 6
        %vm3640 = vcmask 1042434
        %v3641 = vsel %vm3640, %v3639, %v3638
        %v3642 = vrot.slane %v3610, 5
        %vm3643 = vcmask 1043459
        %v3644 = vsel %vm3643, %v3642, %v3641
        %v3645 = vrot.slane %v3612, 4
        %vm3646 = vcmask 1044484
        %v3647 = vsel %vm3646, %v3645, %v3644
        %v3648 = vrot.slane %v3614, 3
        %vm3649 = vcmask 1045509
        %v3650 = vsel %vm3649, %v3648, %v3647
        %v3651 = vrot.slane %v3616, 2
        %vm3652 = vcmask 1046534
        %v3653 = vsel %vm3652, %v3651, %v3650
        %v3654 = vrot.slane %v3618, 1
        %vm3655 = vcmask 1047559
        %v3656 = vsel %vm3655, %v3654, %v3653
        %v3657 = vrot.slane %v3607, 7
        %v3658 = vsel %vm3637, %v3657, %v3605
        %v3659 = vrot.slane %v3609, 6
        %v3660 = vsel %vm3640, %v3659, %v3658
        %v3661 = vrot.slane %v3611, 5
        %v3662 = vsel %vm3643, %v3661, %v3660
        %v3663 = vrot.slane %v3613, 4
        %v3664 = vsel %vm3646, %v3663, %v3662
        %v3665 = vrot.slane %v3615, 3
        %v3666 = vsel %vm3649, %v3665, %v3664
        %v3667 = vrot.slane %v3617, 2
        %v3668 = vsel %vm3652, %v3667, %v3666
        %v3669 = vrot.slane %v3619, 1
        %v3670 = vsel %vm3655, %v3669, %v3668
        %3673 = vst [vmem:[%s233] sm:$0xff] %v3656
        %3674 = vst [vmem:[%s233 + $0x8] sm:$0xff] %v3670
        %v3677 = vrot.slane %v318, 1
        %v3678 = vrot.slane %v319, 1
        %v3679 = vrot.slane %v318, 2
        %v3680 = vrot.slane %v319, 2
        %v3681 = vrot.slane %v318, 3
        %v3682 = vrot.slane %v319, 3
        %v3683 = vrot.slane %v318, 4
        %v3684 = vrot.slane %v319, 4
        %v3685 = vrot.slane %v318, 5
        %v3686 = vrot.slane %v319, 5
        %v3687 = vrot.slane %v318, 6
        %v3688 = vrot.slane %v319, 6
        %v3689 = vrot.slane %v318, 7
        %v3690 = vrot.slane %v319, 7
        %v3707 = vadd.f32 %v3268, %v318
        %v3708 = vadd.f32 %v3269, %v319
        %v3709 = vadd.f32 %v3270, %v3677
        %v3710 = vadd.f32 %v3271, %v3678
        %v3711 = vadd.f32 %v3272, %v3679
        %v3712 = vadd.f32 %v3273, %v3680
        %v3713 = vadd.f32 %v3274, %v3681
        %v3714 = vadd.f32 %v3275, %v3682
        %v3715 = vadd.f32 %v3276, %v3683
        %v3716 = vadd.f32 %v3277, %v3684
        %v3717 = vadd.f32 %v3278, %v3685
        %v3718 = vadd.f32 %v3279, %v3686
        %v3719 = vadd.f32 %v3280, %v3687
        %v3720 = vadd.f32 %v3281, %v3688
        %v3721 = vadd.f32 %v3282, %v3689
        %v3722 = vadd.f32 %v3283, %v3690
        %v3739 = vrot.slane %v3709, 7
        %v3740 = vsel %vm3637, %v3739, %v3707
        %v3741 = vrot.slane %v3711, 6
        %v3742 = vsel %vm3640, %v3741, %v3740
        %v3743 = vrot.slane %v3713, 5
        %v3744 = vsel %vm3643, %v3743, %v3742
        %v3745 = vrot.slane %v3715, 4
        %v3746 = vsel %vm3646, %v3745, %v3744
        %v3747 = vrot.slane %v3717, 3
        %v3748 = vsel %vm3649, %v3747, %v3746
        %v3749 = vrot.slane %v3719, 2
        %v3750 = vsel %vm3652, %v3749, %v3748
        %v3751 = vrot.slane %v3721, 1
        %v3752 = vsel %vm3655, %v3751, %v3750
        %v3753 = vrot.slane %v3710, 7
        %v3754 = vsel %vm3637, %v3753, %v3708
        %v3755 = vrot.slane %v3712, 6
        %v3756 = vsel %vm3640, %v3755, %v3754
        %v3757 = vrot.slane %v3714, 5
        %v3758 = vsel %vm3643, %v3757, %v3756
        %v3759 = vrot.slane %v3716, 4
        %v3760 = vsel %vm3646, %v3759, %v3758
        %v3761 = vrot.slane %v3718, 3
        %v3762 = vsel %vm3649, %v3761, %v3760
        %v3763 = vrot.slane %v3720, 2
        %v3764 = vsel %vm3652, %v3763, %v3762
        %v3765 = vrot.slane %v3722, 1
        %v3766 = vsel %vm3655, %v3765, %v3764
        %3769 = vst [vmem:[%s233 + $0x10] sm:$0xff] %v3752
        %3770 = vst [vmem:[%s233 + $0x18] sm:$0xff] %v3766
        %v3773 = vrot.slane %v320, 1
        %v3774 = vrot.slane %v321, 1
        %v3775 = vrot.slane %v320, 2
        %v3776 = vrot.slane %v321, 2
        %v3777 = vrot.slane %v320, 3
        %v3778 = vrot.slane %v321, 3
        %v3779 = vrot.slane %v320, 4
        %v3780 = vrot.slane %v321, 4
        %v3781 = vrot.slane %v320, 5
        %v3782 = vrot.slane %v321, 5
        %v3783 = vrot.slane %v320, 6
        %v3784 = vrot.slane %v321, 6
        %v3785 = vrot.slane %v320, 7
        %v3786 = vrot.slane %v321, 7
        %v3803 = vadd.f32 %v3412, %v320
        %v3804 = vadd.f32 %v3413, %v321
        %v3805 = vadd.f32 %v3414, %v3773
        %v3806 = vadd.f32 %v3415, %v3774
        %v3807 = vadd.f32 %v3416, %v3775
        %v3808 = vadd.f32 %v3417, %v3776
        %v3809 = vadd.f32 %v3418, %v3777
        %v3810 = vadd.f32 %v3419, %v3778
        %v3811 = vadd.f32 %v3420, %v3779
        %v3812 = vadd.f32 %v3421, %v3780
        %v3813 = vadd.f32 %v3422, %v3781
        %v3814 = vadd.f32 %v3423, %v3782
        %v3815 = vadd.f32 %v3424, %v3783
        %v3816 = vadd.f32 %v3425, %v3784
        %v3817 = vadd.f32 %v3426, %v3785
        %v3818 = vadd.f32 %v3427, %v3786
        %v3835 = vrot.slane %v3805, 7
        %v3836 = vsel %vm3637, %v3835, %v3803
        %v3837 = vrot.slane %v3807, 6
        %v3838 = vsel %vm3640, %v3837, %v3836
        %v3839 = vrot.slane %v3809, 5
        %v3840 = vsel %vm3643, %v3839, %v3838
        %v3841 = vrot.slane %v3811, 4
        %v3842 = vsel %vm3646, %v3841, %v3840
        %v3843 = vrot.slane %v3813, 3
        %v3844 = vsel %vm3649, %v3843, %v3842
        %v3845 = vrot.slane %v3815, 2
        %v3846 = vsel %vm3652, %v3845, %v3844
        %v3847 = vrot.slane %v3817, 1
        %v3848 = vsel %vm3655, %v3847, %v3846
        %v3849 = vrot.slane %v3806, 7
        %v3850 = vsel %vm3637, %v3849, %v3804
        %v3851 = vrot.slane %v3808, 6
        %v3852 = vsel %vm3640, %v3851, %v3850
        %v3853 = vrot.slane %v3810, 5
        %v3854 = vsel %vm3643, %v3853, %v3852
        %v3855 = vrot.slane %v3812, 4
        %v3856 = vsel %vm3646, %v3855, %v3854
        %v3857 = vrot.slane %v3814, 3
        %v3858 = vsel %vm3649, %v3857, %v3856
        %v3859 = vrot.slane %v3816, 2
        %v3860 = vsel %vm3652, %v3859, %v3858
        %v3861 = vrot.slane %v3818, 1
        %v3862 = vsel %vm3655, %v3861, %v3860
        %3865 = vst [vmem:[%s233 + $0x20] sm:$0xff] %v3848
        %3866 = vst [vmem:[%s233 + $0x28] sm:$0xff] %v3862
        %v3869 = vrot.slane %v322, 1
        %v3870 = vrot.slane %v323, 1
        %v3871 = vrot.slane %v322, 2
        %v3872 = vrot.slane %v323, 2
        %v3873 = vrot.slane %v322, 3
        %v3874 = vrot.slane %v323, 3
        %v3875 = vrot.slane %v322, 4
        %v3876 = vrot.slane %v323, 4
        %v3877 = vrot.slane %v322, 5
        %v3878 = vrot.slane %v323, 5
        %v3879 = vrot.slane %v322, 6
        %v3880 = vrot.slane %v323, 6
        %v3881 = vrot.slane %v322, 7
        %v3882 = vrot.slane %v323, 7
        %v3899 = vadd.f32 %v3556, %v322
        %v3900 = vadd.f32 %v3557, %v323
        %v3901 = vadd.f32 %v3558, %v3869
        %v3902 = vadd.f32 %v3559, %v3870
        %v3903 = vadd.f32 %v3560, %v3871
        %v3904 = vadd.f32 %v3561, %v3872
        %v3905 = vadd.f32 %v3562, %v3873
        %v3906 = vadd.f32 %v3563, %v3874
        %v3907 = vadd.f32 %v3564, %v3875
        %v3908 = vadd.f32 %v3565, %v3876
        %v3909 = vadd.f32 %v3566, %v3877
        %v3910 = vadd.f32 %v3567, %v3878
        %v3911 = vadd.f32 %v3568, %v3879
        %v3912 = vadd.f32 %v3569, %v3880
        %v3913 = vadd.f32 %v3570, %v3881
        %v3914 = vadd.f32 %v3571, %v3882
        %v3931 = vrot.slane %v3901, 7
        %v3932 = vsel %vm3637, %v3931, %v3899
        %v3933 = vrot.slane %v3903, 6
        %v3934 = vsel %vm3640, %v3933, %v3932
        %v3935 = vrot.slane %v3905, 5
        %v3936 = vsel %vm3643, %v3935, %v3934
        %v3937 = vrot.slane %v3907, 4
        %v3938 = vsel %vm3646, %v3937, %v3936
        %v3939 = vrot.slane %v3909, 3
        %v3940 = vsel %vm3649, %v3939, %v3938
        %v3941 = vrot.slane %v3911, 2
        %v3942 = vsel %vm3652, %v3941, %v3940
        %v3943 = vrot.slane %v3913, 1
        %v3944 = vsel %vm3655, %v3943, %v3942
        %v3945 = vrot.slane %v3902, 7
        %v3946 = vsel %vm3637, %v3945, %v3900
        %v3947 = vrot.slane %v3904, 6
        %v3948 = vsel %vm3640, %v3947, %v3946
        %v3949 = vrot.slane %v3906, 5
        %v3950 = vsel %vm3643, %v3949, %v3948
        %v3951 = vrot.slane %v3908, 4
        %v3952 = vsel %vm3646, %v3951, %v3950
        %v3953 = vrot.slane %v3910, 3
        %v3954 = vsel %vm3649, %v3953, %v3952
        %v3955 = vrot.slane %v3912, 2
        %v3956 = vsel %vm3652, %v3955, %v3954
        %v3957 = vrot.slane %v3914, 1
        %v3958 = vsel %vm3655, %v3957, %v3956
        %3961 = vst [vmem:[%s233 + $0x30] sm:$0xff] %v3944
        %3962 = vst [vmem:[%s233 + $0x38] sm:$0xff] %v3958
        %s3963 = sand.u32 %s114, 1
        %s3964 = scalar_lea.sflag [#allocation4], %s3963
        %s3965 = sand.u32 %s114, 1
        %s3966 = smul.addr %s3965, 64
        %s3967 = scalar_lea.vmem [#allocation9], %s3966
        // Predicated region
        $region45: #{tpu_custom_call.1} parent=31 // pred_check
          %p3968 = pneg %p124
        $region46: #{tpu_custom_call.1} parent=31 // pred_check_branch
          %3970 = sbr.rel (%p3968) target = $region48
        $region47: #{tpu_custom_call.1} parent=31 // pred_region
          %s3971 = smul.u32 2, %s27
          %s3973 = ssub.s32 1024, 1024
          %3974 = vsyncadd %s3964, %s3973
          %s3975 = smul.addr %s26, 8
          %s3976 = sadd.s32 %s3971, %s3975
          %s3977 = smul.addr %s3976, 128
          %s3978 = scalar_lea.hbm %s3, %s3977
          %s3979 = sshll.u32 %s3967, 4
          %s3980 = int_to_ptr.vmem [resolvable:$true] %s3979
          %3985 = dma.vmem_to_hbm [thread:$0]  %s3980, 1024, %s3978, %s3964, 256, 256, 16
        $region48: #{tpu_custom_call.1} parent=31 // pred_fallthru
          _
      $region32: #{tpu_custom_call.1} parent=5 // pred_fallthru
        _
      %p3986 = scmp.le.s32.totalorder 2, %s17
      // Predicated region
      $region49: #{tpu_custom_call.1} parent=5 // pred_check
        %p3987 = pneg %p3986
      $region50: #{tpu_custom_call.1} parent=5 // pred_check_branch
        %3989 = sbr.rel (%p3987) target = $region52
      $region51: #{tpu_custom_call.1} parent=5 // pred_region
        %s3990 = ssub.s32 %s17, 2
        // Predicated region
        $region53: #{tpu_custom_call.1} parent=51 // pred_check
          %p3991 = pneg %p130
        $region54: #{tpu_custom_call.1} parent=51 // pred_check_branch
          %3993 = sbr.rel (%p3991) target = $region56
        $region55: #{tpu_custom_call.1} parent=51 // pred_region
          %s3994 = sand.u32 %s115, 1
          %s3995 = scalar_lea.sflag [#allocation4], %s3994
          %s3996 = sand.u32 %s115, 1
          %s3997 = smul.addr %s3996, 64
          %s3998 = scalar_lea.vmem [#allocation9], %s3997
          %3999 = dma.done %s3995, 1024
        $region56: #{tpu_custom_call.1} parent=51 // pred_fallthru
          _
      $region52: #{tpu_custom_call.1} parent=5 // pred_fallthru
        _
    $region6: #{tpu_custom_call.1} parent=1 // loop_footer
      %s21 = sadd.s32 1, %s17
    $region7: #{tpu_custom_call.1} parent=1 // loop_footer_branch
      %16 = sbr.rel target = $region3
    $region8: #{tpu_custom_call.1} parent=1 // loop_exit
      _
    %4000 = vsyncpa [#allocation3], 1
    %s4001 = scalar_lea.sflag [#allocation3], 1
    %4002 = vsyncpa %s4001, 1
    %4003 = vsyncpa [#allocation4], 1
    %s4004 = scalar_lea.sflag [#allocation4], 1
    %4005 = vsyncpa %s4004, 1
    %4006 = vsyncpa [#allocation5], 1
    %s4007 = scalar_lea.sflag [#allocation5], 1
    %4008 = vsyncpa %s4007, 1
    %4009 = vsyncpa [#allocation8], 1

</llo_original>
